<compile_context>
chip_gen: v5e
topology: v5e:2x2
jax: 0.10.0
libtpu: 0.0.40
codegen_flags: <defaults>
</compile_context>

<pallas_src>
import math
import functools

import jax
import jax.numpy as jnp
from jax.experimental import pallas as pl
from jax.experimental.pallas import tpu as pltpu

WINDOW_SIZE = 11
SIGMA = 1.5


def _gaussian_1d(window_size=WINDOW_SIZE, sigma=SIGMA):
    # Identical to gaussian() in the PyTorch module (normalized separable 1D);
    # the reference 2D window is the outer product of this with itself.
    g = [math.exp(-((x - window_size // 2) ** 2) / float(2 * sigma ** 2))
         for x in range(window_size)]
    s = sum(g)
    return [v / s for v in g]


_G1D = _gaussian_1d()  # baked in as compile-time constants


def _ssim_kernel(img1_ref, img2_ref, out_ref, prod_ref, hbuf_ref, *, H, W):
    # img{1,2}_ref : (1, C, Hp, Wp) zero-padded images (one batch elem, all C)
    # out_ref      : (1, 1, C)      per-(image, channel) sum of the SSIM map
    # prod_ref     : (C, Hp, Wp) f32 staging scratch for the product planes
    # hbuf_ref     : (C, Hp, W)  f32 staging scratch for the horizontal pass
    C = img1_ref.shape[1]

    def sep_conv(hslice):
        # Separable 11x11 Gaussian conv (zero padding already applied):
        # horizontal 11-tap pass into hbuf_ref, then vertical 11-tap pass.
        acc = _G1D[0] * hslice(0)
        for k in range(1, WINDOW_SIZE):
            acc = acc + _G1D[k] * hslice(k)
        hbuf_ref[...] = acc                                  # (C, Hp, W)
        out = _G1D[0] * hbuf_ref[:, 0:H, :]
        for k in range(1, WINDOW_SIZE):
            out = out + _G1D[k] * hbuf_ref[:, k:k + H, :]
        return out                                           # (C, H, W)

    # mu1 / mu2: tap slices loaded directly from the (padded) input refs.
    mu1 = sep_conv(lambda k: img1_ref[0, :, :, k:k + W].astype(jnp.float32))
    mu2 = sep_conv(lambda k: img2_ref[0, :, :, k:k + W].astype(jnp.float32))

    # Product planes: stage each one in a reused f32 scratch so the tap slices
    # are ref loads (not value slices).  Padding region is 0, so products of
    # the padded images equal the padded products.
    x1 = img1_ref[0].astype(jnp.float32)                     # (C, Hp, Wp)
    x2 = img2_ref[0].astype(jnp.float32)

    prod_ref[...] = x1 * x2
    s12 = sep_conv(lambda k: prod_ref[:, :, k:k + W])
    prod_ref[...] = x1 * x1
    s11 = sep_conv(lambda k: prod_ref[:, :, k:k + W])
    prod_ref[...] = x2 * x2
    s22 = sep_conv(lambda k: prod_ref[:, :, k:k + W])

    mu1_sq = mu1 * mu1
    mu2_sq = mu2 * mu2
    mu1_mu2 = mu1 * mu2
    sigma1_sq = s11 - mu1_sq
    sigma2_sq = s22 - mu2_sq
    sigma12 = s12 - mu1_mu2

    C1 = 0.01 ** 2
    C2 = 0.03 ** 2
    ssim_map = ((2.0 * mu1_mu2 + C1) * (2.0 * sigma12 + C2)) / (
        (mu1_sq + mu2_sq + C1) * (sigma1_sq + sigma2_sq + C2))

    sums = jnp.sum(jnp.sum(ssim_map, axis=-1), axis=-1)      # (C,)
    out_ref[...] = sums.reshape(1, 1, C)


def ssim(img1, img2, window_size=WINDOW_SIZE, size_average=True):
    """SSIM matching torch SSIM(window_size=11, size_average=True).forward."""
    assert window_size == WINDOW_SIZE
    N, C, H, W = img1.shape
    p = window_size // 2
    # Pad in the input's native dtype (no f32 up-cast copy in HBM); the kernel
    # casts to f32 internally.
    pad = ((0, 0), (0, 0), (p, p), (p, p))
    x1 = jnp.pad(img1, pad)
    x2 = jnp.pad(img2, pad)
    Hp, Wp = H + 2 * p, W + 2 * p

    kernel = functools.partial(_ssim_kernel, H=H, W=W)

    sums = pl.pallas_call(
        kernel,
        out_shape=jax.ShapeDtypeStruct((N, 1, C), jnp.float32),
        grid_spec=pltpu.PrefetchScalarGridSpec(
            num_scalar_prefetch=0,
            grid=(N,),
            in_specs=[
                pl.BlockSpec((1, C, Hp, Wp), lambda n: (n, 0, 0, 0)),
                pl.BlockSpec((1, C, Hp, Wp), lambda n: (n, 0, 0, 0)),
            ],
            out_specs=pl.BlockSpec((1, 1, C), lambda n: (n, 0, 0)),
            scratch_shapes=[
                pltpu.VMEM((C, Hp, Wp), jnp.float32),   # product-plane staging
                pltpu.VMEM((C, Hp, W), jnp.float32),    # horizontal-pass buffer
            ],
        ),
        compiler_params=pltpu.CompilerParams(
            dimension_semantics=("parallel",)),
    )(x1, x2)

    sums = sums.reshape(N, C)
    if size_average:
        # ssim_map.mean() over all N*C*H*W elements
        return jnp.sum(sums) / (N * C * H * W)
    else:
        # ssim_map.mean(1).mean(1).mean(1) -> shape (N,)
        return jnp.sum(sums, axis=1) / (C * H * W)


if __name__ == "__main__":
    key = jax.random.PRNGKey(0)
    k1, k2 = jax.random.split(key)
    # small shapes consistent with the module's forward (NCHW images)
    img1 = jax.random.uniform(k1, (2, 4, 16, 16), dtype=jnp.float32)
    img2 = jax.random.uniform(k2, (2, 4, 16, 16), dtype=jnp.float32)

    out = ssim(img1, img2)          # scalar SSIM (size_average=True)
    jax.block_until_ready(out)
    print("KERNEL_OK")
</pallas_src>

<mosaic_0001>
module attributes {stable_mosaic.version = 11 : i64} {
  func.func @_ssim_kernel(%arg0: i32, %arg1: memref<1x4x26x26xf32, #tpu.memory_space<vmem>>, %arg2: memref<1x4x26x26xf32, #tpu.memory_space<vmem>>, %arg3: memref<1x1x4xf32, #tpu.memory_space<vmem>>, %arg4: memref<4x26x26xf32, #tpu.memory_space<vmem>>, %arg5: memref<4x26x16xf32, #tpu.memory_space<vmem>>) attributes {dimension_semantics = [#tpu.dimension_semantics<parallel>], iteration_bounds = array<i64: 2>, scalar_prefetch = 0 : i64, scratch_operands = 2 : i64, tpu.core_type = #tpu.core_type<tc>, window_params = [{transform_indices = @transform_0, window_bounds = array<i64: 1, 4, 26, 26>}, {transform_indices = @transform_1, window_bounds = array<i64: 1, 4, 26, 26>}, {transform_indices = @transform_2, window_bounds = array<i64: 1, 1, 4>}]} {
    %c0 = arith.constant 0 : index
    %c0_0 = arith.constant 0 : index
    %c0_1 = arith.constant 0 : index
    %c0_2 = arith.constant 0 : index
    %0 = vector.load %arg1[%c0, %c0_0, %c0_1, %c0_2] : memref<1x4x26x26xf32, #tpu.memory_space<vmem>>, vector<1x4x26x16xf32>
    %1 = vector.shape_cast %0 : vector<1x4x26x16xf32> to vector<4x26x16xf32>
    %cst = arith.constant 0.00102838012 : f32
    %2 = vector.broadcast %cst : f32 to vector<4x26x16xf32>
    %3 = arith.mulf %2, %1 : vector<4x26x16xf32>
    %c0_3 = arith.constant 0 : index
    %c0_4 = arith.constant 0 : index
    %c0_5 = arith.constant 0 : index
    %c1 = arith.constant 1 : index
    %4 = vector.load %arg1[%c0_3, %c0_4, %c0_5, %c1] : memref<1x4x26x26xf32, #tpu.memory_space<vmem>>, vector<1x4x26x16xf32>
    %5 = vector.shape_cast %4 : vector<1x4x26x16xf32> to vector<4x26x16xf32>
    %cst_6 = arith.constant 0.00759875821 : f32
    %6 = vector.broadcast %cst_6 : f32 to vector<4x26x16xf32>
    %7 = arith.mulf %6, %5 : vector<4x26x16xf32>
    %8 = arith.addf %3, %7 : vector<4x26x16xf32>
    %c0_7 = arith.constant 0 : index
    %c0_8 = arith.constant 0 : index
    %c0_9 = arith.constant 0 : index
    %c2 = arith.constant 2 : index
    %9 = vector.load %arg1[%c0_7, %c0_8, %c0_9, %c2] : memref<1x4x26x26xf32, #tpu.memory_space<vmem>>, vector<1x4x26x16xf32>
    %10 = vector.shape_cast %9 : vector<1x4x26x16xf32> to vector<4x26x16xf32>
    %cst_10 = arith.constant 0.0360007733 : f32
    %11 = vector.broadcast %cst_10 : f32 to vector<4x26x16xf32>
    %12 = arith.mulf %11, %10 : vector<4x26x16xf32>
    %13 = arith.addf %8, %12 : vector<4x26x16xf32>
    %c0_11 = arith.constant 0 : index
    %c0_12 = arith.constant 0 : index
    %c0_13 = arith.constant 0 : index
    %c3 = arith.constant 3 : index
    %14 = vector.load %arg1[%c0_11, %c0_12, %c0_13, %c3] : memref<1x4x26x26xf32, #tpu.memory_space<vmem>>, vector<1x4x26x16xf32>
    %15 = vector.shape_cast %14 : vector<1x4x26x16xf32> to vector<4x26x16xf32>
    %cst_14 = arith.constant 0.109360687 : f32
    %16 = vector.broadcast %cst_14 : f32 to vector<4x26x16xf32>
    %17 = arith.mulf %16, %15 : vector<4x26x16xf32>
    %18 = arith.addf %13, %17 : vector<4x26x16xf32>
    %c0_15 = arith.constant 0 : index
    %c0_16 = arith.constant 0 : index
    %c0_17 = arith.constant 0 : index
    %c4 = arith.constant 4 : index
    %19 = vector.load %arg1[%c0_15, %c0_16, %c0_17, %c4] : memref<1x4x26x26xf32, #tpu.memory_space<vmem>>, vector<1x4x26x16xf32>
    %20 = vector.shape_cast %19 : vector<1x4x26x16xf32> to vector<4x26x16xf32>
    %cst_18 = arith.constant 0.213005543 : f32
    %21 = vector.broadcast %cst_18 : f32 to vector<4x26x16xf32>
    %22 = arith.mulf %21, %20 : vector<4x26x16xf32>
    %23 = arith.addf %18, %22 : vector<4x26x16xf32>
    %c0_19 = arith.constant 0 : index
    %c0_20 = arith.constant 0 : index
    %c0_21 = arith.constant 0 : index
    %c5 = arith.constant 5 : index
    %24 = vector.load %arg1[%c0_19, %c0_20, %c0_21, %c5] : memref<1x4x26x26xf32, #tpu.memory_space<vmem>>, vector<1x4x26x16xf32>
    %25 = vector.shape_cast %24 : vector<1x4x26x16xf32> to vector<4x26x16xf32>
    %cst_22 = arith.constant 0.266011715 : f32
    %26 = vector.broadcast %cst_22 : f32 to vector<4x26x16xf32>
    %27 = arith.mulf %26, %25 : vector<4x26x16xf32>
    %28 = arith.addf %23, %27 : vector<4x26x16xf32>
    %c0_23 = arith.constant 0 : index
    %c0_24 = arith.constant 0 : index
    %c0_25 = arith.constant 0 : index
    %c6 = arith.constant 6 : index
    %29 = vector.load %arg1[%c0_23, %c0_24, %c0_25, %c6] : memref<1x4x26x26xf32, #tpu.memory_space<vmem>>, vector<1x4x26x16xf32>
    %30 = vector.shape_cast %29 : vector<1x4x26x16xf32> to vector<4x26x16xf32>
    %cst_26 = arith.constant 0.213005543 : f32
    %31 = vector.broadcast %cst_26 : f32 to vector<4x26x16xf32>
    %32 = arith.mulf %31, %30 : vector<4x26x16xf32>
    %33 = arith.addf %28, %32 : vector<4x26x16xf32>
    %c0_27 = arith.constant 0 : index
    %c0_28 = arith.constant 0 : index
    %c0_29 = arith.constant 0 : index
    %c7 = arith.constant 7 : index
    %34 = vector.load %arg1[%c0_27, %c0_28, %c0_29, %c7] : memref<1x4x26x26xf32, #tpu.memory_space<vmem>>, vector<1x4x26x16xf32>
    %35 = vector.shape_cast %34 : vector<1x4x26x16xf32> to vector<4x26x16xf32>
    %cst_30 = arith.constant 0.109360687 : f32
    %36 = vector.broadcast %cst_30 : f32 to vector<4x26x16xf32>
    %37 = arith.mulf %36, %35 : vector<4x26x16xf32>
    %38 = arith.addf %33, %37 : vector<4x26x16xf32>
    %c0_31 = arith.constant 0 : index
    %c0_32 = arith.constant 0 : index
    %c0_33 = arith.constant 0 : index
    %c8 = arith.constant 8 : index
    %39 = vector.load %arg1[%c0_31, %c0_32, %c0_33, %c8] : memref<1x4x26x26xf32, #tpu.memory_space<vmem>>, vector<1x4x26x16xf32>
    %40 = vector.shape_cast %39 : vector<1x4x26x16xf32> to vector<4x26x16xf32>
    %cst_34 = arith.constant 0.0360007733 : f32
    %41 = vector.broadcast %cst_34 : f32 to vector<4x26x16xf32>
    %42 = arith.mulf %41, %40 : vector<4x26x16xf32>
    %43 = arith.addf %38, %42 : vector<4x26x16xf32>
    %c0_35 = arith.constant 0 : index
    %c0_36 = arith.constant 0 : index
    %c0_37 = arith.constant 0 : index
    %c9 = arith.constant 9 : index
    %44 = vector.load %arg1[%c0_35, %c0_36, %c0_37, %c9] : memref<1x4x26x26xf32, #tpu.memory_space<vmem>>, vector<1x4x26x16xf32>
    %45 = vector.shape_cast %44 : vector<1x4x26x16xf32> to vector<4x26x16xf32>
    %cst_38 = arith.constant 0.00759875821 : f32
    %46 = vector.broadcast %cst_38 : f32 to vector<4x26x16xf32>
    %47 = arith.mulf %46, %45 : vector<4x26x16xf32>
    %48 = arith.addf %43, %47 : vector<4x26x16xf32>
    %c0_39 = arith.constant 0 : index
    %c0_40 = arith.constant 0 : index
    %c0_41 = arith.constant 0 : index
    %c10 = arith.constant 10 : index
    %49 = vector.load %arg1[%c0_39, %c0_40, %c0_41, %c10] : memref<1x4x26x26xf32, #tpu.memory_space<vmem>>, vector<1x4x26x16xf32>
    %50 = vector.shape_cast %49 : vector<1x4x26x16xf32> to vector<4x26x16xf32>
    %cst_42 = arith.constant 0.00102838012 : f32
    %51 = vector.broadcast %cst_42 : f32 to vector<4x26x16xf32>
    %52 = arith.mulf %51, %50 : vector<4x26x16xf32>
    %53 = arith.addf %48, %52 : vector<4x26x16xf32>
    %c0_43 = arith.constant 0 : index
    %c0_44 = arith.constant 0 : index
    %c0_45 = arith.constant 0 : index
    %54 = vector.load %arg5[%c0_43, %c0_44, %c0_45] : memref<4x26x16xf32, #tpu.memory_space<vmem>>, vector<4x26x16xf32>
    tpu.vector_store %arg5[%c0_43, %c0_44, %c0_45], %53 {strides = array<i32>} : memref<4x26x16xf32, #tpu.memory_space<vmem>>, vector<4x26x16xf32>,
    %c0_46 = arith.constant 0 : index
    %c0_47 = arith.constant 0 : index
    %c0_48 = arith.constant 0 : index
    %55 = vector.load %arg5[%c0_46, %c0_47, %c0_48] : memref<4x26x16xf32, #tpu.memory_space<vmem>>, vector<4x16x16xf32>
    %cst_49 = arith.constant 0.00102838012 : f32
    %56 = vector.broadcast %cst_49 : f32 to vector<4x16x16xf32>
    %57 = arith.mulf %56, %55 : vector<4x16x16xf32>
    %c0_50 = arith.constant 0 : index
    %c1_51 = arith.constant 1 : index
    %c0_52 = arith.constant 0 : index
    %58 = vector.load %arg5[%c0_50, %c1_51, %c0_52] : memref<4x26x16xf32, #tpu.memory_space<vmem>>, vector<4x16x16xf32>
    %cst_53 = arith.constant 0.00759875821 : f32
    %59 = vector.broadcast %cst_53 : f32 to vector<4x16x16xf32>
    %60 = arith.mulf %59, %58 : vector<4x16x16xf32>
    %61 = arith.addf %57, %60 : vector<4x16x16xf32>
    %c0_54 = arith.constant 0 : index
    %c2_55 = arith.constant 2 : index
    %c0_56 = arith.constant 0 : index
    %62 = vector.load %arg5[%c0_54, %c2_55, %c0_56] : memref<4x26x16xf32, #tpu.memory_space<vmem>>, vector<4x16x16xf32>
    %cst_57 = arith.constant 0.0360007733 : f32
    %63 = vector.broadcast %cst_57 : f32 to vector<4x16x16xf32>
    %64 = arith.mulf %63, %62 : vector<4x16x16xf32>
    %65 = arith.addf %61, %64 : vector<4x16x16xf32>
    %c0_58 = arith.constant 0 : index
    %c3_59 = arith.constant 3 : index
    %c0_60 = arith.constant 0 : index
    %66 = vector.load %arg5[%c0_58, %c3_59, %c0_60] : memref<4x26x16xf32, #tpu.memory_space<vmem>>, vector<4x16x16xf32>
    %cst_61 = arith.constant 0.109360687 : f32
    %67 = vector.broadcast %cst_61 : f32 to vector<4x16x16xf32>
    %68 = arith.mulf %67, %66 : vector<4x16x16xf32>
    %69 = arith.addf %65, %68 : vector<4x16x16xf32>
    %c0_62 = arith.constant 0 : index
    %c4_63 = arith.constant 4 : index
    %c0_64 = arith.constant 0 : index
    %70 = vector.load %arg5[%c0_62, %c4_63, %c0_64] : memref<4x26x16xf32, #tpu.memory_space<vmem>>, vector<4x16x16xf32>
    %cst_65 = arith.constant 0.213005543 : f32
    %71 = vector.broadcast %cst_65 : f32 to vector<4x16x16xf32>
    %72 = arith.mulf %71, %70 : vector<4x16x16xf32>
    %73 = arith.addf %69, %72 : vector<4x16x16xf32>
    %c0_66 = arith.constant 0 : index
    %c5_67 = arith.constant 5 : index
    %c0_68 = arith.constant 0 : index
    %74 = vector.load %arg5[%c0_66, %c5_67, %c0_68] : memref<4x26x16xf32, #tpu.memory_space<vmem>>, vector<4x16x16xf32>
    %cst_69 = arith.constant 0.266011715 : f32
    %75 = vector.broadcast %cst_69 : f32 to vector<4x16x16xf32>
    %76 = arith.mulf %75, %74 : vector<4x16x16xf32>
    %77 = arith.addf %73, %76 : vector<4x16x16xf32>
    %c0_70 = arith.constant 0 : index
    %c6_71 = arith.constant 6 : index
    %c0_72 = arith.constant 0 : index
    %78 = vector.load %arg5[%c0_70, %c6_71, %c0_72] : memref<4x26x16xf32, #tpu.memory_space<vmem>>, vector<4x16x16xf32>
    %cst_73 = arith.constant 0.213005543 : f32
    %79 = vector.broadcast %cst_73 : f32 to vector<4x16x16xf32>
    %80 = arith.mulf %79, %78 : vector<4x16x16xf32>
    %81 = arith.addf %77, %80 : vector<4x16x16xf32>
    %c0_74 = arith.constant 0 : index
    %c7_75 = arith.constant 7 : index
    %c0_76 = arith.constant 0 : index
    %82 = vector.load %arg5[%c0_74, %c7_75, %c0_76] : memref<4x26x16xf32, #tpu.memory_space<vmem>>, vector<4x16x16xf32>
    %cst_77 = arith.constant 0.109360687 : f32
    %83 = vector.broadcast %cst_77 : f32 to vector<4x16x16xf32>
    %84 = arith.mulf %83, %82 : vector<4x16x16xf32>
    %85 = arith.addf %81, %84 : vector<4x16x16xf32>
    %c0_78 = arith.constant 0 : index
    %c8_79 = arith.constant 8 : index
    %c0_80 = arith.constant 0 : index
    %86 = vector.load %arg5[%c0_78, %c8_79, %c0_80] : memref<4x26x16xf32, #tpu.memory_space<vmem>>, vector<4x16x16xf32>
    %cst_81 = arith.constant 0.0360007733 : f32
    %87 = vector.broadcast %cst_81 : f32 to vector<4x16x16xf32>
    %88 = arith.mulf %87, %86 : vector<4x16x16xf32>
    %89 = arith.addf %85, %88 : vector<4x16x16xf32>
    %c0_82 = arith.constant 0 : index
    %c9_83 = arith.constant 9 : index
    %c0_84 = arith.constant 0 : index
    %90 = vector.load %arg5[%c0_82, %c9_83, %c0_84] : memref<4x26x16xf32, #tpu.memory_space<vmem>>, vector<4x16x16xf32>
    %cst_85 = arith.constant 0.00759875821 : f32
    %91 = vector.broadcast %cst_85 : f32 to vector<4x16x16xf32>
    %92 = arith.mulf %91, %90 : vector<4x16x16xf32>
    %93 = arith.addf %89, %92 : vector<4x16x16xf32>
    %c0_86 = arith.constant 0 : index
    %c10_87 = arith.constant 10 : index
    %c0_88 = arith.constant 0 : index
    %94 = vector.load %arg5[%c0_86, %c10_87, %c0_88] : memref<4x26x16xf32, #tpu.memory_space<vmem>>, vector<4x16x16xf32>
    %cst_89 = arith.constant 0.00102838012 : f32
    %95 = vector.broadcast %cst_89 : f32 to vector<4x16x16xf32>
    %96 = arith.mulf %95, %94 : vector<4x16x16xf32>
    %97 = arith.addf %93, %96 : vector<4x16x16xf32>
    %c0_90 = arith.constant 0 : index
    %c0_91 = arith.constant 0 : index
    %c0_92 = arith.constant 0 : index
    %c0_93 = arith.constant 0 : index
    %98 = vector.load %arg2[%c0_90, %c0_91, %c0_92, %c0_93] : memref<1x4x26x26xf32, #tpu.memory_space<vmem>>, vector<1x4x26x16xf32>
    %99 = vector.shape_cast %98 : vector<1x4x26x16xf32> to vector<4x26x16xf32>
    %cst_94 = arith.constant 0.00102838012 : f32
    %100 = vector.broadcast %cst_94 : f32 to vector<4x26x16xf32>
    %101 = arith.mulf %100, %99 : vector<4x26x16xf32>
    %c0_95 = arith.constant 0 : index
    %c0_96 = arith.constant 0 : index
    %c0_97 = arith.constant 0 : index
    %c1_98 = arith.constant 1 : index
    %102 = vector.load %arg2[%c0_95, %c0_96, %c0_97, %c1_98] : memref<1x4x26x26xf32, #tpu.memory_space<vmem>>, vector<1x4x26x16xf32>
    %103 = vector.shape_cast %102 : vector<1x4x26x16xf32> to vector<4x26x16xf32>
    %cst_99 = arith.constant 0.00759875821 : f32
    %104 = vector.broadcast %cst_99 : f32 to vector<4x26x16xf32>
    %105 = arith.mulf %104, %103 : vector<4x26x16xf32>
    %106 = arith.addf %101, %105 : vector<4x26x16xf32>
    %c0_100 = arith.constant 0 : index
    %c0_101 = arith.constant 0 : index
    %c0_102 = arith.constant 0 : index
    %c2_103 = arith.constant 2 : index
    %107 = vector.load %arg2[%c0_100, %c0_101, %c0_102, %c2_103] : memref<1x4x26x26xf32, #tpu.memory_space<vmem>>, vector<1x4x26x16xf32>
    %108 = vector.shape_cast %107 : vector<1x4x26x16xf32> to vector<4x26x16xf32>
    %cst_104 = arith.constant 0.0360007733 : f32
    %109 = vector.broadcast %cst_104 : f32 to vector<4x26x16xf32>
    %110 = arith.mulf %109, %108 : vector<4x26x16xf32>
    %111 = arith.addf %106, %110 : vector<4x26x16xf32>
    %c0_105 = arith.constant 0 : index
    %c0_106 = arith.constant 0 : index
    %c0_107 = arith.constant 0 : index
    %c3_108 = arith.constant 3 : index
    %112 = vector.load %arg2[%c0_105, %c0_106, %c0_107, %c3_108] : memref<1x4x26x26xf32, #tpu.memory_space<vmem>>, vector<1x4x26x16xf32>
    %113 = vector.shape_cast %112 : vector<1x4x26x16xf32> to vector<4x26x16xf32>
    %cst_109 = arith.constant 0.109360687 : f32
    %114 = vector.broadcast %cst_109 : f32 to vector<4x26x16xf32>
    %115 = arith.mulf %114, %113 : vector<4x26x16xf32>
    %116 = arith.addf %111, %115 : vector<4x26x16xf32>
    %c0_110 = arith.constant 0 : index
    %c0_111 = arith.constant 0 : index
    %c0_112 = arith.constant 0 : index
    %c4_113 = arith.constant 4 : index
    %117 = vector.load %arg2[%c0_110, %c0_111, %c0_112, %c4_113] : memref<1x4x26x26xf32, #tpu.memory_space<vmem>>, vector<1x4x26x16xf32>
    %118 = vector.shape_cast %117 : vector<1x4x26x16xf32> to vector<4x26x16xf32>
    %cst_114 = arith.constant 0.213005543 : f32
    %119 = vector.broadcast %cst_114 : f32 to vector<4x26x16xf32>
    %120 = arith.mulf %119, %118 : vector<4x26x16xf32>
    %121 = arith.addf %116, %120 : vector<4x26x16xf32>
    %c0_115 = arith.constant 0 : index
    %c0_116 = arith.constant 0 : index
    %c0_117 = arith.constant 0 : index
    %c5_118 = arith.constant 5 : index
    %122 = vector.load %arg2[%c0_115, %c0_116, %c0_117, %c5_118] : memref<1x4x26x26xf32, #tpu.memory_space<vmem>>, vector<1x4x26x16xf32>
    %123 = vector.shape_cast %122 : vector<1x4x26x16xf32> to vector<4x26x16xf32>
    %cst_119 = arith.constant 0.266011715 : f32
    %124 = vector.broadcast %cst_119 : f32 to vector<4x26x16xf32>
    %125 = arith.mulf %124, %123 : vector<4x26x16xf32>
    %126 = arith.addf %121, %125 : vector<4x26x16xf32>
    %c0_120 = arith.constant 0 : index
    %c0_121 = arith.constant 0 : index
    %c0_122 = arith.constant 0 : index
    %c6_123 = arith.constant 6 : index
    %127 = vector.load %arg2[%c0_120, %c0_121, %c0_122, %c6_123] : memref<1x4x26x26xf32, #tpu.memory_space<vmem>>, vector<1x4x26x16xf32>
    %128 = vector.shape_cast %127 : vector<1x4x26x16xf32> to vector<4x26x16xf32>
    %cst_124 = arith.constant 0.213005543 : f32
    %129 = vector.broadcast %cst_124 : f32 to vector<4x26x16xf32>
    %130 = arith.mulf %129, %128 : vector<4x26x16xf32>
    %131 = arith.addf %126, %130 : vector<4x26x16xf32>
    %c0_125 = arith.constant 0 : index
    %c0_126 = arith.constant 0 : index
    %c0_127 = arith.constant 0 : index
    %c7_128 = arith.constant 7 : index
    %132 = vector.load %arg2[%c0_125, %c0_126, %c0_127, %c7_128] : memref<1x4x26x26xf32, #tpu.memory_space<vmem>>, vector<1x4x26x16xf32>
    %133 = vector.shape_cast %132 : vector<1x4x26x16xf32> to vector<4x26x16xf32>
    %cst_129 = arith.constant 0.109360687 : f32
    %134 = vector.broadcast %cst_129 : f32 to vector<4x26x16xf32>
    %135 = arith.mulf %134, %133 : vector<4x26x16xf32>
    %136 = arith.addf %131, %135 : vector<4x26x16xf32>
    %c0_130 = arith.constant 0 : index
    %c0_131 = arith.constant 0 : index
    %c0_132 = arith.constant 0 : index
    %c8_133 = arith.constant 8 : index
    %137 = vector.load %arg2[%c0_130, %c0_131, %c0_132, %c8_133] : memref<1x4x26x26xf32, #tpu.memory_space<vmem>>, vector<1x4x26x16xf32>
    %138 = vector.shape_cast %137 : vector<1x4x26x16xf32> to vector<4x26x16xf32>
    %cst_134 = arith.constant 0.0360007733 : f32
    %139 = vector.broadcast %cst_134 : f32 to vector<4x26x16xf32>
    %140 = arith.mulf %139, %138 : vector<4x26x16xf32>
    %141 = arith.addf %136, %140 : vector<4x26x16xf32>
    %c0_135 = arith.constant 0 : index
    %c0_136 = arith.constant 0 : index
    %c0_137 = arith.constant 0 : index
    %c9_138 = arith.constant 9 : index
    %142 = vector.load %arg2[%c0_135, %c0_136, %c0_137, %c9_138] : memref<1x4x26x26xf32, #tpu.memory_space<vmem>>, vector<1x4x26x16xf32>
    %143 = vector.shape_cast %142 : vector<1x4x26x16xf32> to vector<4x26x16xf32>
    %cst_139 = arith.constant 0.00759875821 : f32
    %144 = vector.broadcast %cst_139 : f32 to vector<4x26x16xf32>
    %145 = arith.mulf %144, %143 : vector<4x26x16xf32>
    %146 = arith.addf %141, %145 : vector<4x26x16xf32>
    %c0_140 = arith.constant 0 : index
    %c0_141 = arith.constant 0 : index
    %c0_142 = arith.constant 0 : index
    %c10_143 = arith.constant 10 : index
    %147 = vector.load %arg2[%c0_140, %c0_141, %c0_142, %c10_143] : memref<1x4x26x26xf32, #tpu.memory_space<vmem>>, vector<1x4x26x16xf32>
    %148 = vector.shape_cast %147 : vector<1x4x26x16xf32> to vector<4x26x16xf32>
    %cst_144 = arith.constant 0.00102838012 : f32
    %149 = vector.broadcast %cst_144 : f32 to vector<4x26x16xf32>
    %150 = arith.mulf %149, %148 : vector<4x26x16xf32>
    %151 = arith.addf %146, %150 : vector<4x26x16xf32>
    %c0_145 = arith.constant 0 : index
    %c0_146 = arith.constant 0 : index
    %c0_147 = arith.constant 0 : index
    %152 = vector.load %arg5[%c0_145, %c0_146, %c0_147] : memref<4x26x16xf32, #tpu.memory_space<vmem>>, vector<4x26x16xf32>
    tpu.vector_store %arg5[%c0_145, %c0_146, %c0_147], %151 {strides = array<i32>} : memref<4x26x16xf32, #tpu.memory_space<vmem>>, vector<4x26x16xf32>,
    %c0_148 = arith.constant 0 : index
    %c0_149 = arith.constant 0 : index
    %c0_150 = arith.constant 0 : index
    %153 = vector.load %arg5[%c0_148, %c0_149, %c0_150] : memref<4x26x16xf32, #tpu.memory_space<vmem>>, vector<4x16x16xf32>
    %cst_151 = arith.constant 0.00102838012 : f32
    %154 = vector.broadcast %cst_151 : f32 to vector<4x16x16xf32>
    %155 = arith.mulf %154, %153 : vector<4x16x16xf32>
    %c0_152 = arith.constant 0 : index
    %c1_153 = arith.constant 1 : index
    %c0_154 = arith.constant 0 : index
    %156 = vector.load %arg5[%c0_152, %c1_153, %c0_154] : memref<4x26x16xf32, #tpu.memory_space<vmem>>, vector<4x16x16xf32>
    %cst_155 = arith.constant 0.00759875821 : f32
    %157 = vector.broadcast %cst_155 : f32 to vector<4x16x16xf32>
    %158 = arith.mulf %157, %156 : vector<4x16x16xf32>
    %159 = arith.addf %155, %158 : vector<4x16x16xf32>
    %c0_156 = arith.constant 0 : index
    %c2_157 = arith.constant 2 : index
    %c0_158 = arith.constant 0 : index
    %160 = vector.load %arg5[%c0_156, %c2_157, %c0_158] : memref<4x26x16xf32, #tpu.memory_space<vmem>>, vector<4x16x16xf32>
    %cst_159 = arith.constant 0.0360007733 : f32
    %161 = vector.broadcast %cst_159 : f32 to vector<4x16x16xf32>
    %162 = arith.mulf %161, %160 : vector<4x16x16xf32>
    %163 = arith.addf %159, %162 : vector<4x16x16xf32>
    %c0_160 = arith.constant 0 : index
    %c3_161 = arith.constant 3 : index
    %c0_162 = arith.constant 0 : index
    %164 = vector.load %arg5[%c0_160, %c3_161, %c0_162] : memref<4x26x16xf32, #tpu.memory_space<vmem>>, vector<4x16x16xf32>
    %cst_163 = arith.constant 0.109360687 : f32
    %165 = vector.broadcast %cst_163 : f32 to vector<4x16x16xf32>
    %166 = arith.mulf %165, %164 : vector<4x16x16xf32>
    %167 = arith.addf %163, %166 : vector<4x16x16xf32>
    %c0_164 = arith.constant 0 : index
    %c4_165 = arith.constant 4 : index
    %c0_166 = arith.constant 0 : index
    %168 = vector.load %arg5[%c0_164, %c4_165, %c0_166] : memref<4x26x16xf32, #tpu.memory_space<vmem>>, vector<4x16x16xf32>
    %cst_167 = arith.constant 0.213005543 : f32
    %169 = vector.broadcast %cst_167 : f32 to vector<4x16x16xf32>
    %170 = arith.mulf %169, %168 : vector<4x16x16xf32>
    %171 = arith.addf %167, %170 : vector<4x16x16xf32>
    %c0_168 = arith.constant 0 : index
    %c5_169 = arith.constant 5 : index
    %c0_170 = arith.constant 0 : index
    %172 = vector.load %arg5[%c0_168, %c5_169, %c0_170] : memref<4x26x16xf32, #tpu.memory_space<vmem>>, vector<4x16x16xf32>
    %cst_171 = arith.constant 0.266011715 : f32
    %173 = vector.broadcast %cst_171 : f32 to vector<4x16x16xf32>
    %174 = arith.mulf %173, %172 : vector<4x16x16xf32>
    %175 = arith.addf %171, %174 : vector<4x16x16xf32>
    %c0_172 = arith.constant 0 : index
    %c6_173 = arith.constant 6 : index
    %c0_174 = arith.constant 0 : index
    %176 = vector.load %arg5[%c0_172, %c6_173, %c0_174] : memref<4x26x16xf32, #tpu.memory_space<vmem>>, vector<4x16x16xf32>
    %cst_175 = arith.constant 0.213005543 : f32
    %177 = vector.broadcast %cst_175 : f32 to vector<4x16x16xf32>
    %178 = arith.mulf %177, %176 : vector<4x16x16xf32>
    %179 = arith.addf %175, %178 : vector<4x16x16xf32>
    %c0_176 = arith.constant 0 : index
    %c7_177 = arith.constant 7 : index
    %c0_178 = arith.constant 0 : index
    %180 = vector.load %arg5[%c0_176, %c7_177, %c0_178] : memref<4x26x16xf32, #tpu.memory_space<vmem>>, vector<4x16x16xf32>
    %cst_179 = arith.constant 0.109360687 : f32
    %181 = vector.broadcast %cst_179 : f32 to vector<4x16x16xf32>
    %182 = arith.mulf %181, %180 : vector<4x16x16xf32>
    %183 = arith.addf %179, %182 : vector<4x16x16xf32>
    %c0_180 = arith.constant 0 : index
    %c8_181 = arith.constant 8 : index
    %c0_182 = arith.constant 0 : index
    %184 = vector.load %arg5[%c0_180, %c8_181, %c0_182] : memref<4x26x16xf32, #tpu.memory_space<vmem>>, vector<4x16x16xf32>
    %cst_183 = arith.constant 0.0360007733 : f32
    %185 = vector.broadcast %cst_183 : f32 to vector<4x16x16xf32>
    %186 = arith.mulf %185, %184 : vector<4x16x16xf32>
    %187 = arith.addf %183, %186 : vector<4x16x16xf32>
    %c0_184 = arith.constant 0 : index
    %c9_185 = arith.constant 9 : index
    %c0_186 = arith.constant 0 : index
    %188 = vector.load %arg5[%c0_184, %c9_185, %c0_186] : memref<4x26x16xf32, #tpu.memory_space<vmem>>, vector<4x16x16xf32>
    %cst_187 = arith.constant 0.00759875821 : f32
    %189 = vector.broadcast %cst_187 : f32 to vector<4x16x16xf32>
    %190 = arith.mulf %189, %188 : vector<4x16x16xf32>
    %191 = arith.addf %187, %190 : vector<4x16x16xf32>
    %c0_188 = arith.constant 0 : index
    %c10_189 = arith.constant 10 : index
    %c0_190 = arith.constant 0 : index
    %192 = vector.load %arg5[%c0_188, %c10_189, %c0_190] : memref<4x26x16xf32, #tpu.memory_space<vmem>>, vector<4x16x16xf32>
    %cst_191 = arith.constant 0.00102838012 : f32
    %193 = vector.broadcast %cst_191 : f32 to vector<4x16x16xf32>
    %194 = arith.mulf %193, %192 : vector<4x16x16xf32>
    %195 = arith.addf %191, %194 : vector<4x16x16xf32>
    %c0_192 = arith.constant 0 : index
    %c0_193 = arith.constant 0 : index
    %c0_194 = arith.constant 0 : index
    %c0_195 = arith.constant 0 : index
    %196 = vector.load %arg1[%c0_192, %c0_193, %c0_194, %c0_195] : memref<1x4x26x26xf32, #tpu.memory_space<vmem>>, vector<1x4x26x26xf32>
    %197 = vector.shape_cast %196 : vector<1x4x26x26xf32> to vector<4x26x26xf32>
    %c0_196 = arith.constant 0 : index
    %c0_197 = arith.constant 0 : index
    %c0_198 = arith.constant 0 : index
    %c0_199 = arith.constant 0 : index
    %198 = vector.load %arg2[%c0_196, %c0_197, %c0_198, %c0_199] : memref<1x4x26x26xf32, #tpu.memory_space<vmem>>, vector<1x4x26x26xf32>
    %199 = vector.shape_cast %198 : vector<1x4x26x26xf32> to vector<4x26x26xf32>
    %200 = arith.mulf %197, %199 : vector<4x26x26xf32>
    %c0_200 = arith.constant 0 : index
    %c0_201 = arith.constant 0 : index
    %c0_202 = arith.constant 0 : index
    %201 = vector.load %arg4[%c0_200, %c0_201, %c0_202] : memref<4x26x26xf32, #tpu.memory_space<vmem>>, vector<4x26x26xf32>
    tpu.vector_store %arg4[%c0_200, %c0_201, %c0_202], %200 {strides = array<i32>} : memref<4x26x26xf32, #tpu.memory_space<vmem>>, vector<4x26x26xf32>,
    %c0_203 = arith.constant 0 : index
    %c0_204 = arith.constant 0 : index
    %c0_205 = arith.constant 0 : index
    %202 = vector.load %arg4[%c0_203, %c0_204, %c0_205] : memref<4x26x26xf32, #tpu.memory_space<vmem>>, vector<4x26x16xf32>
    %cst_206 = arith.constant 0.00102838012 : f32
    %203 = vector.broadcast %cst_206 : f32 to vector<4x26x16xf32>
    %204 = arith.mulf %203, %202 : vector<4x26x16xf32>
    %c0_207 = arith.constant 0 : index
    %c0_208 = arith.constant 0 : index
    %c1_209 = arith.constant 1 : index
    %205 = vector.load %arg4[%c0_207, %c0_208, %c1_209] : memref<4x26x26xf32, #tpu.memory_space<vmem>>, vector<4x26x16xf32>
    %cst_210 = arith.constant 0.00759875821 : f32
    %206 = vector.broadcast %cst_210 : f32 to vector<4x26x16xf32>
    %207 = arith.mulf %206, %205 : vector<4x26x16xf32>
    %208 = arith.addf %204, %207 : vector<4x26x16xf32>
    %c0_211 = arith.constant 0 : index
    %c0_212 = arith.constant 0 : index
    %c2_213 = arith.constant 2 : index
    %209 = vector.load %arg4[%c0_211, %c0_212, %c2_213] : memref<4x26x26xf32, #tpu.memory_space<vmem>>, vector<4x26x16xf32>
    %cst_214 = arith.constant 0.0360007733 : f32
    %210 = vector.broadcast %cst_214 : f32 to vector<4x26x16xf32>
    %211 = arith.mulf %210, %209 : vector<4x26x16xf32>
    %212 = arith.addf %208, %211 : vector<4x26x16xf32>
    %c0_215 = arith.constant 0 : index
    %c0_216 = arith.constant 0 : index
    %c3_217 = arith.constant 3 : index
    %213 = vector.load %arg4[%c0_215, %c0_216, %c3_217] : memref<4x26x26xf32, #tpu.memory_space<vmem>>, vector<4x26x16xf32>
    %cst_218 = arith.constant 0.109360687 : f32
    %214 = vector.broadcast %cst_218 : f32 to vector<4x26x16xf32>
    %215 = arith.mulf %214, %213 : vector<4x26x16xf32>
    %216 = arith.addf %212, %215 : vector<4x26x16xf32>
    %c0_219 = arith.constant 0 : index
    %c0_220 = arith.constant 0 : index
    %c4_221 = arith.constant 4 : index
    %217 = vector.load %arg4[%c0_219, %c0_220, %c4_221] : memref<4x26x26xf32, #tpu.memory_space<vmem>>, vector<4x26x16xf32>
    %cst_222 = arith.constant 0.213005543 : f32
    %218 = vector.broadcast %cst_222 : f32 to vector<4x26x16xf32>
    %219 = arith.mulf %218, %217 : vector<4x26x16xf32>
    %220 = arith.addf %216, %219 : vector<4x26x16xf32>
    %c0_223 = arith.constant 0 : index
    %c0_224 = arith.constant 0 : index
    %c5_225 = arith.constant 5 : index
    %221 = vector.load %arg4[%c0_223, %c0_224, %c5_225] : memref<4x26x26xf32, #tpu.memory_space<vmem>>, vector<4x26x16xf32>
    %cst_226 = arith.constant 0.266011715 : f32
    %222 = vector.broadcast %cst_226 : f32 to vector<4x26x16xf32>
    %223 = arith.mulf %222, %221 : vector<4x26x16xf32>
    %224 = arith.addf %220, %223 : vector<4x26x16xf32>
    %c0_227 = arith.constant 0 : index
    %c0_228 = arith.constant 0 : index
    %c6_229 = arith.constant 6 : index
    %225 = vector.load %arg4[%c0_227, %c0_228, %c6_229] : memref<4x26x26xf32, #tpu.memory_space<vmem>>, vector<4x26x16xf32>
    %cst_230 = arith.constant 0.213005543 : f32
    %226 = vector.broadcast %cst_230 : f32 to vector<4x26x16xf32>
    %227 = arith.mulf %226, %225 : vector<4x26x16xf32>
    %228 = arith.addf %224, %227 : vector<4x26x16xf32>
    %c0_231 = arith.constant 0 : index
    %c0_232 = arith.constant 0 : index
    %c7_233 = arith.constant 7 : index
    %229 = vector.load %arg4[%c0_231, %c0_232, %c7_233] : memref<4x26x26xf32, #tpu.memory_space<vmem>>, vector<4x26x16xf32>
    %cst_234 = arith.constant 0.109360687 : f32
    %230 = vector.broadcast %cst_234 : f32 to vector<4x26x16xf32>
    %231 = arith.mulf %230, %229 : vector<4x26x16xf32>
    %232 = arith.addf %228, %231 : vector<4x26x16xf32>
    %c0_235 = arith.constant 0 : index
    %c0_236 = arith.constant 0 : index
    %c8_237 = arith.constant 8 : index
    %233 = vector.load %arg4[%c0_235, %c0_236, %c8_237] : memref<4x26x26xf32, #tpu.memory_space<vmem>>, vector<4x26x16xf32>
    %cst_238 = arith.constant 0.0360007733 : f32
    %234 = vector.broadcast %cst_238 : f32 to vector<4x26x16xf32>
    %235 = arith.mulf %234, %233 : vector<4x26x16xf32>
    %236 = arith.addf %232, %235 : vector<4x26x16xf32>
    %c0_239 = arith.constant 0 : index
    %c0_240 = arith.constant 0 : index
    %c9_241 = arith.constant 9 : index
    %237 = vector.load %arg4[%c0_239, %c0_240, %c9_241] : memref<4x26x26xf32, #tpu.memory_space<vmem>>, vector<4x26x16xf32>
    %cst_242 = arith.constant 0.00759875821 : f32
    %238 = vector.broadcast %cst_242 : f32 to vector<4x26x16xf32>
    %239 = arith.mulf %238, %237 : vector<4x26x16xf32>
    %240 = arith.addf %236, %239 : vector<4x26x16xf32>
    %c0_243 = arith.constant 0 : index
    %c0_244 = arith.constant 0 : index
    %c10_245 = arith.constant 10 : index
    %241 = vector.load %arg4[%c0_243, %c0_244, %c10_245] : memref<4x26x26xf32, #tpu.memory_space<vmem>>, vector<4x26x16xf32>
    %cst_246 = arith.constant 0.00102838012 : f32
    %242 = vector.broadcast %cst_246 : f32 to vector<4x26x16xf32>
    %243 = arith.mulf %242, %241 : vector<4x26x16xf32>
    %244 = arith.addf %240, %243 : vector<4x26x16xf32>
    %c0_247 = arith.constant 0 : index
    %c0_248 = arith.constant 0 : index
    %c0_249 = arith.constant 0 : index
    %245 = vector.load %arg5[%c0_247, %c0_248, %c0_249] : memref<4x26x16xf32, #tpu.memory_space<vmem>>, vector<4x26x16xf32>
    tpu.vector_store %arg5[%c0_247, %c0_248, %c0_249], %244 {strides = array<i32>} : memref<4x26x16xf32, #tpu.memory_space<vmem>>, vector<4x26x16xf32>,
    %c0_250 = arith.constant 0 : index
    %c0_251 = arith.constant 0 : index
    %c0_252 = arith.constant 0 : index
    %246 = vector.load %arg5[%c0_250, %c0_251, %c0_252] : memref<4x26x16xf32, #tpu.memory_space<vmem>>, vector<4x16x16xf32>
    %cst_253 = arith.constant 0.00102838012 : f32
    %247 = vector.broadcast %cst_253 : f32 to vector<4x16x16xf32>
    %248 = arith.mulf %247, %246 : vector<4x16x16xf32>
    %c0_254 = arith.constant 0 : index
    %c1_255 = arith.constant 1 : index
    %c0_256 = arith.constant 0 : index
    %249 = vector.load %arg5[%c0_254, %c1_255, %c0_256] : memref<4x26x16xf32, #tpu.memory_space<vmem>>, vector<4x16x16xf32>
    %cst_257 = arith.constant 0.00759875821 : f32
    %250 = vector.broadcast %cst_257 : f32 to vector<4x16x16xf32>
    %251 = arith.mulf %250, %249 : vector<4x16x16xf32>
    %252 = arith.addf %248, %251 : vector<4x16x16xf32>
    %c0_258 = arith.constant 0 : index
    %c2_259 = arith.constant 2 : index
    %c0_260 = arith.constant 0 : index
    %253 = vector.load %arg5[%c0_258, %c2_259, %c0_260] : memref<4x26x16xf32, #tpu.memory_space<vmem>>, vector<4x16x16xf32>
    %cst_261 = arith.constant 0.0360007733 : f32
    %254 = vector.broadcast %cst_261 : f32 to vector<4x16x16xf32>
    %255 = arith.mulf %254, %253 : vector<4x16x16xf32>
    %256 = arith.addf %252, %255 : vector<4x16x16xf32>
    %c0_262 = arith.constant 0 : index
    %c3_263 = arith.constant 3 : index
    %c0_264 = arith.constant 0 : index
    %257 = vector.load %arg5[%c0_262, %c3_263, %c0_264] : memref<4x26x16xf32, #tpu.memory_space<vmem>>, vector<4x16x16xf32>
    %cst_265 = arith.constant 0.109360687 : f32
    %258 = vector.broadcast %cst_265 : f32 to vector<4x16x16xf32>
    %259 = arith.mulf %258, %257 : vector<4x16x16xf32>
    %260 = arith.addf %256, %259 : vector<4x16x16xf32>
    %c0_266 = arith.constant 0 : index
    %c4_267 = arith.constant 4 : index
    %c0_268 = arith.constant 0 : index
    %261 = vector.load %arg5[%c0_266, %c4_267, %c0_268] : memref<4x26x16xf32, #tpu.memory_space<vmem>>, vector<4x16x16xf32>
    %cst_269 = arith.constant 0.213005543 : f32
    %262 = vector.broadcast %cst_269 : f32 to vector<4x16x16xf32>
    %263 = arith.mulf %262, %261 : vector<4x16x16xf32>
    %264 = arith.addf %260, %263 : vector<4x16x16xf32>
    %c0_270 = arith.constant 0 : index
    %c5_271 = arith.constant 5 : index
    %c0_272 = arith.constant 0 : index
    %265 = vector.load %arg5[%c0_270, %c5_271, %c0_272] : memref<4x26x16xf32, #tpu.memory_space<vmem>>, vector<4x16x16xf32>
    %cst_273 = arith.constant 0.266011715 : f32
    %266 = vector.broadcast %cst_273 : f32 to vector<4x16x16xf32>
    %267 = arith.mulf %266, %265 : vector<4x16x16xf32>
    %268 = arith.addf %264, %267 : vector<4x16x16xf32>
    %c0_274 = arith.constant 0 : index
    %c6_275 = arith.constant 6 : index
    %c0_276 = arith.constant 0 : index
    %269 = vector.load %arg5[%c0_274, %c6_275, %c0_276] : memref<4x26x16xf32, #tpu.memory_space<vmem>>, vector<4x16x16xf32>
    %cst_277 = arith.constant 0.213005543 : f32
    %270 = vector.broadcast %cst_277 : f32 to vector<4x16x16xf32>
    %271 = arith.mulf %270, %269 : vector<4x16x16xf32>
    %272 = arith.addf %268, %271 : vector<4x16x16xf32>
    %c0_278 = arith.constant 0 : index
    %c7_279 = arith.constant 7 : index
    %c0_280 = arith.constant 0 : index
    %273 = vector.load %arg5[%c0_278, %c7_279, %c0_280] : memref<4x26x16xf32, #tpu.memory_space<vmem>>, vector<4x16x16xf32>
    %cst_281 = arith.constant 0.109360687 : f32
    %274 = vector.broadcast %cst_281 : f32 to vector<4x16x16xf32>
    %275 = arith.mulf %274, %273 : vector<4x16x16xf32>
    %276 = arith.addf %272, %275 : vector<4x16x16xf32>
    %c0_282 = arith.constant 0 : index
    %c8_283 = arith.constant 8 : index
    %c0_284 = arith.constant 0 : index
    %277 = vector.load %arg5[%c0_282, %c8_283, %c0_284] : memref<4x26x16xf32, #tpu.memory_space<vmem>>, vector<4x16x16xf32>
    %cst_285 = arith.constant 0.0360007733 : f32
    %278 = vector.broadcast %cst_285 : f32 to vector<4x16x16xf32>
    %279 = arith.mulf %278, %277 : vector<4x16x16xf32>
    %280 = arith.addf %276, %279 : vector<4x16x16xf32>
    %c0_286 = arith.constant 0 : index
    %c9_287 = arith.constant 9 : index
    %c0_288 = arith.constant 0 : index
    %281 = vector.load %arg5[%c0_286, %c9_287, %c0_288] : memref<4x26x16xf32, #tpu.memory_space<vmem>>, vector<4x16x16xf32>
    %cst_289 = arith.constant 0.00759875821 : f32
    %282 = vector.broadcast %cst_289 : f32 to vector<4x16x16xf32>
    %283 = arith.mulf %282, %281 : vector<4x16x16xf32>
    %284 = arith.addf %280, %283 : vector<4x16x16xf32>
    %c0_290 = arith.constant 0 : index
    %c10_291 = arith.constant 10 : index
    %c0_292 = arith.constant 0 : index
    %285 = vector.load %arg5[%c0_290, %c10_291, %c0_292] : memref<4x26x16xf32, #tpu.memory_space<vmem>>, vector<4x16x16xf32>
    %cst_293 = arith.constant 0.00102838012 : f32
    %286 = vector.broadcast %cst_293 : f32 to vector<4x16x16xf32>
    %287 = arith.mulf %286, %285 : vector<4x16x16xf32>
    %288 = arith.addf %284, %287 : vector<4x16x16xf32>
    %289 = arith.mulf %197, %197 : vector<4x26x26xf32>
    %c0_294 = arith.constant 0 : index
    %c0_295 = arith.constant 0 : index
    %c0_296 = arith.constant 0 : index
    %290 = vector.load %arg4[%c0_294, %c0_295, %c0_296] : memref<4x26x26xf32, #tpu.memory_space<vmem>>, vector<4x26x26xf32>
    tpu.vector_store %arg4[%c0_294, %c0_295, %c0_296], %289 {strides = array<i32>} : memref<4x26x26xf32, #tpu.memory_space<vmem>>, vector<4x26x26xf32>,
    %c0_297 = arith.constant 0 : index
    %c0_298 = arith.constant 0 : index
    %c0_299 = arith.constant 0 : index
    %291 = vector.load %arg4[%c0_297, %c0_298, %c0_299] : memref<4x26x26xf32, #tpu.memory_space<vmem>>, vector<4x26x16xf32>
    %cst_300 = arith.constant 0.00102838012 : f32
    %292 = vector.broadcast %cst_300 : f32 to vector<4x26x16xf32>
    %293 = arith.mulf %292, %291 : vector<4x26x16xf32>
    %c0_301 = arith.constant 0 : index
    %c0_302 = arith.constant 0 : index
    %c1_303 = arith.constant 1 : index
    %294 = vector.load %arg4[%c0_301, %c0_302, %c1_303] : memref<4x26x26xf32, #tpu.memory_space<vmem>>, vector<4x26x16xf32>
    %cst_304 = arith.constant 0.00759875821 : f32
    %295 = vector.broadcast %cst_304 : f32 to vector<4x26x16xf32>
    %296 = arith.mulf %295, %294 : vector<4x26x16xf32>
    %297 = arith.addf %293, %296 : vector<4x26x16xf32>
    %c0_305 = arith.constant 0 : index
    %c0_306 = arith.constant 0 : index
    %c2_307 = arith.constant 2 : index
    %298 = vector.load %arg4[%c0_305, %c0_306, %c2_307] : memref<4x26x26xf32, #tpu.memory_space<vmem>>, vector<4x26x16xf32>
    %cst_308 = arith.constant 0.0360007733 : f32
    %299 = vector.broadcast %cst_308 : f32 to vector<4x26x16xf32>
    %300 = arith.mulf %299, %298 : vector<4x26x16xf32>
    %301 = arith.addf %297, %300 : vector<4x26x16xf32>
    %c0_309 = arith.constant 0 : index
    %c0_310 = arith.constant 0 : index
    %c3_311 = arith.constant 3 : index
    %302 = vector.load %arg4[%c0_309, %c0_310, %c3_311] : memref<4x26x26xf32, #tpu.memory_space<vmem>>, vector<4x26x16xf32>
    %cst_312 = arith.constant 0.109360687 : f32
    %303 = vector.broadcast %cst_312 : f32 to vector<4x26x16xf32>
    %304 = arith.mulf %303, %302 : vector<4x26x16xf32>
    %305 = arith.addf %301, %304 : vector<4x26x16xf32>
    %c0_313 = arith.constant 0 : index
    %c0_314 = arith.constant 0 : index
    %c4_315 = arith.constant 4 : index
    %306 = vector.load %arg4[%c0_313, %c0_314, %c4_315] : memref<4x26x26xf32, #tpu.memory_space<vmem>>, vector<4x26x16xf32>
    %cst_316 = arith.constant 0.213005543 : f32
    %307 = vector.broadcast %cst_316 : f32 to vector<4x26x16xf32>
    %308 = arith.mulf %307, %306 : vector<4x26x16xf32>
    %309 = arith.addf %305, %308 : vector<4x26x16xf32>
    %c0_317 = arith.constant 0 : index
    %c0_318 = arith.constant 0 : index
    %c5_319 = arith.constant 5 : index
    %310 = vector.load %arg4[%c0_317, %c0_318, %c5_319] : memref<4x26x26xf32, #tpu.memory_space<vmem>>, vector<4x26x16xf32>
    %cst_320 = arith.constant 0.266011715 : f32
    %311 = vector.broadcast %cst_320 : f32 to vector<4x26x16xf32>
    %312 = arith.mulf %311, %310 : vector<4x26x16xf32>
    %313 = arith.addf %309, %312 : vector<4x26x16xf32>
    %c0_321 = arith.constant 0 : index
    %c0_322 = arith.constant 0 : index
    %c6_323 = arith.constant 6 : index
    %314 = vector.load %arg4[%c0_321, %c0_322, %c6_323] : memref<4x26x26xf32, #tpu.memory_space<vmem>>, vector<4x26x16xf32>
    %cst_324 = arith.constant 0.213005543 : f32
    %315 = vector.broadcast %cst_324 : f32 to vector<4x26x16xf32>
    %316 = arith.mulf %315, %314 : vector<4x26x16xf32>
    %317 = arith.addf %313, %316 : vector<4x26x16xf32>
    %c0_325 = arith.constant 0 : index
    %c0_326 = arith.constant 0 : index
    %c7_327 = arith.constant 7 : index
    %318 = vector.load %arg4[%c0_325, %c0_326, %c7_327] : memref<4x26x26xf32, #tpu.memory_space<vmem>>, vector<4x26x16xf32>
    %cst_328 = arith.constant 0.109360687 : f32
    %319 = vector.broadcast %cst_328 : f32 to vector<4x26x16xf32>
    %320 = arith.mulf %319, %318 : vector<4x26x16xf32>
    %321 = arith.addf %317, %320 : vector<4x26x16xf32>
    %c0_329 = arith.constant 0 : index
    %c0_330 = arith.constant 0 : index
    %c8_331 = arith.constant 8 : index
    %322 = vector.load %arg4[%c0_329, %c0_330, %c8_331] : memref<4x26x26xf32, #tpu.memory_space<vmem>>, vector<4x26x16xf32>
    %cst_332 = arith.constant 0.0360007733 : f32
    %323 = vector.broadcast %cst_332 : f32 to vector<4x26x16xf32>
    %324 = arith.mulf %323, %322 : vector<4x26x16xf32>
    %325 = arith.addf %321, %324 : vector<4x26x16xf32>
    %c0_333 = arith.constant 0 : index
    %c0_334 = arith.constant 0 : index
    %c9_335 = arith.constant 9 : index
    %326 = vector.load %arg4[%c0_333, %c0_334, %c9_335] : memref<4x26x26xf32, #tpu.memory_space<vmem>>, vector<4x26x16xf32>
    %cst_336 = arith.constant 0.00759875821 : f32
    %327 = vector.broadcast %cst_336 : f32 to vector<4x26x16xf32>
    %328 = arith.mulf %327, %326 : vector<4x26x16xf32>
    %329 = arith.addf %325, %328 : vector<4x26x16xf32>
    %c0_337 = arith.constant 0 : index
    %c0_338 = arith.constant 0 : index
    %c10_339 = arith.constant 10 : index
    %330 = vector.load %arg4[%c0_337, %c0_338, %c10_339] : memref<4x26x26xf32, #tpu.memory_space<vmem>>, vector<4x26x16xf32>
    %cst_340 = arith.constant 0.00102838012 : f32
    %331 = vector.broadcast %cst_340 : f32 to vector<4x26x16xf32>
    %332 = arith.mulf %331, %330 : vector<4x26x16xf32>
    %333 = arith.addf %329, %332 : vector<4x26x16xf32>
    %c0_341 = arith.constant 0 : index
    %c0_342 = arith.constant 0 : index
    %c0_343 = arith.constant 0 : index
    %334 = vector.load %arg5[%c0_341, %c0_342, %c0_343] : memref<4x26x16xf32, #tpu.memory_space<vmem>>, vector<4x26x16xf32>
    tpu.vector_store %arg5[%c0_341, %c0_342, %c0_343], %333 {strides = array<i32>} : memref<4x26x16xf32, #tpu.memory_space<vmem>>, vector<4x26x16xf32>,
    %c0_344 = arith.constant 0 : index
    %c0_345 = arith.constant 0 : index
    %c0_346 = arith.constant 0 : index
    %335 = vector.load %arg5[%c0_344, %c0_345, %c0_346] : memref<4x26x16xf32, #tpu.memory_space<vmem>>, vector<4x16x16xf32>
    %cst_347 = arith.constant 0.00102838012 : f32
    %336 = vector.broadcast %cst_347 : f32 to vector<4x16x16xf32>
    %337 = arith.mulf %336, %335 : vector<4x16x16xf32>
    %c0_348 = arith.constant 0 : index
    %c1_349 = arith.constant 1 : index
    %c0_350 = arith.constant 0 : index
    %338 = vector.load %arg5[%c0_348, %c1_349, %c0_350] : memref<4x26x16xf32, #tpu.memory_space<vmem>>, vector<4x16x16xf32>
    %cst_351 = arith.constant 0.00759875821 : f32
    %339 = vector.broadcast %cst_351 : f32 to vector<4x16x16xf32>
    %340 = arith.mulf %339, %338 : vector<4x16x16xf32>
    %341 = arith.addf %337, %340 : vector<4x16x16xf32>
    %c0_352 = arith.constant 0 : index
    %c2_353 = arith.constant 2 : index
    %c0_354 = arith.constant 0 : index
    %342 = vector.load %arg5[%c0_352, %c2_353, %c0_354] : memref<4x26x16xf32, #tpu.memory_space<vmem>>, vector<4x16x16xf32>
    %cst_355 = arith.constant 0.0360007733 : f32
    %343 = vector.broadcast %cst_355 : f32 to vector<4x16x16xf32>
    %344 = arith.mulf %343, %342 : vector<4x16x16xf32>
    %345 = arith.addf %341, %344 : vector<4x16x16xf32>
    %c0_356 = arith.constant 0 : index
    %c3_357 = arith.constant 3 : index
    %c0_358 = arith.constant 0 : index
    %346 = vector.load %arg5[%c0_356, %c3_357, %c0_358] : memref<4x26x16xf32, #tpu.memory_space<vmem>>, vector<4x16x16xf32>
    %cst_359 = arith.constant 0.109360687 : f32
    %347 = vector.broadcast %cst_359 : f32 to vector<4x16x16xf32>
    %348 = arith.mulf %347, %346 : vector<4x16x16xf32>
    %349 = arith.addf %345, %348 : vector<4x16x16xf32>
    %c0_360 = arith.constant 0 : index
    %c4_361 = arith.constant 4 : index
    %c0_362 = arith.constant 0 : index
    %350 = vector.load %arg5[%c0_360, %c4_361, %c0_362] : memref<4x26x16xf32, #tpu.memory_space<vmem>>, vector<4x16x16xf32>
    %cst_363 = arith.constant 0.213005543 : f32
    %351 = vector.broadcast %cst_363 : f32 to vector<4x16x16xf32>
    %352 = arith.mulf %351, %350 : vector<4x16x16xf32>
    %353 = arith.addf %349, %352 : vector<4x16x16xf32>
    %c0_364 = arith.constant 0 : index
    %c5_365 = arith.constant 5 : index
    %c0_366 = arith.constant 0 : index
    %354 = vector.load %arg5[%c0_364, %c5_365, %c0_366] : memref<4x26x16xf32, #tpu.memory_space<vmem>>, vector<4x16x16xf32>
    %cst_367 = arith.constant 0.266011715 : f32
    %355 = vector.broadcast %cst_367 : f32 to vector<4x16x16xf32>
    %356 = arith.mulf %355, %354 : vector<4x16x16xf32>
    %357 = arith.addf %353, %356 : vector<4x16x16xf32>
    %c0_368 = arith.constant 0 : index
    %c6_369 = arith.constant 6 : index
    %c0_370 = arith.constant 0 : index
    %358 = vector.load %arg5[%c0_368, %c6_369, %c0_370] : memref<4x26x16xf32, #tpu.memory_space<vmem>>, vector<4x16x16xf32>
    %cst_371 = arith.constant 0.213005543 : f32
    %359 = vector.broadcast %cst_371 : f32 to vector<4x16x16xf32>
    %360 = arith.mulf %359, %358 : vector<4x16x16xf32>
    %361 = arith.addf %357, %360 : vector<4x16x16xf32>
    %c0_372 = arith.constant 0 : index
    %c7_373 = arith.constant 7 : index
    %c0_374 = arith.constant 0 : index
    %362 = vector.load %arg5[%c0_372, %c7_373, %c0_374] : memref<4x26x16xf32, #tpu.memory_space<vmem>>, vector<4x16x16xf32>
    %cst_375 = arith.constant 0.109360687 : f32
    %363 = vector.broadcast %cst_375 : f32 to vector<4x16x16xf32>
    %364 = arith.mulf %363, %362 : vector<4x16x16xf32>
    %365 = arith.addf %361, %364 : vector<4x16x16xf32>
    %c0_376 = arith.constant 0 : index
    %c8_377 = arith.constant 8 : index
    %c0_378 = arith.constant 0 : index
    %366 = vector.load %arg5[%c0_376, %c8_377, %c0_378] : memref<4x26x16xf32, #tpu.memory_space<vmem>>, vector<4x16x16xf32>
    %cst_379 = arith.constant 0.0360007733 : f32
    %367 = vector.broadcast %cst_379 : f32 to vector<4x16x16xf32>
    %368 = arith.mulf %367, %366 : vector<4x16x16xf32>
    %369 = arith.addf %365, %368 : vector<4x16x16xf32>
    %c0_380 = arith.constant 0 : index
    %c9_381 = arith.constant 9 : index
    %c0_382 = arith.constant 0 : index
    %370 = vector.load %arg5[%c0_380, %c9_381, %c0_382] : memref<4x26x16xf32, #tpu.memory_space<vmem>>, vector<4x16x16xf32>
    %cst_383 = arith.constant 0.00759875821 : f32
    %371 = vector.broadcast %cst_383 : f32 to vector<4x16x16xf32>
    %372 = arith.mulf %371, %370 : vector<4x16x16xf32>
    %373 = arith.addf %369, %372 : vector<4x16x16xf32>
    %c0_384 = arith.constant 0 : index
    %c10_385 = arith.constant 10 : index
    %c0_386 = arith.constant 0 : index
    %374 = vector.load %arg5[%c0_384, %c10_385, %c0_386] : memref<4x26x16xf32, #tpu.memory_space<vmem>>, vector<4x16x16xf32>
    %cst_387 = arith.constant 0.00102838012 : f32
    %375 = vector.broadcast %cst_387 : f32 to vector<4x16x16xf32>
    %376 = arith.mulf %375, %374 : vector<4x16x16xf32>
    %377 = arith.addf %373, %376 : vector<4x16x16xf32>
    %378 = arith.mulf %199, %199 : vector<4x26x26xf32>
    %c0_388 = arith.constant 0 : index
    %c0_389 = arith.constant 0 : index
    %c0_390 = arith.constant 0 : index
    %379 = vector.load %arg4[%c0_388, %c0_389, %c0_390] : memref<4x26x26xf32, #tpu.memory_space<vmem>>, vector<4x26x26xf32>
    tpu.vector_store %arg4[%c0_388, %c0_389, %c0_390], %378 {strides = array<i32>} : memref<4x26x26xf32, #tpu.memory_space<vmem>>, vector<4x26x26xf32>,
    %c0_391 = arith.constant 0 : index
    %c0_392 = arith.constant 0 : index
    %c0_393 = arith.constant 0 : index
    %380 = vector.load %arg4[%c0_391, %c0_392, %c0_393] : memref<4x26x26xf32, #tpu.memory_space<vmem>>, vector<4x26x16xf32>
    %cst_394 = arith.constant 0.00102838012 : f32
    %381 = vector.broadcast %cst_394 : f32 to vector<4x26x16xf32>
    %382 = arith.mulf %381, %380 : vector<4x26x16xf32>
    %c0_395 = arith.constant 0 : index
    %c0_396 = arith.constant 0 : index
    %c1_397 = arith.constant 1 : index
    %383 = vector.load %arg4[%c0_395, %c0_396, %c1_397] : memref<4x26x26xf32, #tpu.memory_space<vmem>>, vector<4x26x16xf32>
    %cst_398 = arith.constant 0.00759875821 : f32
    %384 = vector.broadcast %cst_398 : f32 to vector<4x26x16xf32>
    %385 = arith.mulf %384, %383 : vector<4x26x16xf32>
    %386 = arith.addf %382, %385 : vector<4x26x16xf32>
    %c0_399 = arith.constant 0 : index
    %c0_400 = arith.constant 0 : index
    %c2_401 = arith.constant 2 : index
    %387 = vector.load %arg4[%c0_399, %c0_400, %c2_401] : memref<4x26x26xf32, #tpu.memory_space<vmem>>, vector<4x26x16xf32>
    %cst_402 = arith.constant 0.0360007733 : f32
    %388 = vector.broadcast %cst_402 : f32 to vector<4x26x16xf32>
    %389 = arith.mulf %388, %387 : vector<4x26x16xf32>
    %390 = arith.addf %386, %389 : vector<4x26x16xf32>
    %c0_403 = arith.constant 0 : index
    %c0_404 = arith.constant 0 : index
    %c3_405 = arith.constant 3 : index
    %391 = vector.load %arg4[%c0_403, %c0_404, %c3_405] : memref<4x26x26xf32, #tpu.memory_space<vmem>>, vector<4x26x16xf32>
    %cst_406 = arith.constant 0.109360687 : f32
    %392 = vector.broadcast %cst_406 : f32 to vector<4x26x16xf32>
    %393 = arith.mulf %392, %391 : vector<4x26x16xf32>
    %394 = arith.addf %390, %393 : vector<4x26x16xf32>
    %c0_407 = arith.constant 0 : index
    %c0_408 = arith.constant 0 : index
    %c4_409 = arith.constant 4 : index
    %395 = vector.load %arg4[%c0_407, %c0_408, %c4_409] : memref<4x26x26xf32, #tpu.memory_space<vmem>>, vector<4x26x16xf32>
    %cst_410 = arith.constant 0.213005543 : f32
    %396 = vector.broadcast %cst_410 : f32 to vector<4x26x16xf32>
    %397 = arith.mulf %396, %395 : vector<4x26x16xf32>
    %398 = arith.addf %394, %397 : vector<4x26x16xf32>
    %c0_411 = arith.constant 0 : index
    %c0_412 = arith.constant 0 : index
    %c5_413 = arith.constant 5 : index
    %399 = vector.load %arg4[%c0_411, %c0_412, %c5_413] : memref<4x26x26xf32, #tpu.memory_space<vmem>>, vector<4x26x16xf32>
    %cst_414 = arith.constant 0.266011715 : f32
    %400 = vector.broadcast %cst_414 : f32 to vector<4x26x16xf32>
    %401 = arith.mulf %400, %399 : vector<4x26x16xf32>
    %402 = arith.addf %398, %401 : vector<4x26x16xf32>
    %c0_415 = arith.constant 0 : index
    %c0_416 = arith.constant 0 : index
    %c6_417 = arith.constant 6 : index
    %403 = vector.load %arg4[%c0_415, %c0_416, %c6_417] : memref<4x26x26xf32, #tpu.memory_space<vmem>>, vector<4x26x16xf32>
    %cst_418 = arith.constant 0.213005543 : f32
    %404 = vector.broadcast %cst_418 : f32 to vector<4x26x16xf32>
    %405 = arith.mulf %404, %403 : vector<4x26x16xf32>
    %406 = arith.addf %402, %405 : vector<4x26x16xf32>
    %c0_419 = arith.constant 0 : index
    %c0_420 = arith.constant 0 : index
    %c7_421 = arith.constant 7 : index
    %407 = vector.load %arg4[%c0_419, %c0_420, %c7_421] : memref<4x26x26xf32, #tpu.memory_space<vmem>>, vector<4x26x16xf32>
    %cst_422 = arith.constant 0.109360687 : f32
    %408 = vector.broadcast %cst_422 : f32 to vector<4x26x16xf32>
    %409 = arith.mulf %408, %407 : vector<4x26x16xf32>
    %410 = arith.addf %406, %409 : vector<4x26x16xf32>
    %c0_423 = arith.constant 0 : index
    %c0_424 = arith.constant 0 : index
    %c8_425 = arith.constant 8 : index
    %411 = vector.load %arg4[%c0_423, %c0_424, %c8_425] : memref<4x26x26xf32, #tpu.memory_space<vmem>>, vector<4x26x16xf32>
    %cst_426 = arith.constant 0.0360007733 : f32
    %412 = vector.broadcast %cst_426 : f32 to vector<4x26x16xf32>
    %413 = arith.mulf %412, %411 : vector<4x26x16xf32>
    %414 = arith.addf %410, %413 : vector<4x26x16xf32>
    %c0_427 = arith.constant 0 : index
    %c0_428 = arith.constant 0 : index
    %c9_429 = arith.constant 9 : index
    %415 = vector.load %arg4[%c0_427, %c0_428, %c9_429] : memref<4x26x26xf32, #tpu.memory_space<vmem>>, vector<4x26x16xf32>
    %cst_430 = arith.constant 0.00759875821 : f32
    %416 = vector.broadcast %cst_430 : f32 to vector<4x26x16xf32>
    %417 = arith.mulf %416, %415 : vector<4x26x16xf32>
    %418 = arith.addf %414, %417 : vector<4x26x16xf32>
    %c0_431 = arith.constant 0 : index
    %c0_432 = arith.constant 0 : index
    %c10_433 = arith.constant 10 : index
    %419 = vector.load %arg4[%c0_431, %c0_432, %c10_433] : memref<4x26x26xf32, #tpu.memory_space<vmem>>, vector<4x26x16xf32>
    %cst_434 = arith.constant 0.00102838012 : f32
    %420 = vector.broadcast %cst_434 : f32 to vector<4x26x16xf32>
    %421 = arith.mulf %420, %419 : vector<4x26x16xf32>
    %422 = arith.addf %418, %421 : vector<4x26x16xf32>
    %c0_435 = arith.constant 0 : index
    %c0_436 = arith.constant 0 : index
    %c0_437 = arith.constant 0 : index
    %423 = vector.load %arg5[%c0_435, %c0_436, %c0_437] : memref<4x26x16xf32, #tpu.memory_space<vmem>>, vector<4x26x16xf32>
    tpu.vector_store %arg5[%c0_435, %c0_436, %c0_437], %422 {strides = array<i32>} : memref<4x26x16xf32, #tpu.memory_space<vmem>>, vector<4x26x16xf32>,
    %c0_438 = arith.constant 0 : index
    %c0_439 = arith.constant 0 : index
    %c0_440 = arith.constant 0 : index
    %424 = vector.load %arg5[%c0_438, %c0_439, %c0_440] : memref<4x26x16xf32, #tpu.memory_space<vmem>>, vector<4x16x16xf32>
    %cst_441 = arith.constant 0.00102838012 : f32
    %425 = vector.broadcast %cst_441 : f32 to vector<4x16x16xf32>
    %426 = arith.mulf %425, %424 : vector<4x16x16xf32>
    %c0_442 = arith.constant 0 : index
    %c1_443 = arith.constant 1 : index
    %c0_444 = arith.constant 0 : index
    %427 = vector.load %arg5[%c0_442, %c1_443, %c0_444] : memref<4x26x16xf32, #tpu.memory_space<vmem>>, vector<4x16x16xf32>
    %cst_445 = arith.constant 0.00759875821 : f32
    %428 = vector.broadcast %cst_445 : f32 to vector<4x16x16xf32>
    %429 = arith.mulf %428, %427 : vector<4x16x16xf32>
    %430 = arith.addf %426, %429 : vector<4x16x16xf32>
    %c0_446 = arith.constant 0 : index
    %c2_447 = arith.constant 2 : index
    %c0_448 = arith.constant 0 : index
    %431 = vector.load %arg5[%c0_446, %c2_447, %c0_448] : memref<4x26x16xf32, #tpu.memory_space<vmem>>, vector<4x16x16xf32>
    %cst_449 = arith.constant 0.0360007733 : f32
    %432 = vector.broadcast %cst_449 : f32 to vector<4x16x16xf32>
    %433 = arith.mulf %432, %431 : vector<4x16x16xf32>
    %434 = arith.addf %430, %433 : vector<4x16x16xf32>
    %c0_450 = arith.constant 0 : index
    %c3_451 = arith.constant 3 : index
    %c0_452 = arith.constant 0 : index
    %435 = vector.load %arg5[%c0_450, %c3_451, %c0_452] : memref<4x26x16xf32, #tpu.memory_space<vmem>>, vector<4x16x16xf32>
    %cst_453 = arith.constant 0.109360687 : f32
    %436 = vector.broadcast %cst_453 : f32 to vector<4x16x16xf32>
    %437 = arith.mulf %436, %435 : vector<4x16x16xf32>
    %438 = arith.addf %434, %437 : vector<4x16x16xf32>
    %c0_454 = arith.constant 0 : index
    %c4_455 = arith.constant 4 : index
    %c0_456 = arith.constant 0 : index
    %439 = vector.load %arg5[%c0_454, %c4_455, %c0_456] : memref<4x26x16xf32, #tpu.memory_space<vmem>>, vector<4x16x16xf32>
    %cst_457 = arith.constant 0.213005543 : f32
    %440 = vector.broadcast %cst_457 : f32 to vector<4x16x16xf32>
    %441 = arith.mulf %440, %439 : vector<4x16x16xf32>
    %442 = arith.addf %438, %441 : vector<4x16x16xf32>
    %c0_458 = arith.constant 0 : index
    %c5_459 = arith.constant 5 : index
    %c0_460 = arith.constant 0 : index
    %443 = vector.load %arg5[%c0_458, %c5_459, %c0_460] : memref<4x26x16xf32, #tpu.memory_space<vmem>>, vector<4x16x16xf32>
    %cst_461 = arith.constant 0.266011715 : f32
    %444 = vector.broadcast %cst_461 : f32 to vector<4x16x16xf32>
    %445 = arith.mulf %444, %443 : vector<4x16x16xf32>
    %446 = arith.addf %442, %445 : vector<4x16x16xf32>
    %c0_462 = arith.constant 0 : index
    %c6_463 = arith.constant 6 : index
    %c0_464 = arith.constant 0 : index
    %447 = vector.load %arg5[%c0_462, %c6_463, %c0_464] : memref<4x26x16xf32, #tpu.memory_space<vmem>>, vector<4x16x16xf32>
    %cst_465 = arith.constant 0.213005543 : f32
    %448 = vector.broadcast %cst_465 : f32 to vector<4x16x16xf32>
    %449 = arith.mulf %448, %447 : vector<4x16x16xf32>
    %450 = arith.addf %446, %449 : vector<4x16x16xf32>
    %c0_466 = arith.constant 0 : index
    %c7_467 = arith.constant 7 : index
    %c0_468 = arith.constant 0 : index
    %451 = vector.load %arg5[%c0_466, %c7_467, %c0_468] : memref<4x26x16xf32, #tpu.memory_space<vmem>>, vector<4x16x16xf32>
    %cst_469 = arith.constant 0.109360687 : f32
    %452 = vector.broadcast %cst_469 : f32 to vector<4x16x16xf32>
    %453 = arith.mulf %452, %451 : vector<4x16x16xf32>
    %454 = arith.addf %450, %453 : vector<4x16x16xf32>
    %c0_470 = arith.constant 0 : index
    %c8_471 = arith.constant 8 : index
    %c0_472 = arith.constant 0 : index
    %455 = vector.load %arg5[%c0_470, %c8_471, %c0_472] : memref<4x26x16xf32, #tpu.memory_space<vmem>>, vector<4x16x16xf32>
    %cst_473 = arith.constant 0.0360007733 : f32
    %456 = vector.broadcast %cst_473 : f32 to vector<4x16x16xf32>
    %457 = arith.mulf %456, %455 : vector<4x16x16xf32>
    %458 = arith.addf %454, %457 : vector<4x16x16xf32>
    %c0_474 = arith.constant 0 : index
    %c9_475 = arith.constant 9 : index
    %c0_476 = arith.constant 0 : index
    %459 = vector.load %arg5[%c0_474, %c9_475, %c0_476] : memref<4x26x16xf32, #tpu.memory_space<vmem>>, vector<4x16x16xf32>
    %cst_477 = arith.constant 0.00759875821 : f32
    %460 = vector.broadcast %cst_477 : f32 to vector<4x16x16xf32>
    %461 = arith.mulf %460, %459 : vector<4x16x16xf32>
    %462 = arith.addf %458, %461 : vector<4x16x16xf32>
    %c0_478 = arith.constant 0 : index
    %c10_479 = arith.constant 10 : index
    %c0_480 = arith.constant 0 : index
    %463 = vector.load %arg5[%c0_478, %c10_479, %c0_480] : memref<4x26x16xf32, #tpu.memory_space<vmem>>, vector<4x16x16xf32>
    %cst_481 = arith.constant 0.00102838012 : f32
    %464 = vector.broadcast %cst_481 : f32 to vector<4x16x16xf32>
    %465 = arith.mulf %464, %463 : vector<4x16x16xf32>
    %466 = arith.addf %462, %465 : vector<4x16x16xf32>
    %467 = arith.mulf %97, %97 : vector<4x16x16xf32>
    %468 = arith.mulf %195, %195 : vector<4x16x16xf32>
    %469 = arith.mulf %97, %195 : vector<4x16x16xf32>
    %470 = arith.subf %377, %467 : vector<4x16x16xf32>
    %471 = arith.subf %466, %468 : vector<4x16x16xf32>
    %472 = arith.subf %288, %469 : vector<4x16x16xf32>
    %cst_482 = arith.constant 2.000000e+00 : f32
    %473 = vector.broadcast %cst_482 : f32 to vector<4x16x16xf32>
    %474 = arith.mulf %473, %469 : vector<4x16x16xf32>
    %cst_483 = arith.constant 9.99999974E-5 : f32
    %475 = vector.broadcast %cst_483 : f32 to vector<4x16x16xf32>
    %476 = arith.addf %474, %475 : vector<4x16x16xf32>
    %cst_484 = arith.constant 2.000000e+00 : f32
    %477 = vector.broadcast %cst_484 : f32 to vector<4x16x16xf32>
    %478 = arith.mulf %477, %472 : vector<4x16x16xf32>
    %cst_485 = arith.constant 8.99999984E-4 : f32
    %479 = vector.broadcast %cst_485 : f32 to vector<4x16x16xf32>
    %480 = arith.addf %478, %479 : vector<4x16x16xf32>
    %481 = arith.mulf %476, %480 : vector<4x16x16xf32>
    %482 = arith.addf %467, %468 : vector<4x16x16xf32>
    %cst_486 = arith.constant 9.99999974E-5 : f32
    %483 = vector.broadcast %cst_486 : f32 to vector<4x16x16xf32>
    %484 = arith.addf %482, %483 : vector<4x16x16xf32>
    %485 = arith.addf %470, %471 : vector<4x16x16xf32>
    %cst_487 = arith.constant 8.99999984E-4 : f32
    %486 = vector.broadcast %cst_487 : f32 to vector<4x16x16xf32>
    %487 = arith.addf %485, %486 : vector<4x16x16xf32>
    %488 = arith.mulf %484, %487 : vector<4x16x16xf32>
    %489 = arith.divf %481, %488 : vector<4x16x16xf32>
    %cst_488 = arith.constant dense<0.000000e+00> : vector<4x16xf32>
    %490 = vector.multi_reduction <add>, %489, %cst_488 [2] : vector<4x16x16xf32> to vector<4x16xf32>
    %cst_489 = arith.constant dense<0.000000e+00> : vector<4xf32>
    %491 = vector.multi_reduction <add>, %490, %cst_489 [1] : vector<4x16xf32> to vector<4xf32>
    %492 = vector.shape_cast %491 : vector<4xf32> to vector<1x1x4xf32>
    %c0_490 = arith.constant 0 : index
    %c0_491 = arith.constant 0 : index
    %c0_492 = arith.constant 0 : index
    %493 = vector.load %arg3[%c0_490, %c0_491, %c0_492] : memref<1x1x4xf32, #tpu.memory_space<vmem>>, vector<1x1x4xf32>
    tpu.vector_store %arg3[%c0_490, %c0_491, %c0_492], %492 {strides = array<i32>} : memref<1x1x4xf32, #tpu.memory_space<vmem>>, vector<1x1x4xf32>,
    return
  }
  func.func @transform_0(%arg0: i32) -> (i32, i32, i32, i32) {
    %c0_i32 = arith.constant 0 : i32
    %c0_i32_0 = arith.constant 0 : i32
    %c0_i32_1 = arith.constant 0 : i32
    %c0_i32_2 = arith.constant 0 : i32
    return %arg0, %c0_i32, %c0_i32_0, %c0_i32_1 : i32, i32, i32, i32
  }
  func.func @transform_1(%arg0: i32) -> (i32, i32, i32, i32) {
    %c0_i32 = arith.constant 0 : i32
    %c0_i32_0 = arith.constant 0 : i32
    %c0_i32_1 = arith.constant 0 : i32
    %c0_i32_2 = arith.constant 0 : i32
    return %arg0, %c0_i32, %c0_i32_0, %c0_i32_1 : i32, i32, i32, i32
  }
  func.func @transform_2(%arg0: i32) -> (i32, i32, i32) {
    %c0_i32 = arith.constant 0 : i32
    %c0_i32_0 = arith.constant 0 : i32
    %c0_i32_1 = arith.constant 0 : i32
    return %arg0, %c0_i32, %c0_i32_0 : i32, i32, i32
  }
}

</mosaic_0001>

<llo_original>
// kernel: tpu_custom_call.1
$region0: #{tpu_custom_call.1}
  #allocation0 [shape = 'u32[]', space=smem, size = 0x4, offset = 0x4, fixed_abs, tag = 'smem constant byte address 0x4 - core index']
  #allocation1 [shape = 'u32[72,128]{1,0:T(1,128)}', space=vmem, size = 0x9000, scoped, tag = 'internal scratch']
  #allocation2 [shape = 'f32[4,26,26]{2,1,0:T(8,128)}', space=vmem, size = 0x10000, scoped, tag = 'scratch operand']
  #allocation3 [shape = 'f32[4,26,16]{2,1,0:T(8,128)}', space=vmem, size = 0x10000, scoped, tag = 'scratch operand']
  %s0 = inlined_call_operand.vmem [shape: f32[2,4,26,26], index: 0, kind: input, shape index: {}]
  %s1 = inlined_call_operand.vmem [shape: f32[2,4,26,26], index: 1, kind: input, shape index: {}]
  %s2 = inlined_call_operand.hbm [shape: f32[2,1,4], index: 2, kind: output, shape index: {}]
  %s3 = sld [smem:[#allocation0]]
  $region41: #{tpu_custom_call.1} parent=0
    _
  %s5 = ssub.s32 1, %s3
  %s6 = scalar_select 0, %s5, %s3
  $region1: #{tpu_custom_call.1} parent=0
    #allocation4 [shape = 'u8[1024]{0}', space=vmem, size = 0x400, scoped, tag = 'output window, operand 0']
    #allocation5 [shape = 's32[2]{0}', space=sflag, size = 0x8, scoped, tag = 'scoped memory for tpu_custom_call.1']
    %7 = vsyncpa [#allocation5], 0
    %s8 = scalar_lea.sflag [#allocation5], 1
    %9 = vsyncpa %s8, 0
    loop: start=0, step=1, limit=4
    $region2: #{tpu_custom_call.1} parent=1 // loop_pre_header
      _
    $region3: #{tpu_custom_call.1} parent=1 // loop_header
      %s11 = sphi 0, %s15
      %p12 = scmp.ge.s32.totalorder %s11, 4
      %s21 = sphi 0, %s23
      %s24 = sphi 0, %s21
      %s25 = sphi 0, %s24
      %s41 = sphi 0, %s25
      %s47 = sphi 0, %s49
      %s50 = sphi 0, %s47
      %s51 = sphi 0, %s50
      %s67 = sphi 0, %s51
      %s73 = sphi 0, %s75
      %s76 = sphi 0, %s73
      %s77 = sphi 0, %s76
      %s93 = sphi 0, %s77
    $region4: #{tpu_custom_call.1} parent=1 // loop_header_branch
      %14 = sbr.rel (%p12) target = $region8
    $region5: #{tpu_custom_call.1} parent=1 // loop_body
      %s16 = ssub.s32 %s11, 1
      %s17 = ssub.s32 %s11, 2
      %s18 = sadd.s32 %s11, 1
      %s19 = ssub.s32 %s11, %s18
      %p20 = scmp.eq.s32.totalorder %s19, 0
      %s22 = sadd.s32 %s21, 1
      %s23 = scalar_select %p20, %s21, %s22
      %p26 = pneg %p20
      %p27 = scmp.eq.s32.totalorder %s11, 1
      %p28 = por %p26, %p27
      %p29 = scmp.ne.s32.totalorder %s21, %s24
      %p30 = scmp.eq.s32.totalorder %s11, 0
      %p31 = por %p29, %p30
      %p32 = scmp.ne.s32.totalorder %s21, %s24
      %p33 = scmp.eq.s32.totalorder %s16, 1
      %p34 = por %p32, %p33
      %p35 = scmp.ne.s32.totalorder %s24, %s25
      %p36 = scmp.eq.s32.totalorder %s16, 0
      %p37 = por %p35, %p36
      %p38 = scmp.ne.s32.totalorder %s24, %s25
      %p39 = scmp.eq.s32.totalorder %s17, 1
      %p40 = por %p38, %p39
      %p42 = scmp.ne.s32.totalorder %s25, %s41
      %p43 = scmp.eq.s32.totalorder %s17, 0
      %p44 = por %p42, %p43
      %s45 = ssub.s32 %s11, %s18
      %p46 = scmp.eq.s32.totalorder %s45, 0
      %s48 = sadd.s32 %s47, 1
      %s49 = scalar_select %p46, %s47, %s48
      %p52 = pneg %p46
      %p53 = scmp.eq.s32.totalorder %s11, 1
      %p54 = por %p52, %p53
      %p55 = scmp.ne.s32.totalorder %s47, %s50
      %p56 = scmp.eq.s32.totalorder %s11, 0
      %p57 = por %p55, %p56
      %p58 = scmp.ne.s32.totalorder %s47, %s50
      %p59 = scmp.eq.s32.totalorder %s16, 1
      %p60 = por %p58, %p59
      %p61 = scmp.ne.s32.totalorder %s50, %s51
      %p62 = scmp.eq.s32.totalorder %s16, 0
      %p63 = por %p61, %p62
      %p64 = scmp.ne.s32.totalorder %s50, %s51
      %p65 = scmp.eq.s32.totalorder %s17, 1
      %p66 = por %p64, %p65
      %p68 = scmp.ne.s32.totalorder %s51, %s67
      %p69 = scmp.eq.s32.totalorder %s17, 0
      %p70 = por %p68, %p69
      %s71 = ssub.s32 %s11, %s18
      %p72 = scmp.eq.s32.totalorder %s71, 0
      %s74 = sadd.s32 %s73, 1
      %s75 = scalar_select %p72, %s73, %s74
      %p78 = pneg %p72
      %p79 = scmp.eq.s32.totalorder %s11, 1
      %p80 = por %p78, %p79
      %p81 = scmp.ne.s32.totalorder %s73, %s76
      %p82 = scmp.eq.s32.totalorder %s11, 0
      %p83 = por %p81, %p82
      %p84 = scmp.ne.s32.totalorder %s73, %s76
      %p85 = scmp.eq.s32.totalorder %s16, 1
      %p86 = por %p84, %p85
      %p87 = scmp.ne.s32.totalorder %s76, %s77
      %p88 = scmp.eq.s32.totalorder %s16, 0
      %p89 = por %p87, %p88
      %p90 = scmp.ne.s32.totalorder %s76, %s77
      %p91 = scmp.eq.s32.totalorder %s17, 1
      %p92 = por %p90, %p91
      %p94 = scmp.ne.s32.totalorder %s77, %s93
      %p95 = scmp.eq.s32.totalorder %s17, 0
      %p96 = por %p94, %p95
      %p97 = scmp.le.s32.totalorder 1, %s11
      %p98 = scmp.lt.s32.totalorder %s11, 3
      %p99 = pnand %p97, %p98
      %p100 = pneg %p99
      // Predicated region
      $region9: #{tpu_custom_call.1} parent=5 // pred_check
        _
      $region10: #{tpu_custom_call.1} parent=5 // pred_check_branch
        %102 = sbr.rel (%p99) target = $region12
      $region11: #{tpu_custom_call.1} parent=5 // pred_region
        %s103 = ssub.s32 %s11, 1
      $region12: #{tpu_custom_call.1} parent=5 // pred_fallthru
        _
      %p104 = scmp.lt.s32.totalorder %s11, 2
      // Predicated region
      $region13: #{tpu_custom_call.1} parent=5 // pred_check
        %p105 = pneg %p104
      $region14: #{tpu_custom_call.1} parent=5 // pred_check_branch
        %107 = sbr.rel (%p105) target = $region16
      $region15: #{tpu_custom_call.1} parent=5 // pred_region
        // Predicated region
        $region17: #{tpu_custom_call.1} parent=15 // pred_check
          %p108 = pneg %p31
        $region18: #{tpu_custom_call.1} parent=15 // pred_check_branch
          %110 = sbr.rel (%p108) target = $region20
        $region19: #{tpu_custom_call.1} parent=15 // pred_region
          %p111 = scmp.lt.s32.totalorder %s11, 1
          %s112 = scalar_select %p111, %s11, 1
          %s113 = smul.addr %s112, 16
          %s114 = smul.addr %s113, 8
          %s115 = scalar_lea.vmem %s0, %s114
        $region20: #{tpu_custom_call.1} parent=15 // pred_fallthru
          _
        // Predicated region
        $region21: #{tpu_custom_call.1} parent=15 // pred_check
          %p116 = pneg %p57
        $region22: #{tpu_custom_call.1} parent=15 // pred_check_branch
          %118 = sbr.rel (%p116) target = $region24
        $region23: #{tpu_custom_call.1} parent=15 // pred_region
          %p119 = scmp.lt.s32.totalorder %s11, 1
          %s120 = scalar_select %p119, %s11, 1
          %s121 = smul.addr %s120, 16
          %s122 = smul.addr %s121, 8
          %s123 = scalar_lea.vmem %s1, %s122
        $region24: #{tpu_custom_call.1} parent=15 // pred_fallthru
          _
      $region16: #{tpu_custom_call.1} parent=5 // pred_fallthru
        _
      %p124 = scmp.le.s32.totalorder 1, %s11
      %p125 = scmp.lt.s32.totalorder %s11, 3
      %p126 = pnand %p124, %p125
      %p127 = pneg %p126
      // Predicated region
      $region25: #{tpu_custom_call.1} parent=5 // pred_check
        _
      $region26: #{tpu_custom_call.1} parent=5 // pred_check_branch
        %129 = sbr.rel (%p126) target = $region28
      $region27: #{tpu_custom_call.1} parent=5 // pred_region
        %s130 = ssub.s32 %s11, 1
        %p131 = scmp.lt.s32.totalorder %s16, 1
        %s132 = scalar_select %p131, %s16, 1
        %s133 = smul.addr %s132, 16
        %s134 = smul.addr %s133, 8
        %s135 = scalar_lea.vmem %s0, %s134
        %p136 = pneg %p37
        %p137 = pneg %p34
        %p138 = scmp.lt.s32.totalorder %s16, 1
        %s139 = scalar_select %p138, %s16, 1
        %s140 = smul.addr %s139, 16
        %s141 = smul.addr %s140, 8
        %s142 = scalar_lea.vmem %s1, %s141
        %p143 = pneg %p63
        %p144 = pneg %p60
        %p145 = pneg %p89
        %p146 = pneg %p86
        %s147 = sand.u32 %s76, 1
        %s148 = scalar_lea.sflag [#allocation5], %s147
        %s149 = sand.u32 %s76, 1
        %s150 = scalar_lea.vmem [#allocation4], %s149
        %p151 = scmp.lt.s32.totalorder %s16, 1
        %s152 = scalar_select %p151, %s16, 1
        %s153 = smul.addr %s152, 16
        %s154 = smul.addr %s153, 8
        %s155 = scalar_lea.vmem %s0, %s154
        %p156 = scmp.lt.s32.totalorder %s16, 1
        %s157 = scalar_select %p156, %s16, 1
        %s158 = smul.addr %s157, 16
        %s159 = smul.addr %s158, 8
        %s160 = scalar_lea.vmem %s1, %s159
        %v161 = vld [vmem:[%s155] sm:$0xff]
        %v162 = vld [vmem:[%s155 + $0x8] sm:$0xff]
        %v163 = vld [vmem:[%s155 + $0x10] sm:$0xff]
        %v164 = vld [vmem:[%s155 + $0x18] sm:$0x3]
        %v165 = vld [vmem:[%s155 + $0x20] sm:$0xff]
        %v166 = vld [vmem:[%s155 + $0x28] sm:$0xff]
        %v167 = vld [vmem:[%s155 + $0x30] sm:$0xff]
        %v168 = vld [vmem:[%s155 + $0x38] sm:$0x3]
        %v169 = vld [vmem:[%s155 + $0x40] sm:$0xff]
        %v170 = vld [vmem:[%s155 + $0x48] sm:$0xff]
        %v171 = vld [vmem:[%s155 + $0x50] sm:$0xff]
        %v172 = vld [vmem:[%s155 + $0x58] sm:$0x3]
        %v173 = vld [vmem:[%s155 + $0x60] sm:$0xff]
        %v174 = vld [vmem:[%s155 + $0x68] sm:$0xff]
        %v175 = vld [vmem:[%s155 + $0x70] sm:$0xff]
        %v176 = vld [vmem:[%s155 + $0x78] sm:$0x3]
        %v177 = vmul.f32 %v161, 0.0010283801
        %v178 = vmul.f32 %v162, 0.0010283801
        %v179 = vmul.f32 %v163, 0.0010283801
        %v180 = vmul.f32 %v164, 0.0010283801
        %v181 = vmul.f32 %v165, 0.0010283801
        %v182 = vmul.f32 %v166, 0.0010283801
        %v183 = vmul.f32 %v167, 0.0010283801
        %v184 = vmul.f32 %v168, 0.0010283801
        %v185 = vmul.f32 %v169, 0.0010283801
        %v186 = vmul.f32 %v170, 0.0010283801
        %v187 = vmul.f32 %v171, 0.0010283801
        %v188 = vmul.f32 %v172, 0.0010283801
        %v189 = vmul.f32 %v173, 0.0010283801
        %v190 = vmul.f32 %v174, 0.0010283801
        %v191 = vmul.f32 %v175, 0.0010283801
        %v192 = vmul.f32 %v176, 0.0010283801
        %v193 = vmul.f32 %v161, 0.007598758
        %v194 = vmul.f32 %v162, 0.007598758
        %v195 = vmul.f32 %v163, 0.007598758
        %v196 = vmul.f32 %v164, 0.007598758
        %v197 = vmul.f32 %v165, 0.007598758
        %v198 = vmul.f32 %v166, 0.007598758
        %v199 = vmul.f32 %v167, 0.007598758
        %v200 = vmul.f32 %v168, 0.007598758
        %v201 = vmul.f32 %v169, 0.007598758
        %v202 = vmul.f32 %v170, 0.007598758
        %v203 = vmul.f32 %v171, 0.007598758
        %v204 = vmul.f32 %v172, 0.007598758
        %v205 = vmul.f32 %v173, 0.007598758
        %v206 = vmul.f32 %v174, 0.007598758
        %v207 = vmul.f32 %v175, 0.007598758
        %v208 = vmul.f32 %v176, 0.007598758
        %225 = vrot.lane.b32.xlu0 %v193, 127
        %v226 = vpop.permute.xlu0 %225
        %227 = vrot.lane.b32.xlu0 %v194, 127
        %v228 = vpop.permute.xlu0 %227
        %229 = vrot.lane.b32.xlu0 %v195, 127
        %v230 = vpop.permute.xlu0 %229
        %231 = vrot.lane.b32.xlu0 %v196, 127
        %v232 = vpop.permute.xlu0 %231
        %233 = vrot.lane.b32.xlu0 %v197, 127
        %v234 = vpop.permute.xlu0 %233
        %235 = vrot.lane.b32.xlu0 %v198, 127
        %v236 = vpop.permute.xlu0 %235
        %237 = vrot.lane.b32.xlu0 %v199, 127
        %v238 = vpop.permute.xlu0 %237
        %239 = vrot.lane.b32.xlu0 %v200, 127
        %v240 = vpop.permute.xlu0 %239
        %241 = vrot.lane.b32.xlu0 %v201, 127
        %v242 = vpop.permute.xlu0 %241
        %243 = vrot.lane.b32.xlu0 %v202, 127
        %v244 = vpop.permute.xlu0 %243
        %245 = vrot.lane.b32.xlu0 %v203, 127
        %v246 = vpop.permute.xlu0 %245
        %247 = vrot.lane.b32.xlu0 %v204, 127
        %v248 = vpop.permute.xlu0 %247
        %249 = vrot.lane.b32.xlu0 %v205, 127
        %v250 = vpop.permute.xlu0 %249
        %251 = vrot.lane.b32.xlu0 %v206, 127
        %v252 = vpop.permute.xlu0 %251
        %253 = vrot.lane.b32.xlu0 %v207, 127
        %v254 = vpop.permute.xlu0 %253
        %255 = vrot.lane.b32.xlu0 %v208, 127
        %v256 = vpop.permute.xlu0 %255
        %v273 = vadd.f32 %v177, %v226
        %v274 = vadd.f32 %v178, %v228
        %v275 = vadd.f32 %v179, %v230
        %v276 = vadd.f32 %v180, %v232
        %v277 = vadd.f32 %v181, %v234
        %v278 = vadd.f32 %v182, %v236
        %v279 = vadd.f32 %v183, %v238
        %v280 = vadd.f32 %v184, %v240
        %v281 = vadd.f32 %v185, %v242
        %v282 = vadd.f32 %v186, %v244
        %v283 = vadd.f32 %v187, %v246
        %v284 = vadd.f32 %v188, %v248
        %v285 = vadd.f32 %v189, %v250
        %v286 = vadd.f32 %v190, %v252
        %v287 = vadd.f32 %v191, %v254
        %v288 = vadd.f32 %v192, %v256
        %v289 = vmul.f32 %v161, 0.036000773
        %v290 = vmul.f32 %v162, 0.036000773
        %v291 = vmul.f32 %v163, 0.036000773
        %v292 = vmul.f32 %v164, 0.036000773
        %v293 = vmul.f32 %v165, 0.036000773
        %v294 = vmul.f32 %v166, 0.036000773
        %v295 = vmul.f32 %v167, 0.036000773
        %v296 = vmul.f32 %v168, 0.036000773
        %v297 = vmul.f32 %v169, 0.036000773
        %v298 = vmul.f32 %v170, 0.036000773
        %v299 = vmul.f32 %v171, 0.036000773
        %v300 = vmul.f32 %v172, 0.036000773
        %v301 = vmul.f32 %v173, 0.036000773
        %v302 = vmul.f32 %v174, 0.036000773
        %v303 = vmul.f32 %v175, 0.036000773
        %v304 = vmul.f32 %v176, 0.036000773
        %321 = vrot.lane.b32.xlu0 %v289, 126
        %v322 = vpop.permute.xlu0 %321
        %323 = vrot.lane.b32.xlu0 %v290, 126
        %v324 = vpop.permute.xlu0 %323
        %325 = vrot.lane.b32.xlu0 %v291, 126
        %v326 = vpop.permute.xlu0 %325
        %327 = vrot.lane.b32.xlu0 %v292, 126
        %v328 = vpop.permute.xlu0 %327
        %329 = vrot.lane.b32.xlu0 %v293, 126
        %v330 = vpop.permute.xlu0 %329
        %331 = vrot.lane.b32.xlu0 %v294, 126
        %v332 = vpop.permute.xlu0 %331
        %333 = vrot.lane.b32.xlu0 %v295, 126
        %v334 = vpop.permute.xlu0 %333
        %335 = vrot.lane.b32.xlu0 %v296, 126
        %v336 = vpop.permute.xlu0 %335
        %337 = vrot.lane.b32.xlu0 %v297, 126
        %v338 = vpop.permute.xlu0 %337
        %339 = vrot.lane.b32.xlu0 %v298, 126
        %v340 = vpop.permute.xlu0 %339
        %341 = vrot.lane.b32.xlu0 %v299, 126
        %v342 = vpop.permute.xlu0 %341
        %343 = vrot.lane.b32.xlu0 %v300, 126
        %v344 = vpop.permute.xlu0 %343
        %345 = vrot.lane.b32.xlu0 %v301, 126
        %v346 = vpop.permute.xlu0 %345
        %347 = vrot.lane.b32.xlu0 %v302, 126
        %v348 = vpop.permute.xlu0 %347
        %349 = vrot.lane.b32.xlu0 %v303, 126
        %v350 = vpop.permute.xlu0 %349
        %351 = vrot.lane.b32.xlu0 %v304, 126
        %v352 = vpop.permute.xlu0 %351
        %v369 = vadd.f32 %v273, %v322
        %v370 = vadd.f32 %v274, %v324
        %v371 = vadd.f32 %v275, %v326
        %v372 = vadd.f32 %v276, %v328
        %v373 = vadd.f32 %v277, %v330
        %v374 = vadd.f32 %v278, %v332
        %v375 = vadd.f32 %v279, %v334
        %v376 = vadd.f32 %v280, %v336
        %v377 = vadd.f32 %v281, %v338
        %v378 = vadd.f32 %v282, %v340
        %v379 = vadd.f32 %v283, %v342
        %v380 = vadd.f32 %v284, %v344
        %v381 = vadd.f32 %v285, %v346
        %v382 = vadd.f32 %v286, %v348
        %v383 = vadd.f32 %v287, %v350
        %v384 = vadd.f32 %v288, %v352
        %v385 = vmul.f32 %v161, 0.10936069
        %v386 = vmul.f32 %v162, 0.10936069
        %v387 = vmul.f32 %v163, 0.10936069
        %v388 = vmul.f32 %v164, 0.10936069
        %v389 = vmul.f32 %v165, 0.10936069
        %v390 = vmul.f32 %v166, 0.10936069
        %v391 = vmul.f32 %v167, 0.10936069
        %v392 = vmul.f32 %v168, 0.10936069
        %v393 = vmul.f32 %v169, 0.10936069
        %v394 = vmul.f32 %v170, 0.10936069
        %v395 = vmul.f32 %v171, 0.10936069
        %v396 = vmul.f32 %v172, 0.10936069
        %v397 = vmul.f32 %v173, 0.10936069
        %v398 = vmul.f32 %v174, 0.10936069
        %v399 = vmul.f32 %v175, 0.10936069
        %v400 = vmul.f32 %v176, 0.10936069
        %417 = vrot.lane.b32.xlu0 %v385, 125
        %v418 = vpop.permute.xlu0 %417
        %419 = vrot.lane.b32.xlu0 %v386, 125
        %v420 = vpop.permute.xlu0 %419
        %421 = vrot.lane.b32.xlu0 %v387, 125
        %v422 = vpop.permute.xlu0 %421
        %423 = vrot.lane.b32.xlu0 %v388, 125
        %v424 = vpop.permute.xlu0 %423
        %425 = vrot.lane.b32.xlu0 %v389, 125
        %v426 = vpop.permute.xlu0 %425
        %427 = vrot.lane.b32.xlu0 %v390, 125
        %v428 = vpop.permute.xlu0 %427
        %429 = vrot.lane.b32.xlu0 %v391, 125
        %v430 = vpop.permute.xlu0 %429
        %431 = vrot.lane.b32.xlu0 %v392, 125
        %v432 = vpop.permute.xlu0 %431
        %433 = vrot.lane.b32.xlu0 %v393, 125
        %v434 = vpop.permute.xlu0 %433
        %435 = vrot.lane.b32.xlu0 %v394, 125
        %v436 = vpop.permute.xlu0 %435
        %437 = vrot.lane.b32.xlu0 %v395, 125
        %v438 = vpop.permute.xlu0 %437
        %439 = vrot.lane.b32.xlu0 %v396, 125
        %v440 = vpop.permute.xlu0 %439
        %441 = vrot.lane.b32.xlu0 %v397, 125
        %v442 = vpop.permute.xlu0 %441
        %443 = vrot.lane.b32.xlu0 %v398, 125
        %v444 = vpop.permute.xlu0 %443
        %445 = vrot.lane.b32.xlu0 %v399, 125
        %v446 = vpop.permute.xlu0 %445
        %447 = vrot.lane.b32.xlu0 %v400, 125
        %v448 = vpop.permute.xlu0 %447
        %v465 = vadd.f32 %v369, %v418
        %v466 = vadd.f32 %v370, %v420
        %v467 = vadd.f32 %v371, %v422
        %v468 = vadd.f32 %v372, %v424
        %v469 = vadd.f32 %v373, %v426
        %v470 = vadd.f32 %v374, %v428
        %v471 = vadd.f32 %v375, %v430
        %v472 = vadd.f32 %v376, %v432
        %v473 = vadd.f32 %v377, %v434
        %v474 = vadd.f32 %v378, %v436
        %v475 = vadd.f32 %v379, %v438
        %v476 = vadd.f32 %v380, %v440
        %v477 = vadd.f32 %v381, %v442
        %v478 = vadd.f32 %v382, %v444
        %v479 = vadd.f32 %v383, %v446
        %v480 = vadd.f32 %v384, %v448
        %v481 = vmul.f32 %v161, 0.21300554
        %v482 = vmul.f32 %v162, 0.21300554
        %v483 = vmul.f32 %v163, 0.21300554
        %v484 = vmul.f32 %v164, 0.21300554
        %v485 = vmul.f32 %v165, 0.21300554
        %v486 = vmul.f32 %v166, 0.21300554
        %v487 = vmul.f32 %v167, 0.21300554
        %v488 = vmul.f32 %v168, 0.21300554
        %v489 = vmul.f32 %v169, 0.21300554
        %v490 = vmul.f32 %v170, 0.21300554
        %v491 = vmul.f32 %v171, 0.21300554
        %v492 = vmul.f32 %v172, 0.21300554
        %v493 = vmul.f32 %v173, 0.21300554
        %v494 = vmul.f32 %v174, 0.21300554
        %v495 = vmul.f32 %v175, 0.21300554
        %v496 = vmul.f32 %v176, 0.21300554
        %513 = vrot.lane.b32.xlu0 %v481, 124
        %v514 = vpop.permute.xlu0 %513
        %515 = vrot.lane.b32.xlu0 %v482, 124
        %v516 = vpop.permute.xlu0 %515
        %517 = vrot.lane.b32.xlu0 %v483, 124
        %v518 = vpop.permute.xlu0 %517
        %519 = vrot.lane.b32.xlu0 %v484, 124
        %v520 = vpop.permute.xlu0 %519
        %521 = vrot.lane.b32.xlu0 %v485, 124
        %v522 = vpop.permute.xlu0 %521
        %523 = vrot.lane.b32.xlu0 %v486, 124
        %v524 = vpop.permute.xlu0 %523
        %525 = vrot.lane.b32.xlu0 %v487, 124
        %v526 = vpop.permute.xlu0 %525
        %527 = vrot.lane.b32.xlu0 %v488, 124
        %v528 = vpop.permute.xlu0 %527
        %529 = vrot.lane.b32.xlu0 %v489, 124
        %v530 = vpop.permute.xlu0 %529
        %531 = vrot.lane.b32.xlu0 %v490, 124
        %v532 = vpop.permute.xlu0 %531
        %533 = vrot.lane.b32.xlu0 %v491, 124
        %v534 = vpop.permute.xlu0 %533
        %535 = vrot.lane.b32.xlu0 %v492, 124
        %v536 = vpop.permute.xlu0 %535
        %537 = vrot.lane.b32.xlu0 %v493, 124
        %v538 = vpop.permute.xlu0 %537
        %539 = vrot.lane.b32.xlu0 %v494, 124
        %v540 = vpop.permute.xlu0 %539
        %541 = vrot.lane.b32.xlu0 %v495, 124
        %v542 = vpop.permute.xlu0 %541
        %543 = vrot.lane.b32.xlu0 %v496, 124
        %v544 = vpop.permute.xlu0 %543
        %v561 = vadd.f32 %v465, %v514
        %v562 = vadd.f32 %v466, %v516
        %v563 = vadd.f32 %v467, %v518
        %v564 = vadd.f32 %v468, %v520
        %v565 = vadd.f32 %v469, %v522
        %v566 = vadd.f32 %v470, %v524
        %v567 = vadd.f32 %v471, %v526
        %v568 = vadd.f32 %v472, %v528
        %v569 = vadd.f32 %v473, %v530
        %v570 = vadd.f32 %v474, %v532
        %v571 = vadd.f32 %v475, %v534
        %v572 = vadd.f32 %v476, %v536
        %v573 = vadd.f32 %v477, %v538
        %v574 = vadd.f32 %v478, %v540
        %v575 = vadd.f32 %v479, %v542
        %v576 = vadd.f32 %v480, %v544
        %v577 = vmul.f32 %v161, 0.26601171
        %v578 = vmul.f32 %v162, 0.26601171
        %v579 = vmul.f32 %v163, 0.26601171
        %v580 = vmul.f32 %v164, 0.26601171
        %v581 = vmul.f32 %v165, 0.26601171
        %v582 = vmul.f32 %v166, 0.26601171
        %v583 = vmul.f32 %v167, 0.26601171
        %v584 = vmul.f32 %v168, 0.26601171
        %v585 = vmul.f32 %v169, 0.26601171
        %v586 = vmul.f32 %v170, 0.26601171
        %v587 = vmul.f32 %v171, 0.26601171
        %v588 = vmul.f32 %v172, 0.26601171
        %v589 = vmul.f32 %v173, 0.26601171
        %v590 = vmul.f32 %v174, 0.26601171
        %v591 = vmul.f32 %v175, 0.26601171
        %v592 = vmul.f32 %v176, 0.26601171
        %609 = vrot.lane.b32.xlu0 %v577, 123
        %v610 = vpop.permute.xlu0 %609
        %611 = vrot.lane.b32.xlu0 %v578, 123
        %v612 = vpop.permute.xlu0 %611
        %613 = vrot.lane.b32.xlu0 %v579, 123
        %v614 = vpop.permute.xlu0 %613
        %615 = vrot.lane.b32.xlu0 %v580, 123
        %v616 = vpop.permute.xlu0 %615
        %617 = vrot.lane.b32.xlu0 %v581, 123
        %v618 = vpop.permute.xlu0 %617
        %619 = vrot.lane.b32.xlu0 %v582, 123
        %v620 = vpop.permute.xlu0 %619
        %621 = vrot.lane.b32.xlu0 %v583, 123
        %v622 = vpop.permute.xlu0 %621
        %623 = vrot.lane.b32.xlu0 %v584, 123
        %v624 = vpop.permute.xlu0 %623
        %625 = vrot.lane.b32.xlu0 %v585, 123
        %v626 = vpop.permute.xlu0 %625
        %627 = vrot.lane.b32.xlu0 %v586, 123
        %v628 = vpop.permute.xlu0 %627
        %629 = vrot.lane.b32.xlu0 %v587, 123
        %v630 = vpop.permute.xlu0 %629
        %631 = vrot.lane.b32.xlu0 %v588, 123
        %v632 = vpop.permute.xlu0 %631
        %633 = vrot.lane.b32.xlu0 %v589, 123
        %v634 = vpop.permute.xlu0 %633
        %635 = vrot.lane.b32.xlu0 %v590, 123
        %v636 = vpop.permute.xlu0 %635
        %637 = vrot.lane.b32.xlu0 %v591, 123
        %v638 = vpop.permute.xlu0 %637
        %639 = vrot.lane.b32.xlu0 %v592, 123
        %v640 = vpop.permute.xlu0 %639
        %v657 = vadd.f32 %v561, %v610
        %v658 = vadd.f32 %v562, %v612
        %v659 = vadd.f32 %v563, %v614
        %v660 = vadd.f32 %v564, %v616
        %v661 = vadd.f32 %v565, %v618
        %v662 = vadd.f32 %v566, %v620
        %v663 = vadd.f32 %v567, %v622
        %v664 = vadd.f32 %v568, %v624
        %v665 = vadd.f32 %v569, %v626
        %v666 = vadd.f32 %v570, %v628
        %v667 = vadd.f32 %v571, %v630
        %v668 = vadd.f32 %v572, %v632
        %v669 = vadd.f32 %v573, %v634
        %v670 = vadd.f32 %v574, %v636
        %v671 = vadd.f32 %v575, %v638
        %v672 = vadd.f32 %v576, %v640
        %673 = vrot.lane.b32.xlu0 %v481, 122
        %v674 = vpop.permute.xlu0 %673
        %675 = vrot.lane.b32.xlu0 %v482, 122
        %v676 = vpop.permute.xlu0 %675
        %677 = vrot.lane.b32.xlu0 %v483, 122
        %v678 = vpop.permute.xlu0 %677
        %679 = vrot.lane.b32.xlu0 %v484, 122
        %v680 = vpop.permute.xlu0 %679
        %681 = vrot.lane.b32.xlu0 %v485, 122
        %v682 = vpop.permute.xlu0 %681
        %683 = vrot.lane.b32.xlu0 %v486, 122
        %v684 = vpop.permute.xlu0 %683
        %685 = vrot.lane.b32.xlu0 %v487, 122
        %v686 = vpop.permute.xlu0 %685
        %687 = vrot.lane.b32.xlu0 %v488, 122
        %v688 = vpop.permute.xlu0 %687
        %689 = vrot.lane.b32.xlu0 %v489, 122
        %v690 = vpop.permute.xlu0 %689
        %691 = vrot.lane.b32.xlu0 %v490, 122
        %v692 = vpop.permute.xlu0 %691
        %693 = vrot.lane.b32.xlu0 %v491, 122
        %v694 = vpop.permute.xlu0 %693
        %695 = vrot.lane.b32.xlu0 %v492, 122
        %v696 = vpop.permute.xlu0 %695
        %697 = vrot.lane.b32.xlu0 %v493, 122
        %v698 = vpop.permute.xlu0 %697
        %699 = vrot.lane.b32.xlu0 %v494, 122
        %v700 = vpop.permute.xlu0 %699
        %701 = vrot.lane.b32.xlu0 %v495, 122
        %v702 = vpop.permute.xlu0 %701
        %703 = vrot.lane.b32.xlu0 %v496, 122
        %v704 = vpop.permute.xlu0 %703
        %v721 = vadd.f32 %v657, %v674
        %v722 = vadd.f32 %v658, %v676
        %v723 = vadd.f32 %v659, %v678
        %v724 = vadd.f32 %v660, %v680
        %v725 = vadd.f32 %v661, %v682
        %v726 = vadd.f32 %v662, %v684
        %v727 = vadd.f32 %v663, %v686
        %v728 = vadd.f32 %v664, %v688
        %v729 = vadd.f32 %v665, %v690
        %v730 = vadd.f32 %v666, %v692
        %v731 = vadd.f32 %v667, %v694
        %v732 = vadd.f32 %v668, %v696
        %v733 = vadd.f32 %v669, %v698
        %v734 = vadd.f32 %v670, %v700
        %v735 = vadd.f32 %v671, %v702
        %v736 = vadd.f32 %v672, %v704
        %737 = vrot.lane.b32.xlu0 %v385, 121
        %v738 = vpop.permute.xlu0 %737
        %739 = vrot.lane.b32.xlu0 %v386, 121
        %v740 = vpop.permute.xlu0 %739
        %741 = vrot.lane.b32.xlu0 %v387, 121
        %v742 = vpop.permute.xlu0 %741
        %743 = vrot.lane.b32.xlu0 %v388, 121
        %v744 = vpop.permute.xlu0 %743
        %745 = vrot.lane.b32.xlu0 %v389, 121
        %v746 = vpop.permute.xlu0 %745
        %747 = vrot.lane.b32.xlu0 %v390, 121
        %v748 = vpop.permute.xlu0 %747
        %749 = vrot.lane.b32.xlu0 %v391, 121
        %v750 = vpop.permute.xlu0 %749
        %751 = vrot.lane.b32.xlu0 %v392, 121
        %v752 = vpop.permute.xlu0 %751
        %753 = vrot.lane.b32.xlu0 %v393, 121
        %v754 = vpop.permute.xlu0 %753
        %755 = vrot.lane.b32.xlu0 %v394, 121
        %v756 = vpop.permute.xlu0 %755
        %757 = vrot.lane.b32.xlu0 %v395, 121
        %v758 = vpop.permute.xlu0 %757
        %759 = vrot.lane.b32.xlu0 %v396, 121
        %v760 = vpop.permute.xlu0 %759
        %761 = vrot.lane.b32.xlu0 %v397, 121
        %v762 = vpop.permute.xlu0 %761
        %763 = vrot.lane.b32.xlu0 %v398, 121
        %v764 = vpop.permute.xlu0 %763
        %765 = vrot.lane.b32.xlu0 %v399, 121
        %v766 = vpop.permute.xlu0 %765
        %767 = vrot.lane.b32.xlu0 %v400, 121
        %v768 = vpop.permute.xlu0 %767
        %v785 = vadd.f32 %v721, %v738
        %v786 = vadd.f32 %v722, %v740
        %v787 = vadd.f32 %v723, %v742
        %v788 = vadd.f32 %v724, %v744
        %v789 = vadd.f32 %v725, %v746
        %v790 = vadd.f32 %v726, %v748
        %v791 = vadd.f32 %v727, %v750
        %v792 = vadd.f32 %v728, %v752
        %v793 = vadd.f32 %v729, %v754
        %v794 = vadd.f32 %v730, %v756
        %v795 = vadd.f32 %v731, %v758
        %v796 = vadd.f32 %v732, %v760
        %v797 = vadd.f32 %v733, %v762
        %v798 = vadd.f32 %v734, %v764
        %v799 = vadd.f32 %v735, %v766
        %v800 = vadd.f32 %v736, %v768
        %801 = vrot.lane.b32.xlu0 %v289, 120
        %v802 = vpop.permute.xlu0 %801
        %803 = vrot.lane.b32.xlu0 %v290, 120
        %v804 = vpop.permute.xlu0 %803
        %805 = vrot.lane.b32.xlu0 %v291, 120
        %v806 = vpop.permute.xlu0 %805
        %807 = vrot.lane.b32.xlu0 %v292, 120
        %v808 = vpop.permute.xlu0 %807
        %809 = vrot.lane.b32.xlu0 %v293, 120
        %v810 = vpop.permute.xlu0 %809
        %811 = vrot.lane.b32.xlu0 %v294, 120
        %v812 = vpop.permute.xlu0 %811
        %813 = vrot.lane.b32.xlu0 %v295, 120
        %v814 = vpop.permute.xlu0 %813
        %815 = vrot.lane.b32.xlu0 %v296, 120
        %v816 = vpop.permute.xlu0 %815
        %817 = vrot.lane.b32.xlu0 %v297, 120
        %v818 = vpop.permute.xlu0 %817
        %819 = vrot.lane.b32.xlu0 %v298, 120
        %v820 = vpop.permute.xlu0 %819
        %821 = vrot.lane.b32.xlu0 %v299, 120
        %v822 = vpop.permute.xlu0 %821
        %823 = vrot.lane.b32.xlu0 %v300, 120
        %v824 = vpop.permute.xlu0 %823
        %825 = vrot.lane.b32.xlu0 %v301, 120
        %v826 = vpop.permute.xlu0 %825
        %827 = vrot.lane.b32.xlu0 %v302, 120
        %v828 = vpop.permute.xlu0 %827
        %829 = vrot.lane.b32.xlu0 %v303, 120
        %v830 = vpop.permute.xlu0 %829
        %831 = vrot.lane.b32.xlu0 %v304, 120
        %v832 = vpop.permute.xlu0 %831
        %v849 = vadd.f32 %v785, %v802
        %v850 = vadd.f32 %v786, %v804
        %v851 = vadd.f32 %v787, %v806
        %v852 = vadd.f32 %v788, %v808
        %v853 = vadd.f32 %v789, %v810
        %v854 = vadd.f32 %v790, %v812
        %v855 = vadd.f32 %v791, %v814
        %v856 = vadd.f32 %v792, %v816
        %v857 = vadd.f32 %v793, %v818
        %v858 = vadd.f32 %v794, %v820
        %v859 = vadd.f32 %v795, %v822
        %v860 = vadd.f32 %v796, %v824
        %v861 = vadd.f32 %v797, %v826
        %v862 = vadd.f32 %v798, %v828
        %v863 = vadd.f32 %v799, %v830
        %v864 = vadd.f32 %v800, %v832
        %865 = vrot.lane.b32.xlu0 %v193, 119
        %v866 = vpop.permute.xlu0 %865
        %867 = vrot.lane.b32.xlu0 %v194, 119
        %v868 = vpop.permute.xlu0 %867
        %869 = vrot.lane.b32.xlu0 %v195, 119
        %v870 = vpop.permute.xlu0 %869
        %871 = vrot.lane.b32.xlu0 %v196, 119
        %v872 = vpop.permute.xlu0 %871
        %873 = vrot.lane.b32.xlu0 %v197, 119
        %v874 = vpop.permute.xlu0 %873
        %875 = vrot.lane.b32.xlu0 %v198, 119
        %v876 = vpop.permute.xlu0 %875
        %877 = vrot.lane.b32.xlu0 %v199, 119
        %v878 = vpop.permute.xlu0 %877
        %879 = vrot.lane.b32.xlu0 %v200, 119
        %v880 = vpop.permute.xlu0 %879
        %881 = vrot.lane.b32.xlu0 %v201, 119
        %v882 = vpop.permute.xlu0 %881
        %883 = vrot.lane.b32.xlu0 %v202, 119
        %v884 = vpop.permute.xlu0 %883
        %885 = vrot.lane.b32.xlu0 %v203, 119
        %v886 = vpop.permute.xlu0 %885
        %887 = vrot.lane.b32.xlu0 %v204, 119
        %v888 = vpop.permute.xlu0 %887
        %889 = vrot.lane.b32.xlu0 %v205, 119
        %v890 = vpop.permute.xlu0 %889
        %891 = vrot.lane.b32.xlu0 %v206, 119
        %v892 = vpop.permute.xlu0 %891
        %893 = vrot.lane.b32.xlu0 %v207, 119
        %v894 = vpop.permute.xlu0 %893
        %895 = vrot.lane.b32.xlu0 %v208, 119
        %v896 = vpop.permute.xlu0 %895
        %v913 = vadd.f32 %v849, %v866
        %v914 = vadd.f32 %v850, %v868
        %v915 = vadd.f32 %v851, %v870
        %v916 = vadd.f32 %v852, %v872
        %v917 = vadd.f32 %v853, %v874
        %v918 = vadd.f32 %v854, %v876
        %v919 = vadd.f32 %v855, %v878
        %v920 = vadd.f32 %v856, %v880
        %v921 = vadd.f32 %v857, %v882
        %v922 = vadd.f32 %v858, %v884
        %v923 = vadd.f32 %v859, %v886
        %v924 = vadd.f32 %v860, %v888
        %v925 = vadd.f32 %v861, %v890
        %v926 = vadd.f32 %v862, %v892
        %v927 = vadd.f32 %v863, %v894
        %v928 = vadd.f32 %v864, %v896
        %945 = vrot.lane.b32.xlu0 %v177, 118
        %v946 = vpop.permute.xlu0 %945
        %947 = vrot.lane.b32.xlu0 %v178, 118
        %v948 = vpop.permute.xlu0 %947
        %949 = vrot.lane.b32.xlu0 %v179, 118
        %v950 = vpop.permute.xlu0 %949
        %951 = vrot.lane.b32.xlu0 %v180, 118
        %v952 = vpop.permute.xlu0 %951
        %953 = vrot.lane.b32.xlu0 %v181, 118
        %v954 = vpop.permute.xlu0 %953
        %955 = vrot.lane.b32.xlu0 %v182, 118
        %v956 = vpop.permute.xlu0 %955
        %957 = vrot.lane.b32.xlu0 %v183, 118
        %v958 = vpop.permute.xlu0 %957
        %959 = vrot.lane.b32.xlu0 %v184, 118
        %v960 = vpop.permute.xlu0 %959
        %961 = vrot.lane.b32.xlu0 %v185, 118
        %v962 = vpop.permute.xlu0 %961
        %963 = vrot.lane.b32.xlu0 %v186, 118
        %v964 = vpop.permute.xlu0 %963
        %965 = vrot.lane.b32.xlu0 %v187, 118
        %v966 = vpop.permute.xlu0 %965
        %967 = vrot.lane.b32.xlu0 %v188, 118
        %v968 = vpop.permute.xlu0 %967
        %969 = vrot.lane.b32.xlu0 %v189, 118
        %v970 = vpop.permute.xlu0 %969
        %971 = vrot.lane.b32.xlu0 %v190, 118
        %v972 = vpop.permute.xlu0 %971
        %973 = vrot.lane.b32.xlu0 %v191, 118
        %v974 = vpop.permute.xlu0 %973
        %975 = vrot.lane.b32.xlu0 %v192, 118
        %v976 = vpop.permute.xlu0 %975
        %v993 = vadd.f32 %v913, %v946
        %v994 = vadd.f32 %v914, %v948
        %v995 = vadd.f32 %v915, %v950
        %v996 = vadd.f32 %v916, %v952
        %v997 = vadd.f32 %v917, %v954
        %v998 = vadd.f32 %v918, %v956
        %v999 = vadd.f32 %v919, %v958
        %v1000 = vadd.f32 %v920, %v960
        %v1001 = vadd.f32 %v921, %v962
        %v1002 = vadd.f32 %v922, %v964
        %v1003 = vadd.f32 %v923, %v966
        %v1004 = vadd.f32 %v924, %v968
        %v1005 = vadd.f32 %v925, %v970
        %v1006 = vadd.f32 %v926, %v972
        %v1007 = vadd.f32 %v927, %v974
        %v1008 = vadd.f32 %v928, %v976
        %vm1009 = vcmask 130048
        %1010 = vst.msk [vmem:[#allocation3] sm:$0xff] %vm1009, %v993
        %1011 = vst.msk [vmem:[#allocation3 + $0x8] sm:$0xff] %vm1009, %v994
        %1012 = vst.msk [vmem:[#allocation3 + $0x10] sm:$0xff] %vm1009, %v995
        %vm1013 = vcmask 123904
        %1014 = vst.msk [vmem:[#allocation3 + $0x18] sm:$0x3] %vm1013, %v996
        %1015 = vst.msk [vmem:[#allocation3 + $0x20] sm:$0xff] %vm1009, %v997
        %1016 = vst.msk [vmem:[#allocation3 + $0x28] sm:$0xff] %vm1009, %v998
        %1017 = vst.msk [vmem:[#allocation3 + $0x30] sm:$0xff] %vm1009, %v999
        %1018 = vst.msk [vmem:[#allocation3 + $0x38] sm:$0x3] %vm1013, %v1000
        %1019 = vst.msk [vmem:[#allocation3 + $0x40] sm:$0xff] %vm1009, %v1001
        %1020 = vst.msk [vmem:[#allocation3 + $0x48] sm:$0xff] %vm1009, %v1002
        %1021 = vst.msk [vmem:[#allocation3 + $0x50] sm:$0xff] %vm1009, %v1003
        %1022 = vst.msk [vmem:[#allocation3 + $0x58] sm:$0x3] %vm1013, %v1004
        %1023 = vst.msk [vmem:[#allocation3 + $0x60] sm:$0xff] %vm1009, %v1005
        %1024 = vst.msk [vmem:[#allocation3 + $0x68] sm:$0xff] %vm1009, %v1006
        %1025 = vst.msk [vmem:[#allocation3 + $0x70] sm:$0xff] %vm1009, %v1007
        %1026 = vst.msk [vmem:[#allocation3 + $0x78] sm:$0x3] %vm1013, %v1008
        %v1027 = vld [vmem:[#allocation3] sm:$0xff]
        %v1028 = vld [vmem:[#allocation3 + $0x8] sm:$0xff]
        %v1029 = vld [vmem:[#allocation3 + $0x20] sm:$0xff]
        %v1030 = vld [vmem:[#allocation3 + $0x28] sm:$0xff]
        %v1031 = vld [vmem:[#allocation3 + $0x40] sm:$0xff]
        %v1032 = vld [vmem:[#allocation3 + $0x48] sm:$0xff]
        %v1033 = vld [vmem:[#allocation3 + $0x60] sm:$0xff]
        %v1034 = vld [vmem:[#allocation3 + $0x68] sm:$0xff]
        %v1035 = vmul.f32 %v1027, 0.0010283801
        %v1036 = vmul.f32 %v1028, 0.0010283801
        %v1037 = vmul.f32 %v1029, 0.0010283801
        %v1038 = vmul.f32 %v1030, 0.0010283801
        %v1039 = vmul.f32 %v1031, 0.0010283801
        %v1040 = vmul.f32 %v1032, 0.0010283801
        %v1041 = vmul.f32 %v1033, 0.0010283801
        %v1042 = vmul.f32 %v1034, 0.0010283801
        %v1043 = vld [vmem:[#allocation3 + $0x1] sm:$0xff]
        %v1044 = vld [vmem:[#allocation3 + $0x9] sm:$0xff]
        %v1045 = vld [vmem:[#allocation3 + $0x21] sm:$0xff]
        %v1046 = vld [vmem:[#allocation3 + $0x29] sm:$0xff]
        %v1047 = vld [vmem:[#allocation3 + $0x41] sm:$0xff]
        %v1048 = vld [vmem:[#allocation3 + $0x49] sm:$0xff]
        %v1049 = vld [vmem:[#allocation3 + $0x61] sm:$0xff]
        %v1050 = vld [vmem:[#allocation3 + $0x69] sm:$0xff]
        %v1051 = vmul.f32 %v1043, 0.007598758
        %v1052 = vmul.f32 %v1044, 0.007598758
        %v1053 = vmul.f32 %v1045, 0.007598758
        %v1054 = vmul.f32 %v1046, 0.007598758
        %v1055 = vmul.f32 %v1047, 0.007598758
        %v1056 = vmul.f32 %v1048, 0.007598758
        %v1057 = vmul.f32 %v1049, 0.007598758
        %v1058 = vmul.f32 %v1050, 0.007598758
        %v1059 = vadd.f32 %v1035, %v1051
        %v1060 = vadd.f32 %v1036, %v1052
        %v1061 = vadd.f32 %v1037, %v1053
        %v1062 = vadd.f32 %v1038, %v1054
        %v1063 = vadd.f32 %v1039, %v1055
        %v1064 = vadd.f32 %v1040, %v1056
        %v1065 = vadd.f32 %v1041, %v1057
        %v1066 = vadd.f32 %v1042, %v1058
        %v1067 = vld [vmem:[#allocation3 + $0x2] sm:$0xff]
        %v1068 = vld [vmem:[#allocation3 + $0xa] sm:$0xff]
        %v1069 = vld [vmem:[#allocation3 + $0x22] sm:$0xff]
        %v1070 = vld [vmem:[#allocation3 + $0x2a] sm:$0xff]
        %v1071 = vld [vmem:[#allocation3 + $0x42] sm:$0xff]
        %v1072 = vld [vmem:[#allocation3 + $0x4a] sm:$0xff]
        %v1073 = vld [vmem:[#allocation3 + $0x62] sm:$0xff]
        %v1074 = vld [vmem:[#allocation3 + $0x6a] sm:$0xff]
        %v1075 = vmul.f32 %v1067, 0.036000773
        %v1076 = vmul.f32 %v1068, 0.036000773
        %v1077 = vmul.f32 %v1069, 0.036000773
        %v1078 = vmul.f32 %v1070, 0.036000773
        %v1079 = vmul.f32 %v1071, 0.036000773
        %v1080 = vmul.f32 %v1072, 0.036000773
        %v1081 = vmul.f32 %v1073, 0.036000773
        %v1082 = vmul.f32 %v1074, 0.036000773
        %v1083 = vadd.f32 %v1059, %v1075
        %v1084 = vadd.f32 %v1060, %v1076
        %v1085 = vadd.f32 %v1061, %v1077
        %v1086 = vadd.f32 %v1062, %v1078
        %v1087 = vadd.f32 %v1063, %v1079
        %v1088 = vadd.f32 %v1064, %v1080
        %v1089 = vadd.f32 %v1065, %v1081
        %v1090 = vadd.f32 %v1066, %v1082
        %v1091 = vld [vmem:[#allocation3 + $0x3] sm:$0xff]
        %v1092 = vld [vmem:[#allocation3 + $0xb] sm:$0xff]
        %v1093 = vld [vmem:[#allocation3 + $0x23] sm:$0xff]
        %v1094 = vld [vmem:[#allocation3 + $0x2b] sm:$0xff]
        %v1095 = vld [vmem:[#allocation3 + $0x43] sm:$0xff]
        %v1096 = vld [vmem:[#allocation3 + $0x4b] sm:$0xff]
        %v1097 = vld [vmem:[#allocation3 + $0x63] sm:$0xff]
        %v1098 = vld [vmem:[#allocation3 + $0x6b] sm:$0xff]
        %v1099 = vmul.f32 %v1091, 0.10936069
        %v1100 = vmul.f32 %v1092, 0.10936069
        %v1101 = vmul.f32 %v1093, 0.10936069
        %v1102 = vmul.f32 %v1094, 0.10936069
        %v1103 = vmul.f32 %v1095, 0.10936069
        %v1104 = vmul.f32 %v1096, 0.10936069
        %v1105 = vmul.f32 %v1097, 0.10936069
        %v1106 = vmul.f32 %v1098, 0.10936069
        %v1107 = vadd.f32 %v1083, %v1099
        %v1108 = vadd.f32 %v1084, %v1100
        %v1109 = vadd.f32 %v1085, %v1101
        %v1110 = vadd.f32 %v1086, %v1102
        %v1111 = vadd.f32 %v1087, %v1103
        %v1112 = vadd.f32 %v1088, %v1104
        %v1113 = vadd.f32 %v1089, %v1105
        %v1114 = vadd.f32 %v1090, %v1106
        %v1115 = vld [vmem:[#allocation3 + $0x4] sm:$0xff]
        %v1116 = vld [vmem:[#allocation3 + $0xc] sm:$0xff]
        %v1117 = vld [vmem:[#allocation3 + $0x24] sm:$0xff]
        %v1118 = vld [vmem:[#allocation3 + $0x2c] sm:$0xff]
        %v1119 = vld [vmem:[#allocation3 + $0x44] sm:$0xff]
        %v1120 = vld [vmem:[#allocation3 + $0x4c] sm:$0xff]
        %v1121 = vld [vmem:[#allocation3 + $0x64] sm:$0xff]
        %v1122 = vld [vmem:[#allocation3 + $0x6c] sm:$0xff]
        %v1123 = vmul.f32 %v1115, 0.21300554
        %v1124 = vmul.f32 %v1116, 0.21300554
        %v1125 = vmul.f32 %v1117, 0.21300554
        %v1126 = vmul.f32 %v1118, 0.21300554
        %v1127 = vmul.f32 %v1119, 0.21300554
        %v1128 = vmul.f32 %v1120, 0.21300554
        %v1129 = vmul.f32 %v1121, 0.21300554
        %v1130 = vmul.f32 %v1122, 0.21300554
        %v1131 = vadd.f32 %v1107, %v1123
        %v1132 = vadd.f32 %v1108, %v1124
        %v1133 = vadd.f32 %v1109, %v1125
        %v1134 = vadd.f32 %v1110, %v1126
        %v1135 = vadd.f32 %v1111, %v1127
        %v1136 = vadd.f32 %v1112, %v1128
        %v1137 = vadd.f32 %v1113, %v1129
        %v1138 = vadd.f32 %v1114, %v1130
        %v1139 = vld [vmem:[#allocation3 + $0x5] sm:$0xff]
        %v1140 = vld [vmem:[#allocation3 + $0xd] sm:$0xff]
        %v1141 = vld [vmem:[#allocation3 + $0x25] sm:$0xff]
        %v1142 = vld [vmem:[#allocation3 + $0x2d] sm:$0xff]
        %v1143 = vld [vmem:[#allocation3 + $0x45] sm:$0xff]
        %v1144 = vld [vmem:[#allocation3 + $0x4d] sm:$0xff]
        %v1145 = vld [vmem:[#allocation3 + $0x65] sm:$0xff]
        %v1146 = vld [vmem:[#allocation3 + $0x6d] sm:$0xff]
        %v1147 = vmul.f32 %v1139, 0.26601171
        %v1148 = vmul.f32 %v1140, 0.26601171
        %v1149 = vmul.f32 %v1141, 0.26601171
        %v1150 = vmul.f32 %v1142, 0.26601171
        %v1151 = vmul.f32 %v1143, 0.26601171
        %v1152 = vmul.f32 %v1144, 0.26601171
        %v1153 = vmul.f32 %v1145, 0.26601171
        %v1154 = vmul.f32 %v1146, 0.26601171
        %v1155 = vadd.f32 %v1131, %v1147
        %v1156 = vadd.f32 %v1132, %v1148
        %v1157 = vadd.f32 %v1133, %v1149
        %v1158 = vadd.f32 %v1134, %v1150
        %v1159 = vadd.f32 %v1135, %v1151
        %v1160 = vadd.f32 %v1136, %v1152
        %v1161 = vadd.f32 %v1137, %v1153
        %v1162 = vadd.f32 %v1138, %v1154
        %v1163 = vld [vmem:[#allocation3 + $0x6] sm:$0xff]
        %v1164 = vld [vmem:[#allocation3 + $0xe] sm:$0xff]
        %v1165 = vld [vmem:[#allocation3 + $0x26] sm:$0xff]
        %v1166 = vld [vmem:[#allocation3 + $0x2e] sm:$0xff]
        %v1167 = vld [vmem:[#allocation3 + $0x46] sm:$0xff]
        %v1168 = vld [vmem:[#allocation3 + $0x4e] sm:$0xff]
        %v1169 = vld [vmem:[#allocation3 + $0x66] sm:$0xff]
        %v1170 = vld [vmem:[#allocation3 + $0x6e] sm:$0xff]
        %v1171 = vmul.f32 %v1163, 0.21300554
        %v1172 = vmul.f32 %v1164, 0.21300554
        %v1173 = vmul.f32 %v1165, 0.21300554
        %v1174 = vmul.f32 %v1166, 0.21300554
        %v1175 = vmul.f32 %v1167, 0.21300554
        %v1176 = vmul.f32 %v1168, 0.21300554
        %v1177 = vmul.f32 %v1169, 0.21300554
        %v1178 = vmul.f32 %v1170, 0.21300554
        %v1179 = vadd.f32 %v1155, %v1171
        %v1180 = vadd.f32 %v1156, %v1172
        %v1181 = vadd.f32 %v1157, %v1173
        %v1182 = vadd.f32 %v1158, %v1174
        %v1183 = vadd.f32 %v1159, %v1175
        %v1184 = vadd.f32 %v1160, %v1176
        %v1185 = vadd.f32 %v1161, %v1177
        %v1186 = vadd.f32 %v1162, %v1178
        %v1187 = vld [vmem:[#allocation3 + $0x7] sm:$0xff]
        %v1188 = vld [vmem:[#allocation3 + $0xf] sm:$0xff]
        %v1189 = vld [vmem:[#allocation3 + $0x27] sm:$0xff]
        %v1190 = vld [vmem:[#allocation3 + $0x2f] sm:$0xff]
        %v1191 = vld [vmem:[#allocation3 + $0x47] sm:$0xff]
        %v1192 = vld [vmem:[#allocation3 + $0x4f] sm:$0xff]
        %v1193 = vld [vmem:[#allocation3 + $0x67] sm:$0xff]
        %v1194 = vld [vmem:[#allocation3 + $0x6f] sm:$0xff]
        %v1195 = vmul.f32 %v1187, 0.10936069
        %v1196 = vmul.f32 %v1188, 0.10936069
        %v1197 = vmul.f32 %v1189, 0.10936069
        %v1198 = vmul.f32 %v1190, 0.10936069
        %v1199 = vmul.f32 %v1191, 0.10936069
        %v1200 = vmul.f32 %v1192, 0.10936069
        %v1201 = vmul.f32 %v1193, 0.10936069
        %v1202 = vmul.f32 %v1194, 0.10936069
        %v1203 = vadd.f32 %v1179, %v1195
        %v1204 = vadd.f32 %v1180, %v1196
        %v1205 = vadd.f32 %v1181, %v1197
        %v1206 = vadd.f32 %v1182, %v1198
        %v1207 = vadd.f32 %v1183, %v1199
        %v1208 = vadd.f32 %v1184, %v1200
        %v1209 = vadd.f32 %v1185, %v1201
        %v1210 = vadd.f32 %v1186, %v1202
        %v1211 = vld [vmem:[#allocation3 + $0x10] sm:$0xff]
        %v1212 = vld [vmem:[#allocation3 + $0x30] sm:$0xff]
        %v1213 = vld [vmem:[#allocation3 + $0x50] sm:$0xff]
        %v1214 = vld [vmem:[#allocation3 + $0x70] sm:$0xff]
        %v1215 = vmul.f32 %v1028, 0.036000773
        %v1216 = vmul.f32 %v1211, 0.036000773
        %v1217 = vmul.f32 %v1030, 0.036000773
        %v1218 = vmul.f32 %v1212, 0.036000773
        %v1219 = vmul.f32 %v1032, 0.036000773
        %v1220 = vmul.f32 %v1213, 0.036000773
        %v1221 = vmul.f32 %v1034, 0.036000773
        %v1222 = vmul.f32 %v1214, 0.036000773
        %v1223 = vadd.f32 %v1203, %v1215
        %v1224 = vadd.f32 %v1204, %v1216
        %v1225 = vadd.f32 %v1205, %v1217
        %v1226 = vadd.f32 %v1206, %v1218
        %v1227 = vadd.f32 %v1207, %v1219
        %v1228 = vadd.f32 %v1208, %v1220
        %v1229 = vadd.f32 %v1209, %v1221
        %v1230 = vadd.f32 %v1210, %v1222
        %v1231 = vld [vmem:[#allocation3 + $0x11] sm:$0xff]
        %v1232 = vld [vmem:[#allocation3 + $0x31] sm:$0xff]
        %v1233 = vld [vmem:[#allocation3 + $0x51] sm:$0xff]
        %v1234 = vld [vmem:[#allocation3 + $0x71] sm:$0xff]
        %v1235 = vmul.f32 %v1231, 0.007598758
        %v1236 = vmul.f32 %v1232, 0.007598758
        %v1237 = vmul.f32 %v1233, 0.007598758
        %v1238 = vmul.f32 %v1234, 0.007598758
        %v1239 = vadd.f32 %v1223, %v1052
        %v1240 = vadd.f32 %v1224, %v1235
        %v1241 = vadd.f32 %v1225, %v1054
        %v1242 = vadd.f32 %v1226, %v1236
        %v1243 = vadd.f32 %v1227, %v1056
        %v1244 = vadd.f32 %v1228, %v1237
        %v1245 = vadd.f32 %v1229, %v1058
        %v1246 = vadd.f32 %v1230, %v1238
        %v1247 = vld [vmem:[#allocation3 + $0x12] sm:$0xff]
        %v1248 = vld [vmem:[#allocation3 + $0x32] sm:$0xff]
        %v1249 = vld [vmem:[#allocation3 + $0x52] sm:$0xff]
        %v1250 = vld [vmem:[#allocation3 + $0x72] sm:$0xff]
        %v1251 = vmul.f32 %v1068, 0.0010283801
        %v1252 = vmul.f32 %v1247, 0.0010283801
        %v1253 = vmul.f32 %v1070, 0.0010283801
        %v1254 = vmul.f32 %v1248, 0.0010283801
        %v1255 = vmul.f32 %v1072, 0.0010283801
        %v1256 = vmul.f32 %v1249, 0.0010283801
        %v1257 = vmul.f32 %v1074, 0.0010283801
        %v1258 = vmul.f32 %v1250, 0.0010283801
        %v1259 = vadd.f32 %v1239, %v1251
        %v1260 = vadd.f32 %v1240, %v1252
        %v1261 = vadd.f32 %v1241, %v1253
        %v1262 = vadd.f32 %v1242, %v1254
        %v1263 = vadd.f32 %v1243, %v1255
        %v1264 = vadd.f32 %v1244, %v1256
        %v1265 = vadd.f32 %v1245, %v1257
        %v1266 = vadd.f32 %v1246, %v1258
        %v1267 = vld [vmem:[%s160] sm:$0xff]
        %v1268 = vld [vmem:[%s160 + $0x8] sm:$0xff]
        %v1269 = vld [vmem:[%s160 + $0x10] sm:$0xff]
        %v1270 = vld [vmem:[%s160 + $0x18] sm:$0x3]
        %v1271 = vld [vmem:[%s160 + $0x20] sm:$0xff]
        %v1272 = vld [vmem:[%s160 + $0x28] sm:$0xff]
        %v1273 = vld [vmem:[%s160 + $0x30] sm:$0xff]
        %v1274 = vld [vmem:[%s160 + $0x38] sm:$0x3]
        %v1275 = vld [vmem:[%s160 + $0x40] sm:$0xff]
        %v1276 = vld [vmem:[%s160 + $0x48] sm:$0xff]
        %v1277 = vld [vmem:[%s160 + $0x50] sm:$0xff]
        %v1278 = vld [vmem:[%s160 + $0x58] sm:$0x3]
        %v1279 = vld [vmem:[%s160 + $0x60] sm:$0xff]
        %v1280 = vld [vmem:[%s160 + $0x68] sm:$0xff]
        %v1281 = vld [vmem:[%s160 + $0x70] sm:$0xff]
        %v1282 = vld [vmem:[%s160 + $0x78] sm:$0x3]
        %v1283 = vmul.f32 %v1267, 0.0010283801
        %v1284 = vmul.f32 %v1268, 0.0010283801
        %v1285 = vmul.f32 %v1269, 0.0010283801
        %v1286 = vmul.f32 %v1270, 0.0010283801
        %v1287 = vmul.f32 %v1271, 0.0010283801
        %v1288 = vmul.f32 %v1272, 0.0010283801
        %v1289 = vmul.f32 %v1273, 0.0010283801
        %v1290 = vmul.f32 %v1274, 0.0010283801
        %v1291 = vmul.f32 %v1275, 0.0010283801
        %v1292 = vmul.f32 %v1276, 0.0010283801
        %v1293 = vmul.f32 %v1277, 0.0010283801
        %v1294 = vmul.f32 %v1278, 0.0010283801
        %v1295 = vmul.f32 %v1279, 0.0010283801
        %v1296 = vmul.f32 %v1280, 0.0010283801
        %v1297 = vmul.f32 %v1281, 0.0010283801
        %v1298 = vmul.f32 %v1282, 0.0010283801
        %v1299 = vmul.f32 %v1267, 0.007598758
        %v1300 = vmul.f32 %v1268, 0.007598758
        %v1301 = vmul.f32 %v1269, 0.007598758
        %v1302 = vmul.f32 %v1270, 0.007598758
        %v1303 = vmul.f32 %v1271, 0.007598758
        %v1304 = vmul.f32 %v1272, 0.007598758
        %v1305 = vmul.f32 %v1273, 0.007598758
        %v1306 = vmul.f32 %v1274, 0.007598758
        %v1307 = vmul.f32 %v1275, 0.007598758
        %v1308 = vmul.f32 %v1276, 0.007598758
        %v1309 = vmul.f32 %v1277, 0.007598758
        %v1310 = vmul.f32 %v1278, 0.007598758
        %v1311 = vmul.f32 %v1279, 0.007598758
        %v1312 = vmul.f32 %v1280, 0.007598758
        %v1313 = vmul.f32 %v1281, 0.007598758
        %v1314 = vmul.f32 %v1282, 0.007598758
        %1331 = vrot.lane.b32.xlu0 %v1299, 127
        %v1332 = vpop.permute.xlu0 %1331
        %1333 = vrot.lane.b32.xlu0 %v1300, 127
        %v1334 = vpop.permute.xlu0 %1333
        %1335 = vrot.lane.b32.xlu0 %v1301, 127
        %v1336 = vpop.permute.xlu0 %1335
        %1337 = vrot.lane.b32.xlu0 %v1302, 127
        %v1338 = vpop.permute.xlu0 %1337
        %1339 = vrot.lane.b32.xlu0 %v1303, 127
        %v1340 = vpop.permute.xlu0 %1339
        %1341 = vrot.lane.b32.xlu0 %v1304, 127
        %v1342 = vpop.permute.xlu0 %1341
        %1343 = vrot.lane.b32.xlu0 %v1305, 127
        %v1344 = vpop.permute.xlu0 %1343
        %1345 = vrot.lane.b32.xlu0 %v1306, 127
        %v1346 = vpop.permute.xlu0 %1345
        %1347 = vrot.lane.b32.xlu0 %v1307, 127
        %v1348 = vpop.permute.xlu0 %1347
        %1349 = vrot.lane.b32.xlu0 %v1308, 127
        %v1350 = vpop.permute.xlu0 %1349
        %1351 = vrot.lane.b32.xlu0 %v1309, 127
        %v1352 = vpop.permute.xlu0 %1351
        %1353 = vrot.lane.b32.xlu0 %v1310, 127
        %v1354 = vpop.permute.xlu0 %1353
        %1355 = vrot.lane.b32.xlu0 %v1311, 127
        %v1356 = vpop.permute.xlu0 %1355
        %1357 = vrot.lane.b32.xlu0 %v1312, 127
        %v1358 = vpop.permute.xlu0 %1357
        %1359 = vrot.lane.b32.xlu0 %v1313, 127
        %v1360 = vpop.permute.xlu0 %1359
        %1361 = vrot.lane.b32.xlu0 %v1314, 127
        %v1362 = vpop.permute.xlu0 %1361
        %v1379 = vadd.f32 %v1283, %v1332
        %v1380 = vadd.f32 %v1284, %v1334
        %v1381 = vadd.f32 %v1285, %v1336
        %v1382 = vadd.f32 %v1286, %v1338
        %v1383 = vadd.f32 %v1287, %v1340
        %v1384 = vadd.f32 %v1288, %v1342
        %v1385 = vadd.f32 %v1289, %v1344
        %v1386 = vadd.f32 %v1290, %v1346
        %v1387 = vadd.f32 %v1291, %v1348
        %v1388 = vadd.f32 %v1292, %v1350
        %v1389 = vadd.f32 %v1293, %v1352
        %v1390 = vadd.f32 %v1294, %v1354
        %v1391 = vadd.f32 %v1295, %v1356
        %v1392 = vadd.f32 %v1296, %v1358
        %v1393 = vadd.f32 %v1297, %v1360
        %v1394 = vadd.f32 %v1298, %v1362
        %v1395 = vmul.f32 %v1267, 0.036000773
        %v1396 = vmul.f32 %v1268, 0.036000773
        %v1397 = vmul.f32 %v1269, 0.036000773
        %v1398 = vmul.f32 %v1270, 0.036000773
        %v1399 = vmul.f32 %v1271, 0.036000773
        %v1400 = vmul.f32 %v1272, 0.036000773
        %v1401 = vmul.f32 %v1273, 0.036000773
        %v1402 = vmul.f32 %v1274, 0.036000773
        %v1403 = vmul.f32 %v1275, 0.036000773
        %v1404 = vmul.f32 %v1276, 0.036000773
        %v1405 = vmul.f32 %v1277, 0.036000773
        %v1406 = vmul.f32 %v1278, 0.036000773
        %v1407 = vmul.f32 %v1279, 0.036000773
        %v1408 = vmul.f32 %v1280, 0.036000773
        %v1409 = vmul.f32 %v1281, 0.036000773
        %v1410 = vmul.f32 %v1282, 0.036000773
        %1427 = vrot.lane.b32.xlu0 %v1395, 126
        %v1428 = vpop.permute.xlu0 %1427
        %1429 = vrot.lane.b32.xlu0 %v1396, 126
        %v1430 = vpop.permute.xlu0 %1429
        %1431 = vrot.lane.b32.xlu0 %v1397, 126
        %v1432 = vpop.permute.xlu0 %1431
        %1433 = vrot.lane.b32.xlu0 %v1398, 126
        %v1434 = vpop.permute.xlu0 %1433
        %1435 = vrot.lane.b32.xlu0 %v1399, 126
        %v1436 = vpop.permute.xlu0 %1435
        %1437 = vrot.lane.b32.xlu0 %v1400, 126
        %v1438 = vpop.permute.xlu0 %1437
        %1439 = vrot.lane.b32.xlu0 %v1401, 126
        %v1440 = vpop.permute.xlu0 %1439
        %1441 = vrot.lane.b32.xlu0 %v1402, 126
        %v1442 = vpop.permute.xlu0 %1441
        %1443 = vrot.lane.b32.xlu0 %v1403, 126
        %v1444 = vpop.permute.xlu0 %1443
        %1445 = vrot.lane.b32.xlu0 %v1404, 126
        %v1446 = vpop.permute.xlu0 %1445
        %1447 = vrot.lane.b32.xlu0 %v1405, 126
        %v1448 = vpop.permute.xlu0 %1447
        %1449 = vrot.lane.b32.xlu0 %v1406, 126
        %v1450 = vpop.permute.xlu0 %1449
        %1451 = vrot.lane.b32.xlu0 %v1407, 126
        %v1452 = vpop.permute.xlu0 %1451
        %1453 = vrot.lane.b32.xlu0 %v1408, 126
        %v1454 = vpop.permute.xlu0 %1453
        %1455 = vrot.lane.b32.xlu0 %v1409, 126
        %v1456 = vpop.permute.xlu0 %1455
        %1457 = vrot.lane.b32.xlu0 %v1410, 126
        %v1458 = vpop.permute.xlu0 %1457
        %v1475 = vadd.f32 %v1379, %v1428
        %v1476 = vadd.f32 %v1380, %v1430
        %v1477 = vadd.f32 %v1381, %v1432
        %v1478 = vadd.f32 %v1382, %v1434
        %v1479 = vadd.f32 %v1383, %v1436
        %v1480 = vadd.f32 %v1384, %v1438
        %v1481 = vadd.f32 %v1385, %v1440
        %v1482 = vadd.f32 %v1386, %v1442
        %v1483 = vadd.f32 %v1387, %v1444
        %v1484 = vadd.f32 %v1388, %v1446
        %v1485 = vadd.f32 %v1389, %v1448
        %v1486 = vadd.f32 %v1390, %v1450
        %v1487 = vadd.f32 %v1391, %v1452
        %v1488 = vadd.f32 %v1392, %v1454
        %v1489 = vadd.f32 %v1393, %v1456
        %v1490 = vadd.f32 %v1394, %v1458
        %v1491 = vmul.f32 %v1267, 0.10936069
        %v1492 = vmul.f32 %v1268, 0.10936069
        %v1493 = vmul.f32 %v1269, 0.10936069
        %v1494 = vmul.f32 %v1270, 0.10936069
        %v1495 = vmul.f32 %v1271, 0.10936069
        %v1496 = vmul.f32 %v1272, 0.10936069
        %v1497 = vmul.f32 %v1273, 0.10936069
        %v1498 = vmul.f32 %v1274, 0.10936069
        %v1499 = vmul.f32 %v1275, 0.10936069
        %v1500 = vmul.f32 %v1276, 0.10936069
        %v1501 = vmul.f32 %v1277, 0.10936069
        %v1502 = vmul.f32 %v1278, 0.10936069
        %v1503 = vmul.f32 %v1279, 0.10936069
        %v1504 = vmul.f32 %v1280, 0.10936069
        %v1505 = vmul.f32 %v1281, 0.10936069
        %v1506 = vmul.f32 %v1282, 0.10936069
        %1523 = vrot.lane.b32.xlu0 %v1491, 125
        %v1524 = vpop.permute.xlu0 %1523
        %1525 = vrot.lane.b32.xlu0 %v1492, 125
        %v1526 = vpop.permute.xlu0 %1525
        %1527 = vrot.lane.b32.xlu0 %v1493, 125
        %v1528 = vpop.permute.xlu0 %1527
        %1529 = vrot.lane.b32.xlu0 %v1494, 125
        %v1530 = vpop.permute.xlu0 %1529
        %1531 = vrot.lane.b32.xlu0 %v1495, 125
        %v1532 = vpop.permute.xlu0 %1531
        %1533 = vrot.lane.b32.xlu0 %v1496, 125
        %v1534 = vpop.permute.xlu0 %1533
        %1535 = vrot.lane.b32.xlu0 %v1497, 125
        %v1536 = vpop.permute.xlu0 %1535
        %1537 = vrot.lane.b32.xlu0 %v1498, 125
        %v1538 = vpop.permute.xlu0 %1537
        %1539 = vrot.lane.b32.xlu0 %v1499, 125
        %v1540 = vpop.permute.xlu0 %1539
        %1541 = vrot.lane.b32.xlu0 %v1500, 125
        %v1542 = vpop.permute.xlu0 %1541
        %1543 = vrot.lane.b32.xlu0 %v1501, 125
        %v1544 = vpop.permute.xlu0 %1543
        %1545 = vrot.lane.b32.xlu0 %v1502, 125
        %v1546 = vpop.permute.xlu0 %1545
        %1547 = vrot.lane.b32.xlu0 %v1503, 125
        %v1548 = vpop.permute.xlu0 %1547
        %1549 = vrot.lane.b32.xlu0 %v1504, 125
        %v1550 = vpop.permute.xlu0 %1549
        %1551 = vrot.lane.b32.xlu0 %v1505, 125
        %v1552 = vpop.permute.xlu0 %1551
        %1553 = vrot.lane.b32.xlu0 %v1506, 125
        %v1554 = vpop.permute.xlu0 %1553
        %v1571 = vadd.f32 %v1475, %v1524
        %v1572 = vadd.f32 %v1476, %v1526
        %v1573 = vadd.f32 %v1477, %v1528
        %v1574 = vadd.f32 %v1478, %v1530
        %v1575 = vadd.f32 %v1479, %v1532
        %v1576 = vadd.f32 %v1480, %v1534
        %v1577 = vadd.f32 %v1481, %v1536
        %v1578 = vadd.f32 %v1482, %v1538
        %v1579 = vadd.f32 %v1483, %v1540
        %v1580 = vadd.f32 %v1484, %v1542
        %v1581 = vadd.f32 %v1485, %v1544
        %v1582 = vadd.f32 %v1486, %v1546
        %v1583 = vadd.f32 %v1487, %v1548
        %v1584 = vadd.f32 %v1488, %v1550
        %v1585 = vadd.f32 %v1489, %v1552
        %v1586 = vadd.f32 %v1490, %v1554
        %v1587 = vmul.f32 %v1267, 0.21300554
        %v1588 = vmul.f32 %v1268, 0.21300554
        %v1589 = vmul.f32 %v1269, 0.21300554
        %v1590 = vmul.f32 %v1270, 0.21300554
        %v1591 = vmul.f32 %v1271, 0.21300554
        %v1592 = vmul.f32 %v1272, 0.21300554
        %v1593 = vmul.f32 %v1273, 0.21300554
        %v1594 = vmul.f32 %v1274, 0.21300554
        %v1595 = vmul.f32 %v1275, 0.21300554
        %v1596 = vmul.f32 %v1276, 0.21300554
        %v1597 = vmul.f32 %v1277, 0.21300554
        %v1598 = vmul.f32 %v1278, 0.21300554
        %v1599 = vmul.f32 %v1279, 0.21300554
        %v1600 = vmul.f32 %v1280, 0.21300554
        %v1601 = vmul.f32 %v1281, 0.21300554
        %v1602 = vmul.f32 %v1282, 0.21300554
        %1619 = vrot.lane.b32.xlu0 %v1587, 124
        %v1620 = vpop.permute.xlu0 %1619
        %1621 = vrot.lane.b32.xlu0 %v1588, 124
        %v1622 = vpop.permute.xlu0 %1621
        %1623 = vrot.lane.b32.xlu0 %v1589, 124
        %v1624 = vpop.permute.xlu0 %1623
        %1625 = vrot.lane.b32.xlu0 %v1590, 124
        %v1626 = vpop.permute.xlu0 %1625
        %1627 = vrot.lane.b32.xlu0 %v1591, 124
        %v1628 = vpop.permute.xlu0 %1627
        %1629 = vrot.lane.b32.xlu0 %v1592, 124
        %v1630 = vpop.permute.xlu0 %1629
        %1631 = vrot.lane.b32.xlu0 %v1593, 124
        %v1632 = vpop.permute.xlu0 %1631
        %1633 = vrot.lane.b32.xlu0 %v1594, 124
        %v1634 = vpop.permute.xlu0 %1633
        %1635 = vrot.lane.b32.xlu0 %v1595, 124
        %v1636 = vpop.permute.xlu0 %1635
        %1637 = vrot.lane.b32.xlu0 %v1596, 124
        %v1638 = vpop.permute.xlu0 %1637
        %1639 = vrot.lane.b32.xlu0 %v1597, 124
        %v1640 = vpop.permute.xlu0 %1639
        %1641 = vrot.lane.b32.xlu0 %v1598, 124
        %v1642 = vpop.permute.xlu0 %1641
        %1643 = vrot.lane.b32.xlu0 %v1599, 124
        %v1644 = vpop.permute.xlu0 %1643
        %1645 = vrot.lane.b32.xlu0 %v1600, 124
        %v1646 = vpop.permute.xlu0 %1645
        %1647 = vrot.lane.b32.xlu0 %v1601, 124
        %v1648 = vpop.permute.xlu0 %1647
        %1649 = vrot.lane.b32.xlu0 %v1602, 124
        %v1650 = vpop.permute.xlu0 %1649
        %v1667 = vadd.f32 %v1571, %v1620
        %v1668 = vadd.f32 %v1572, %v1622
        %v1669 = vadd.f32 %v1573, %v1624
        %v1670 = vadd.f32 %v1574, %v1626
        %v1671 = vadd.f32 %v1575, %v1628
        %v1672 = vadd.f32 %v1576, %v1630
        %v1673 = vadd.f32 %v1577, %v1632
        %v1674 = vadd.f32 %v1578, %v1634
        %v1675 = vadd.f32 %v1579, %v1636
        %v1676 = vadd.f32 %v1580, %v1638
        %v1677 = vadd.f32 %v1581, %v1640
        %v1678 = vadd.f32 %v1582, %v1642
        %v1679 = vadd.f32 %v1583, %v1644
        %v1680 = vadd.f32 %v1584, %v1646
        %v1681 = vadd.f32 %v1585, %v1648
        %v1682 = vadd.f32 %v1586, %v1650
        %v1683 = vmul.f32 %v1267, 0.26601171
        %v1684 = vmul.f32 %v1268, 0.26601171
        %v1685 = vmul.f32 %v1269, 0.26601171
        %v1686 = vmul.f32 %v1270, 0.26601171
        %v1687 = vmul.f32 %v1271, 0.26601171
        %v1688 = vmul.f32 %v1272, 0.26601171
        %v1689 = vmul.f32 %v1273, 0.26601171
        %v1690 = vmul.f32 %v1274, 0.26601171
        %v1691 = vmul.f32 %v1275, 0.26601171
        %v1692 = vmul.f32 %v1276, 0.26601171
        %v1693 = vmul.f32 %v1277, 0.26601171
        %v1694 = vmul.f32 %v1278, 0.26601171
        %v1695 = vmul.f32 %v1279, 0.26601171
        %v1696 = vmul.f32 %v1280, 0.26601171
        %v1697 = vmul.f32 %v1281, 0.26601171
        %v1698 = vmul.f32 %v1282, 0.26601171
        %1715 = vrot.lane.b32.xlu0 %v1683, 123
        %v1716 = vpop.permute.xlu0 %1715
        %1717 = vrot.lane.b32.xlu0 %v1684, 123
        %v1718 = vpop.permute.xlu0 %1717
        %1719 = vrot.lane.b32.xlu0 %v1685, 123
        %v1720 = vpop.permute.xlu0 %1719
        %1721 = vrot.lane.b32.xlu0 %v1686, 123
        %v1722 = vpop.permute.xlu0 %1721
        %1723 = vrot.lane.b32.xlu0 %v1687, 123
        %v1724 = vpop.permute.xlu0 %1723
        %1725 = vrot.lane.b32.xlu0 %v1688, 123
        %v1726 = vpop.permute.xlu0 %1725
        %1727 = vrot.lane.b32.xlu0 %v1689, 123
        %v1728 = vpop.permute.xlu0 %1727
        %1729 = vrot.lane.b32.xlu0 %v1690, 123
        %v1730 = vpop.permute.xlu0 %1729
        %1731 = vrot.lane.b32.xlu0 %v1691, 123
        %v1732 = vpop.permute.xlu0 %1731
        %1733 = vrot.lane.b32.xlu0 %v1692, 123
        %v1734 = vpop.permute.xlu0 %1733
        %1735 = vrot.lane.b32.xlu0 %v1693, 123
        %v1736 = vpop.permute.xlu0 %1735
        %1737 = vrot.lane.b32.xlu0 %v1694, 123
        %v1738 = vpop.permute.xlu0 %1737
        %1739 = vrot.lane.b32.xlu0 %v1695, 123
        %v1740 = vpop.permute.xlu0 %1739
        %1741 = vrot.lane.b32.xlu0 %v1696, 123
        %v1742 = vpop.permute.xlu0 %1741
        %1743 = vrot.lane.b32.xlu0 %v1697, 123
        %v1744 = vpop.permute.xlu0 %1743
        %1745 = vrot.lane.b32.xlu0 %v1698, 123
        %v1746 = vpop.permute.xlu0 %1745
        %v1763 = vadd.f32 %v1667, %v1716
        %v1764 = vadd.f32 %v1668, %v1718
        %v1765 = vadd.f32 %v1669, %v1720
        %v1766 = vadd.f32 %v1670, %v1722
        %v1767 = vadd.f32 %v1671, %v1724
        %v1768 = vadd.f32 %v1672, %v1726
        %v1769 = vadd.f32 %v1673, %v1728
        %v1770 = vadd.f32 %v1674, %v1730
        %v1771 = vadd.f32 %v1675, %v1732
        %v1772 = vadd.f32 %v1676, %v1734
        %v1773 = vadd.f32 %v1677, %v1736
        %v1774 = vadd.f32 %v1678, %v1738
        %v1775 = vadd.f32 %v1679, %v1740
        %v1776 = vadd.f32 %v1680, %v1742
        %v1777 = vadd.f32 %v1681, %v1744
        %v1778 = vadd.f32 %v1682, %v1746
        %1779 = vrot.lane.b32.xlu0 %v1587, 122
        %v1780 = vpop.permute.xlu0 %1779
        %1781 = vrot.lane.b32.xlu0 %v1588, 122
        %v1782 = vpop.permute.xlu0 %1781
        %1783 = vrot.lane.b32.xlu0 %v1589, 122
        %v1784 = vpop.permute.xlu0 %1783
        %1785 = vrot.lane.b32.xlu0 %v1590, 122
        %v1786 = vpop.permute.xlu0 %1785
        %1787 = vrot.lane.b32.xlu0 %v1591, 122
        %v1788 = vpop.permute.xlu0 %1787
        %1789 = vrot.lane.b32.xlu0 %v1592, 122
        %v1790 = vpop.permute.xlu0 %1789
        %1791 = vrot.lane.b32.xlu0 %v1593, 122
        %v1792 = vpop.permute.xlu0 %1791
        %1793 = vrot.lane.b32.xlu0 %v1594, 122
        %v1794 = vpop.permute.xlu0 %1793
        %1795 = vrot.lane.b32.xlu0 %v1595, 122
        %v1796 = vpop.permute.xlu0 %1795
        %1797 = vrot.lane.b32.xlu0 %v1596, 122
        %v1798 = vpop.permute.xlu0 %1797
        %1799 = vrot.lane.b32.xlu0 %v1597, 122
        %v1800 = vpop.permute.xlu0 %1799
        %1801 = vrot.lane.b32.xlu0 %v1598, 122
        %v1802 = vpop.permute.xlu0 %1801
        %1803 = vrot.lane.b32.xlu0 %v1599, 122
        %v1804 = vpop.permute.xlu0 %1803
        %1805 = vrot.lane.b32.xlu0 %v1600, 122
        %v1806 = vpop.permute.xlu0 %1805
        %1807 = vrot.lane.b32.xlu0 %v1601, 122
        %v1808 = vpop.permute.xlu0 %1807
        %1809 = vrot.lane.b32.xlu0 %v1602, 122
        %v1810 = vpop.permute.xlu0 %1809
        %v1827 = vadd.f32 %v1763, %v1780
        %v1828 = vadd.f32 %v1764, %v1782
        %v1829 = vadd.f32 %v1765, %v1784
        %v1830 = vadd.f32 %v1766, %v1786
        %v1831 = vadd.f32 %v1767, %v1788
        %v1832 = vadd.f32 %v1768, %v1790
        %v1833 = vadd.f32 %v1769, %v1792
        %v1834 = vadd.f32 %v1770, %v1794
        %v1835 = vadd.f32 %v1771, %v1796
        %v1836 = vadd.f32 %v1772, %v1798
        %v1837 = vadd.f32 %v1773, %v1800
        %v1838 = vadd.f32 %v1774, %v1802
        %v1839 = vadd.f32 %v1775, %v1804
        %v1840 = vadd.f32 %v1776, %v1806
        %v1841 = vadd.f32 %v1777, %v1808
        %v1842 = vadd.f32 %v1778, %v1810
        %1843 = vrot.lane.b32.xlu0 %v1491, 121
        %v1844 = vpop.permute.xlu0 %1843
        %1845 = vrot.lane.b32.xlu0 %v1492, 121
        %v1846 = vpop.permute.xlu0 %1845
        %1847 = vrot.lane.b32.xlu0 %v1493, 121
        %v1848 = vpop.permute.xlu0 %1847
        %1849 = vrot.lane.b32.xlu0 %v1494, 121
        %v1850 = vpop.permute.xlu0 %1849
        %1851 = vrot.lane.b32.xlu0 %v1495, 121
        %v1852 = vpop.permute.xlu0 %1851
        %1853 = vrot.lane.b32.xlu0 %v1496, 121
        %v1854 = vpop.permute.xlu0 %1853
        %1855 = vrot.lane.b32.xlu0 %v1497, 121
        %v1856 = vpop.permute.xlu0 %1855
        %1857 = vrot.lane.b32.xlu0 %v1498, 121
        %v1858 = vpop.permute.xlu0 %1857
        %1859 = vrot.lane.b32.xlu0 %v1499, 121
        %v1860 = vpop.permute.xlu0 %1859
        %1861 = vrot.lane.b32.xlu0 %v1500, 121
        %v1862 = vpop.permute.xlu0 %1861
        %1863 = vrot.lane.b32.xlu0 %v1501, 121
        %v1864 = vpop.permute.xlu0 %1863
        %1865 = vrot.lane.b32.xlu0 %v1502, 121
        %v1866 = vpop.permute.xlu0 %1865
        %1867 = vrot.lane.b32.xlu0 %v1503, 121
        %v1868 = vpop.permute.xlu0 %1867
        %1869 = vrot.lane.b32.xlu0 %v1504, 121
        %v1870 = vpop.permute.xlu0 %1869
        %1871 = vrot.lane.b32.xlu0 %v1505, 121
        %v1872 = vpop.permute.xlu0 %1871
        %1873 = vrot.lane.b32.xlu0 %v1506, 121
        %v1874 = vpop.permute.xlu0 %1873
        %v1891 = vadd.f32 %v1827, %v1844
        %v1892 = vadd.f32 %v1828, %v1846
        %v1893 = vadd.f32 %v1829, %v1848
        %v1894 = vadd.f32 %v1830, %v1850
        %v1895 = vadd.f32 %v1831, %v1852
        %v1896 = vadd.f32 %v1832, %v1854
        %v1897 = vadd.f32 %v1833, %v1856
        %v1898 = vadd.f32 %v1834, %v1858
        %v1899 = vadd.f32 %v1835, %v1860
        %v1900 = vadd.f32 %v1836, %v1862
        %v1901 = vadd.f32 %v1837, %v1864
        %v1902 = vadd.f32 %v1838, %v1866
        %v1903 = vadd.f32 %v1839, %v1868
        %v1904 = vadd.f32 %v1840, %v1870
        %v1905 = vadd.f32 %v1841, %v1872
        %v1906 = vadd.f32 %v1842, %v1874
        %1907 = vrot.lane.b32.xlu0 %v1395, 120
        %v1908 = vpop.permute.xlu0 %1907
        %1909 = vrot.lane.b32.xlu0 %v1396, 120
        %v1910 = vpop.permute.xlu0 %1909
        %1911 = vrot.lane.b32.xlu0 %v1397, 120
        %v1912 = vpop.permute.xlu0 %1911
        %1913 = vrot.lane.b32.xlu0 %v1398, 120
        %v1914 = vpop.permute.xlu0 %1913
        %1915 = vrot.lane.b32.xlu0 %v1399, 120
        %v1916 = vpop.permute.xlu0 %1915
        %1917 = vrot.lane.b32.xlu0 %v1400, 120
        %v1918 = vpop.permute.xlu0 %1917
        %1919 = vrot.lane.b32.xlu0 %v1401, 120
        %v1920 = vpop.permute.xlu0 %1919
        %1921 = vrot.lane.b32.xlu0 %v1402, 120
        %v1922 = vpop.permute.xlu0 %1921
        %1923 = vrot.lane.b32.xlu0 %v1403, 120
        %v1924 = vpop.permute.xlu0 %1923
        %1925 = vrot.lane.b32.xlu0 %v1404, 120
        %v1926 = vpop.permute.xlu0 %1925
        %1927 = vrot.lane.b32.xlu0 %v1405, 120
        %v1928 = vpop.permute.xlu0 %1927
        %1929 = vrot.lane.b32.xlu0 %v1406, 120
        %v1930 = vpop.permute.xlu0 %1929
        %1931 = vrot.lane.b32.xlu0 %v1407, 120
        %v1932 = vpop.permute.xlu0 %1931
        %1933 = vrot.lane.b32.xlu0 %v1408, 120
        %v1934 = vpop.permute.xlu0 %1933
        %1935 = vrot.lane.b32.xlu0 %v1409, 120
        %v1936 = vpop.permute.xlu0 %1935
        %1937 = vrot.lane.b32.xlu0 %v1410, 120
        %v1938 = vpop.permute.xlu0 %1937
        %v1955 = vadd.f32 %v1891, %v1908
        %v1956 = vadd.f32 %v1892, %v1910
        %v1957 = vadd.f32 %v1893, %v1912
        %v1958 = vadd.f32 %v1894, %v1914
        %v1959 = vadd.f32 %v1895, %v1916
        %v1960 = vadd.f32 %v1896, %v1918
        %v1961 = vadd.f32 %v1897, %v1920
        %v1962 = vadd.f32 %v1898, %v1922
        %v1963 = vadd.f32 %v1899, %v1924
        %v1964 = vadd.f32 %v1900, %v1926
        %v1965 = vadd.f32 %v1901, %v1928
        %v1966 = vadd.f32 %v1902, %v1930
        %v1967 = vadd.f32 %v1903, %v1932
        %v1968 = vadd.f32 %v1904, %v1934
        %v1969 = vadd.f32 %v1905, %v1936
        %v1970 = vadd.f32 %v1906, %v1938
        %1971 = vrot.lane.b32.xlu0 %v1299, 119
        %v1972 = vpop.permute.xlu0 %1971
        %1973 = vrot.lane.b32.xlu0 %v1300, 119
        %v1974 = vpop.permute.xlu0 %1973
        %1975 = vrot.lane.b32.xlu0 %v1301, 119
        %v1976 = vpop.permute.xlu0 %1975
        %1977 = vrot.lane.b32.xlu0 %v1302, 119
        %v1978 = vpop.permute.xlu0 %1977
        %1979 = vrot.lane.b32.xlu0 %v1303, 119
        %v1980 = vpop.permute.xlu0 %1979
        %1981 = vrot.lane.b32.xlu0 %v1304, 119
        %v1982 = vpop.permute.xlu0 %1981
        %1983 = vrot.lane.b32.xlu0 %v1305, 119
        %v1984 = vpop.permute.xlu0 %1983
        %1985 = vrot.lane.b32.xlu0 %v1306, 119
        %v1986 = vpop.permute.xlu0 %1985
        %1987 = vrot.lane.b32.xlu0 %v1307, 119
        %v1988 = vpop.permute.xlu0 %1987
        %1989 = vrot.lane.b32.xlu0 %v1308, 119
        %v1990 = vpop.permute.xlu0 %1989
        %1991 = vrot.lane.b32.xlu0 %v1309, 119
        %v1992 = vpop.permute.xlu0 %1991
        %1993 = vrot.lane.b32.xlu0 %v1310, 119
        %v1994 = vpop.permute.xlu0 %1993
        %1995 = vrot.lane.b32.xlu0 %v1311, 119
        %v1996 = vpop.permute.xlu0 %1995
        %1997 = vrot.lane.b32.xlu0 %v1312, 119
        %v1998 = vpop.permute.xlu0 %1997
        %1999 = vrot.lane.b32.xlu0 %v1313, 119
        %v2000 = vpop.permute.xlu0 %1999
        %2001 = vrot.lane.b32.xlu0 %v1314, 119
        %v2002 = vpop.permute.xlu0 %2001
        %v2019 = vadd.f32 %v1955, %v1972
        %v2020 = vadd.f32 %v1956, %v1974
        %v2021 = vadd.f32 %v1957, %v1976
        %v2022 = vadd.f32 %v1958, %v1978
        %v2023 = vadd.f32 %v1959, %v1980
        %v2024 = vadd.f32 %v1960, %v1982
        %v2025 = vadd.f32 %v1961, %v1984
        %v2026 = vadd.f32 %v1962, %v1986
        %v2027 = vadd.f32 %v1963, %v1988
        %v2028 = vadd.f32 %v1964, %v1990
        %v2029 = vadd.f32 %v1965, %v1992
        %v2030 = vadd.f32 %v1966, %v1994
        %v2031 = vadd.f32 %v1967, %v1996
        %v2032 = vadd.f32 %v1968, %v1998
        %v2033 = vadd.f32 %v1969, %v2000
        %v2034 = vadd.f32 %v1970, %v2002
        %2051 = vrot.lane.b32.xlu0 %v1283, 118
        %v2052 = vpop.permute.xlu0 %2051
        %2053 = vrot.lane.b32.xlu0 %v1284, 118
        %v2054 = vpop.permute.xlu0 %2053
        %2055 = vrot.lane.b32.xlu0 %v1285, 118
        %v2056 = vpop.permute.xlu0 %2055
        %2057 = vrot.lane.b32.xlu0 %v1286, 118
        %v2058 = vpop.permute.xlu0 %2057
        %2059 = vrot.lane.b32.xlu0 %v1287, 118
        %v2060 = vpop.permute.xlu0 %2059
        %2061 = vrot.lane.b32.xlu0 %v1288, 118
        %v2062 = vpop.permute.xlu0 %2061
        %2063 = vrot.lane.b32.xlu0 %v1289, 118
        %v2064 = vpop.permute.xlu0 %2063
        %2065 = vrot.lane.b32.xlu0 %v1290, 118
        %v2066 = vpop.permute.xlu0 %2065
        %2067 = vrot.lane.b32.xlu0 %v1291, 118
        %v2068 = vpop.permute.xlu0 %2067
        %2069 = vrot.lane.b32.xlu0 %v1292, 118
        %v2070 = vpop.permute.xlu0 %2069
        %2071 = vrot.lane.b32.xlu0 %v1293, 118
        %v2072 = vpop.permute.xlu0 %2071
        %2073 = vrot.lane.b32.xlu0 %v1294, 118
        %v2074 = vpop.permute.xlu0 %2073
        %2075 = vrot.lane.b32.xlu0 %v1295, 118
        %v2076 = vpop.permute.xlu0 %2075
        %2077 = vrot.lane.b32.xlu0 %v1296, 118
        %v2078 = vpop.permute.xlu0 %2077
        %2079 = vrot.lane.b32.xlu0 %v1297, 118
        %v2080 = vpop.permute.xlu0 %2079
        %2081 = vrot.lane.b32.xlu0 %v1298, 118
        %v2082 = vpop.permute.xlu0 %2081
        %v2099 = vadd.f32 %v2019, %v2052
        %v2100 = vadd.f32 %v2020, %v2054
        %v2101 = vadd.f32 %v2021, %v2056
        %v2102 = vadd.f32 %v2022, %v2058
        %v2103 = vadd.f32 %v2023, %v2060
        %v2104 = vadd.f32 %v2024, %v2062
        %v2105 = vadd.f32 %v2025, %v2064
        %v2106 = vadd.f32 %v2026, %v2066
        %v2107 = vadd.f32 %v2027, %v2068
        %v2108 = vadd.f32 %v2028, %v2070
        %v2109 = vadd.f32 %v2029, %v2072
        %v2110 = vadd.f32 %v2030, %v2074
        %v2111 = vadd.f32 %v2031, %v2076
        %v2112 = vadd.f32 %v2032, %v2078
        %v2113 = vadd.f32 %v2033, %v2080
        %v2114 = vadd.f32 %v2034, %v2082
        %2115 = vst.msk [vmem:[#allocation3] sm:$0xff] %vm1009, %v2099
        %2116 = vst.msk [vmem:[#allocation3 + $0x8] sm:$0xff] %vm1009, %v2100
        %2117 = vst.msk [vmem:[#allocation3 + $0x10] sm:$0xff] %vm1009, %v2101
        %2118 = vst.msk [vmem:[#allocation3 + $0x18] sm:$0x3] %vm1013, %v2102
        %2119 = vst.msk [vmem:[#allocation3 + $0x20] sm:$0xff] %vm1009, %v2103
        %2120 = vst.msk [vmem:[#allocation3 + $0x28] sm:$0xff] %vm1009, %v2104
        %2121 = vst.msk [vmem:[#allocation3 + $0x30] sm:$0xff] %vm1009, %v2105
        %2122 = vst.msk [vmem:[#allocation3 + $0x38] sm:$0x3] %vm1013, %v2106
        %2123 = vst.msk [vmem:[#allocation3 + $0x40] sm:$0xff] %vm1009, %v2107
        %2124 = vst.msk [vmem:[#allocation3 + $0x48] sm:$0xff] %vm1009, %v2108
        %2125 = vst.msk [vmem:[#allocation3 + $0x50] sm:$0xff] %vm1009, %v2109
        %2126 = vst.msk [vmem:[#allocation3 + $0x58] sm:$0x3] %vm1013, %v2110
        %2127 = vst.msk [vmem:[#allocation3 + $0x60] sm:$0xff] %vm1009, %v2111
        %2128 = vst.msk [vmem:[#allocation3 + $0x68] sm:$0xff] %vm1009, %v2112
        %2129 = vst.msk [vmem:[#allocation3 + $0x70] sm:$0xff] %vm1009, %v2113
        %2130 = vst.msk [vmem:[#allocation3 + $0x78] sm:$0x3] %vm1013, %v2114
        %v2131 = vld [vmem:[#allocation3] sm:$0xff]
        %v2132 = vld [vmem:[#allocation3 + $0x8] sm:$0xff]
        %v2133 = vld [vmem:[#allocation3 + $0x20] sm:$0xff]
        %v2134 = vld [vmem:[#allocation3 + $0x28] sm:$0xff]
        %v2135 = vld [vmem:[#allocation3 + $0x40] sm:$0xff]
        %v2136 = vld [vmem:[#allocation3 + $0x48] sm:$0xff]
        %v2137 = vld [vmem:[#allocation3 + $0x60] sm:$0xff]
        %v2138 = vld [vmem:[#allocation3 + $0x68] sm:$0xff]
        %v2139 = vmul.f32 %v2131, 0.0010283801
        %v2140 = vmul.f32 %v2132, 0.0010283801
        %v2141 = vmul.f32 %v2133, 0.0010283801
        %v2142 = vmul.f32 %v2134, 0.0010283801
        %v2143 = vmul.f32 %v2135, 0.0010283801
        %v2144 = vmul.f32 %v2136, 0.0010283801
        %v2145 = vmul.f32 %v2137, 0.0010283801
        %v2146 = vmul.f32 %v2138, 0.0010283801
        %v2147 = vld [vmem:[#allocation3 + $0x1] sm:$0xff]
        %v2148 = vld [vmem:[#allocation3 + $0x9] sm:$0xff]
        %v2149 = vld [vmem:[#allocation3 + $0x21] sm:$0xff]
        %v2150 = vld [vmem:[#allocation3 + $0x29] sm:$0xff]
        %v2151 = vld [vmem:[#allocation3 + $0x41] sm:$0xff]
        %v2152 = vld [vmem:[#allocation3 + $0x49] sm:$0xff]
        %v2153 = vld [vmem:[#allocation3 + $0x61] sm:$0xff]
        %v2154 = vld [vmem:[#allocation3 + $0x69] sm:$0xff]
        %v2155 = vmul.f32 %v2147, 0.007598758
        %v2156 = vmul.f32 %v2148, 0.007598758
        %v2157 = vmul.f32 %v2149, 0.007598758
        %v2158 = vmul.f32 %v2150, 0.007598758
        %v2159 = vmul.f32 %v2151, 0.007598758
        %v2160 = vmul.f32 %v2152, 0.007598758
        %v2161 = vmul.f32 %v2153, 0.007598758
        %v2162 = vmul.f32 %v2154, 0.007598758
        %v2163 = vadd.f32 %v2139, %v2155
        %v2164 = vadd.f32 %v2140, %v2156
        %v2165 = vadd.f32 %v2141, %v2157
        %v2166 = vadd.f32 %v2142, %v2158
        %v2167 = vadd.f32 %v2143, %v2159
        %v2168 = vadd.f32 %v2144, %v2160
        %v2169 = vadd.f32 %v2145, %v2161
        %v2170 = vadd.f32 %v2146, %v2162
        %v2171 = vld [vmem:[#allocation3 + $0x2] sm:$0xff]
        %v2172 = vld [vmem:[#allocation3 + $0xa] sm:$0xff]
        %v2173 = vld [vmem:[#allocation3 + $0x22] sm:$0xff]
        %v2174 = vld [vmem:[#allocation3 + $0x2a] sm:$0xff]
        %v2175 = vld [vmem:[#allocation3 + $0x42] sm:$0xff]
        %v2176 = vld [vmem:[#allocation3 + $0x4a] sm:$0xff]
        %v2177 = vld [vmem:[#allocation3 + $0x62] sm:$0xff]
        %v2178 = vld [vmem:[#allocation3 + $0x6a] sm:$0xff]
        %v2179 = vmul.f32 %v2171, 0.036000773
        %v2180 = vmul.f32 %v2172, 0.036000773
        %v2181 = vmul.f32 %v2173, 0.036000773
        %v2182 = vmul.f32 %v2174, 0.036000773
        %v2183 = vmul.f32 %v2175, 0.036000773
        %v2184 = vmul.f32 %v2176, 0.036000773
        %v2185 = vmul.f32 %v2177, 0.036000773
        %v2186 = vmul.f32 %v2178, 0.036000773
        %v2187 = vadd.f32 %v2163, %v2179
        %v2188 = vadd.f32 %v2164, %v2180
        %v2189 = vadd.f32 %v2165, %v2181
        %v2190 = vadd.f32 %v2166, %v2182
        %v2191 = vadd.f32 %v2167, %v2183
        %v2192 = vadd.f32 %v2168, %v2184
        %v2193 = vadd.f32 %v2169, %v2185
        %v2194 = vadd.f32 %v2170, %v2186
        %v2195 = vld [vmem:[#allocation3 + $0x3] sm:$0xff]
        %v2196 = vld [vmem:[#allocation3 + $0xb] sm:$0xff]
        %v2197 = vld [vmem:[#allocation3 + $0x23] sm:$0xff]
        %v2198 = vld [vmem:[#allocation3 + $0x2b] sm:$0xff]
        %v2199 = vld [vmem:[#allocation3 + $0x43] sm:$0xff]
        %v2200 = vld [vmem:[#allocation3 + $0x4b] sm:$0xff]
        %v2201 = vld [vmem:[#allocation3 + $0x63] sm:$0xff]
        %v2202 = vld [vmem:[#allocation3 + $0x6b] sm:$0xff]
        %v2203 = vmul.f32 %v2195, 0.10936069
        %v2204 = vmul.f32 %v2196, 0.10936069
        %v2205 = vmul.f32 %v2197, 0.10936069
        %v2206 = vmul.f32 %v2198, 0.10936069
        %v2207 = vmul.f32 %v2199, 0.10936069
        %v2208 = vmul.f32 %v2200, 0.10936069
        %v2209 = vmul.f32 %v2201, 0.10936069
        %v2210 = vmul.f32 %v2202, 0.10936069
        %v2211 = vadd.f32 %v2187, %v2203
        %v2212 = vadd.f32 %v2188, %v2204
        %v2213 = vadd.f32 %v2189, %v2205
        %v2214 = vadd.f32 %v2190, %v2206
        %v2215 = vadd.f32 %v2191, %v2207
        %v2216 = vadd.f32 %v2192, %v2208
        %v2217 = vadd.f32 %v2193, %v2209
        %v2218 = vadd.f32 %v2194, %v2210
        %v2219 = vld [vmem:[#allocation3 + $0x4] sm:$0xff]
        %v2220 = vld [vmem:[#allocation3 + $0xc] sm:$0xff]
        %v2221 = vld [vmem:[#allocation3 + $0x24] sm:$0xff]
        %v2222 = vld [vmem:[#allocation3 + $0x2c] sm:$0xff]
        %v2223 = vld [vmem:[#allocation3 + $0x44] sm:$0xff]
        %v2224 = vld [vmem:[#allocation3 + $0x4c] sm:$0xff]
        %v2225 = vld [vmem:[#allocation3 + $0x64] sm:$0xff]
        %v2226 = vld [vmem:[#allocation3 + $0x6c] sm:$0xff]
        %v2227 = vmul.f32 %v2219, 0.21300554
        %v2228 = vmul.f32 %v2220, 0.21300554
        %v2229 = vmul.f32 %v2221, 0.21300554
        %v2230 = vmul.f32 %v2222, 0.21300554
        %v2231 = vmul.f32 %v2223, 0.21300554
        %v2232 = vmul.f32 %v2224, 0.21300554
        %v2233 = vmul.f32 %v2225, 0.21300554
        %v2234 = vmul.f32 %v2226, 0.21300554
        %v2235 = vadd.f32 %v2211, %v2227
        %v2236 = vadd.f32 %v2212, %v2228
        %v2237 = vadd.f32 %v2213, %v2229
        %v2238 = vadd.f32 %v2214, %v2230
        %v2239 = vadd.f32 %v2215, %v2231
        %v2240 = vadd.f32 %v2216, %v2232
        %v2241 = vadd.f32 %v2217, %v2233
        %v2242 = vadd.f32 %v2218, %v2234
        %v2243 = vld [vmem:[#allocation3 + $0x5] sm:$0xff]
        %v2244 = vld [vmem:[#allocation3 + $0xd] sm:$0xff]
        %v2245 = vld [vmem:[#allocation3 + $0x25] sm:$0xff]
        %v2246 = vld [vmem:[#allocation3 + $0x2d] sm:$0xff]
        %v2247 = vld [vmem:[#allocation3 + $0x45] sm:$0xff]
        %v2248 = vld [vmem:[#allocation3 + $0x4d] sm:$0xff]
        %v2249 = vld [vmem:[#allocation3 + $0x65] sm:$0xff]
        %v2250 = vld [vmem:[#allocation3 + $0x6d] sm:$0xff]
        %v2251 = vmul.f32 %v2243, 0.26601171
        %v2252 = vmul.f32 %v2244, 0.26601171
        %v2253 = vmul.f32 %v2245, 0.26601171
        %v2254 = vmul.f32 %v2246, 0.26601171
        %v2255 = vmul.f32 %v2247, 0.26601171
        %v2256 = vmul.f32 %v2248, 0.26601171
        %v2257 = vmul.f32 %v2249, 0.26601171
        %v2258 = vmul.f32 %v2250, 0.26601171
        %v2259 = vadd.f32 %v2235, %v2251
        %v2260 = vadd.f32 %v2236, %v2252
        %v2261 = vadd.f32 %v2237, %v2253
        %v2262 = vadd.f32 %v2238, %v2254
        %v2263 = vadd.f32 %v2239, %v2255
        %v2264 = vadd.f32 %v2240, %v2256
        %v2265 = vadd.f32 %v2241, %v2257
        %v2266 = vadd.f32 %v2242, %v2258
        %v2267 = vld [vmem:[#allocation3 + $0x6] sm:$0xff]
        %v2268 = vld [vmem:[#allocation3 + $0xe] sm:$0xff]
        %v2269 = vld [vmem:[#allocation3 + $0x26] sm:$0xff]
        %v2270 = vld [vmem:[#allocation3 + $0x2e] sm:$0xff]
        %v2271 = vld [vmem:[#allocation3 + $0x46] sm:$0xff]
        %v2272 = vld [vmem:[#allocation3 + $0x4e] sm:$0xff]
        %v2273 = vld [vmem:[#allocation3 + $0x66] sm:$0xff]
        %v2274 = vld [vmem:[#allocation3 + $0x6e] sm:$0xff]
        %v2275 = vmul.f32 %v2267, 0.21300554
        %v2276 = vmul.f32 %v2268, 0.21300554
        %v2277 = vmul.f32 %v2269, 0.21300554
        %v2278 = vmul.f32 %v2270, 0.21300554
        %v2279 = vmul.f32 %v2271, 0.21300554
        %v2280 = vmul.f32 %v2272, 0.21300554
        %v2281 = vmul.f32 %v2273, 0.21300554
        %v2282 = vmul.f32 %v2274, 0.21300554
        %v2283 = vadd.f32 %v2259, %v2275
        %v2284 = vadd.f32 %v2260, %v2276
        %v2285 = vadd.f32 %v2261, %v2277
        %v2286 = vadd.f32 %v2262, %v2278
        %v2287 = vadd.f32 %v2263, %v2279
        %v2288 = vadd.f32 %v2264, %v2280
        %v2289 = vadd.f32 %v2265, %v2281
        %v2290 = vadd.f32 %v2266, %v2282
        %v2291 = vld [vmem:[#allocation3 + $0x7] sm:$0xff]
        %v2292 = vld [vmem:[#allocation3 + $0xf] sm:$0xff]
        %v2293 = vld [vmem:[#allocation3 + $0x27] sm:$0xff]
        %v2294 = vld [vmem:[#allocation3 + $0x2f] sm:$0xff]
        %v2295 = vld [vmem:[#allocation3 + $0x47] sm:$0xff]
        %v2296 = vld [vmem:[#allocation3 + $0x4f] sm:$0xff]
        %v2297 = vld [vmem:[#allocation3 + $0x67] sm:$0xff]
        %v2298 = vld [vmem:[#allocation3 + $0x6f] sm:$0xff]
        %v2299 = vmul.f32 %v2291, 0.10936069
        %v2300 = vmul.f32 %v2292, 0.10936069
        %v2301 = vmul.f32 %v2293, 0.10936069
        %v2302 = vmul.f32 %v2294, 0.10936069
        %v2303 = vmul.f32 %v2295, 0.10936069
        %v2304 = vmul.f32 %v2296, 0.10936069
        %v2305 = vmul.f32 %v2297, 0.10936069
        %v2306 = vmul.f32 %v2298, 0.10936069
        %v2307 = vadd.f32 %v2283, %v2299
        %v2308 = vadd.f32 %v2284, %v2300
        %v2309 = vadd.f32 %v2285, %v2301
        %v2310 = vadd.f32 %v2286, %v2302
        %v2311 = vadd.f32 %v2287, %v2303
        %v2312 = vadd.f32 %v2288, %v2304
        %v2313 = vadd.f32 %v2289, %v2305
        %v2314 = vadd.f32 %v2290, %v2306
        %v2315 = vld [vmem:[#allocation3 + $0x10] sm:$0xff]
        %v2316 = vld [vmem:[#allocation3 + $0x30] sm:$0xff]
        %v2317 = vld [vmem:[#allocation3 + $0x50] sm:$0xff]
        %v2318 = vld [vmem:[#allocation3 + $0x70] sm:$0xff]
        %v2319 = vmul.f32 %v2132, 0.036000773
        %v2320 = vmul.f32 %v2315, 0.036000773
        %v2321 = vmul.f32 %v2134, 0.036000773
        %v2322 = vmul.f32 %v2316, 0.036000773
        %v2323 = vmul.f32 %v2136, 0.036000773
        %v2324 = vmul.f32 %v2317, 0.036000773
        %v2325 = vmul.f32 %v2138, 0.036000773
        %v2326 = vmul.f32 %v2318, 0.036000773
        %v2327 = vadd.f32 %v2307, %v2319
        %v2328 = vadd.f32 %v2308, %v2320
        %v2329 = vadd.f32 %v2309, %v2321
        %v2330 = vadd.f32 %v2310, %v2322
        %v2331 = vadd.f32 %v2311, %v2323
        %v2332 = vadd.f32 %v2312, %v2324
        %v2333 = vadd.f32 %v2313, %v2325
        %v2334 = vadd.f32 %v2314, %v2326
        %v2335 = vld [vmem:[#allocation3 + $0x11] sm:$0xff]
        %v2336 = vld [vmem:[#allocation3 + $0x31] sm:$0xff]
        %v2337 = vld [vmem:[#allocation3 + $0x51] sm:$0xff]
        %v2338 = vld [vmem:[#allocation3 + $0x71] sm:$0xff]
        %v2339 = vmul.f32 %v2335, 0.007598758
        %v2340 = vmul.f32 %v2336, 0.007598758
        %v2341 = vmul.f32 %v2337, 0.007598758
        %v2342 = vmul.f32 %v2338, 0.007598758
        %v2343 = vadd.f32 %v2327, %v2156
        %v2344 = vadd.f32 %v2328, %v2339
        %v2345 = vadd.f32 %v2329, %v2158
        %v2346 = vadd.f32 %v2330, %v2340
        %v2347 = vadd.f32 %v2331, %v2160
        %v2348 = vadd.f32 %v2332, %v2341
        %v2349 = vadd.f32 %v2333, %v2162
        %v2350 = vadd.f32 %v2334, %v2342
        %v2351 = vld [vmem:[#allocation3 + $0x12] sm:$0xff]
        %v2352 = vld [vmem:[#allocation3 + $0x32] sm:$0xff]
        %v2353 = vld [vmem:[#allocation3 + $0x52] sm:$0xff]
        %v2354 = vld [vmem:[#allocation3 + $0x72] sm:$0xff]
        %v2355 = vmul.f32 %v2172, 0.0010283801
        %v2356 = vmul.f32 %v2351, 0.0010283801
        %v2357 = vmul.f32 %v2174, 0.0010283801
        %v2358 = vmul.f32 %v2352, 0.0010283801
        %v2359 = vmul.f32 %v2176, 0.0010283801
        %v2360 = vmul.f32 %v2353, 0.0010283801
        %v2361 = vmul.f32 %v2178, 0.0010283801
        %v2362 = vmul.f32 %v2354, 0.0010283801
        %v2363 = vadd.f32 %v2343, %v2355
        %v2364 = vadd.f32 %v2344, %v2356
        %v2365 = vadd.f32 %v2345, %v2357
        %v2366 = vadd.f32 %v2346, %v2358
        %v2367 = vadd.f32 %v2347, %v2359
        %v2368 = vadd.f32 %v2348, %v2360
        %v2369 = vadd.f32 %v2349, %v2361
        %v2370 = vadd.f32 %v2350, %v2362
        %v2371 = vld [vmem:[%s155] sm:$0xff]
        %v2372 = vld [vmem:[%s155 + $0x8] sm:$0xff]
        %v2373 = vld [vmem:[%s155 + $0x10] sm:$0xff]
        %v2374 = vld [vmem:[%s155 + $0x18] sm:$0x3]
        %v2375 = vld [vmem:[%s155 + $0x20] sm:$0xff]
        %v2376 = vld [vmem:[%s155 + $0x28] sm:$0xff]
        %v2377 = vld [vmem:[%s155 + $0x30] sm:$0xff]
        %v2378 = vld [vmem:[%s155 + $0x38] sm:$0x3]
        %v2379 = vld [vmem:[%s155 + $0x40] sm:$0xff]
        %v2380 = vld [vmem:[%s155 + $0x48] sm:$0xff]
        %v2381 = vld [vmem:[%s155 + $0x50] sm:$0xff]
        %v2382 = vld [vmem:[%s155 + $0x58] sm:$0x3]
        %v2383 = vld [vmem:[%s155 + $0x60] sm:$0xff]
        %v2384 = vld [vmem:[%s155 + $0x68] sm:$0xff]
        %v2385 = vld [vmem:[%s155 + $0x70] sm:$0xff]
        %v2386 = vld [vmem:[%s155 + $0x78] sm:$0x3]
        %v2387 = vld [vmem:[%s160] sm:$0xff]
        %v2388 = vld [vmem:[%s160 + $0x8] sm:$0xff]
        %v2389 = vld [vmem:[%s160 + $0x10] sm:$0xff]
        %v2390 = vld [vmem:[%s160 + $0x18] sm:$0x3]
        %v2391 = vld [vmem:[%s160 + $0x20] sm:$0xff]
        %v2392 = vld [vmem:[%s160 + $0x28] sm:$0xff]
        %v2393 = vld [vmem:[%s160 + $0x30] sm:$0xff]
        %v2394 = vld [vmem:[%s160 + $0x38] sm:$0x3]
        %v2395 = vld [vmem:[%s160 + $0x40] sm:$0xff]
        %v2396 = vld [vmem:[%s160 + $0x48] sm:$0xff]
        %v2397 = vld [vmem:[%s160 + $0x50] sm:$0xff]
        %v2398 = vld [vmem:[%s160 + $0x58] sm:$0x3]
        %v2399 = vld [vmem:[%s160 + $0x60] sm:$0xff]
        %v2400 = vld [vmem:[%s160 + $0x68] sm:$0xff]
        %v2401 = vld [vmem:[%s160 + $0x70] sm:$0xff]
        %v2402 = vld [vmem:[%s160 + $0x78] sm:$0x3]
        %v2403 = vmul.f32 %v2371, %v2387
        %v2404 = vmul.f32 %v2372, %v2388
        %v2405 = vmul.f32 %v2373, %v2389
        %v2406 = vmul.f32 %v2374, %v2390
        %v2407 = vmul.f32 %v2375, %v2391
        %v2408 = vmul.f32 %v2376, %v2392
        %v2409 = vmul.f32 %v2377, %v2393
        %v2410 = vmul.f32 %v2378, %v2394
        %v2411 = vmul.f32 %v2379, %v2395
        %v2412 = vmul.f32 %v2380, %v2396
        %v2413 = vmul.f32 %v2381, %v2397
        %v2414 = vmul.f32 %v2382, %v2398
        %v2415 = vmul.f32 %v2383, %v2399
        %v2416 = vmul.f32 %v2384, %v2400
        %v2417 = vmul.f32 %v2385, %v2401
        %v2418 = vmul.f32 %v2386, %v2402
        %vm2419 = vcmask 211968
        %2420 = vst.msk [vmem:[#allocation2] sm:$0xff] %vm2419, %v2403
        %2421 = vst.msk [vmem:[#allocation2 + $0x8] sm:$0xff] %vm2419, %v2404
        %2422 = vst.msk [vmem:[#allocation2 + $0x10] sm:$0xff] %vm2419, %v2405
        %vm2423 = vcmask 205824
        %2424 = vst.msk [vmem:[#allocation2 + $0x18] sm:$0x3] %vm2423, %v2406
        %2425 = vst.msk [vmem:[#allocation2 + $0x20] sm:$0xff] %vm2419, %v2407
        %2426 = vst.msk [vmem:[#allocation2 + $0x28] sm:$0xff] %vm2419, %v2408
        %2427 = vst.msk [vmem:[#allocation2 + $0x30] sm:$0xff] %vm2419, %v2409
        %2428 = vst.msk [vmem:[#allocation2 + $0x38] sm:$0x3] %vm2423, %v2410
        %2429 = vst.msk [vmem:[#allocation2 + $0x40] sm:$0xff] %vm2419, %v2411
        %2430 = vst.msk [vmem:[#allocation2 + $0x48] sm:$0xff] %vm2419, %v2412
        %2431 = vst.msk [vmem:[#allocation2 + $0x50] sm:$0xff] %vm2419, %v2413
        %2432 = vst.msk [vmem:[#allocation2 + $0x58] sm:$0x3] %vm2423, %v2414
        %2433 = vst.msk [vmem:[#allocation2 + $0x60] sm:$0xff] %vm2419, %v2415
        %2434 = vst.msk [vmem:[#allocation2 + $0x68] sm:$0xff] %vm2419, %v2416
        %2435 = vst.msk [vmem:[#allocation2 + $0x70] sm:$0xff] %vm2419, %v2417
        %2436 = vst.msk [vmem:[#allocation2 + $0x78] sm:$0x3] %vm2423, %v2418
        %v2437 = vld [vmem:[#allocation2] sm:$0xff]
        %v2438 = vld [vmem:[#allocation2 + $0x8] sm:$0xff]
        %v2439 = vld [vmem:[#allocation2 + $0x10] sm:$0xff]
        %v2440 = vld [vmem:[#allocation2 + $0x18] sm:$0x3]
        %v2441 = vld [vmem:[#allocation2 + $0x20] sm:$0xff]
        %v2442 = vld [vmem:[#allocation2 + $0x28] sm:$0xff]
        %v2443 = vld [vmem:[#allocation2 + $0x30] sm:$0xff]
        %v2444 = vld [vmem:[#allocation2 + $0x38] sm:$0x3]
        %v2445 = vld [vmem:[#allocation2 + $0x40] sm:$0xff]
        %v2446 = vld [vmem:[#allocation2 + $0x48] sm:$0xff]
        %v2447 = vld [vmem:[#allocation2 + $0x50] sm:$0xff]
        %v2448 = vld [vmem:[#allocation2 + $0x58] sm:$0x3]
        %v2449 = vld [vmem:[#allocation2 + $0x60] sm:$0xff]
        %v2450 = vld [vmem:[#allocation2 + $0x68] sm:$0xff]
        %v2451 = vld [vmem:[#allocation2 + $0x70] sm:$0xff]
        %v2452 = vld [vmem:[#allocation2 + $0x78] sm:$0x3]
        %v2453 = vmul.f32 %v2437, 0.0010283801
        %v2454 = vmul.f32 %v2438, 0.0010283801
        %v2455 = vmul.f32 %v2439, 0.0010283801
        %v2456 = vmul.f32 %v2440, 0.0010283801
        %v2457 = vmul.f32 %v2441, 0.0010283801
        %v2458 = vmul.f32 %v2442, 0.0010283801
        %v2459 = vmul.f32 %v2443, 0.0010283801
        %v2460 = vmul.f32 %v2444, 0.0010283801
        %v2461 = vmul.f32 %v2445, 0.0010283801
        %v2462 = vmul.f32 %v2446, 0.0010283801
        %v2463 = vmul.f32 %v2447, 0.0010283801
        %v2464 = vmul.f32 %v2448, 0.0010283801
        %v2465 = vmul.f32 %v2449, 0.0010283801
        %v2466 = vmul.f32 %v2450, 0.0010283801
        %v2467 = vmul.f32 %v2451, 0.0010283801
        %v2468 = vmul.f32 %v2452, 0.0010283801
        %v2469 = vmul.f32 %v2437, 0.007598758
        %v2470 = vmul.f32 %v2438, 0.007598758
        %v2471 = vmul.f32 %v2439, 0.007598758
        %v2472 = vmul.f32 %v2440, 0.007598758
        %v2473 = vmul.f32 %v2441, 0.007598758
        %v2474 = vmul.f32 %v2442, 0.007598758
        %v2475 = vmul.f32 %v2443, 0.007598758
        %v2476 = vmul.f32 %v2444, 0.007598758
        %v2477 = vmul.f32 %v2445, 0.007598758
        %v2478 = vmul.f32 %v2446, 0.007598758
        %v2479 = vmul.f32 %v2447, 0.007598758
        %v2480 = vmul.f32 %v2448, 0.007598758
        %v2481 = vmul.f32 %v2449, 0.007598758
        %v2482 = vmul.f32 %v2450, 0.007598758
        %v2483 = vmul.f32 %v2451, 0.007598758
        %v2484 = vmul.f32 %v2452, 0.007598758
        %2501 = vrot.lane.b32.xlu0 %v2469, 127
        %v2502 = vpop.permute.xlu0 %2501
        %2503 = vrot.lane.b32.xlu0 %v2470, 127
        %v2504 = vpop.permute.xlu0 %2503
        %2505 = vrot.lane.b32.xlu0 %v2471, 127
        %v2506 = vpop.permute.xlu0 %2505
        %2507 = vrot.lane.b32.xlu0 %v2472, 127
        %v2508 = vpop.permute.xlu0 %2507
        %2509 = vrot.lane.b32.xlu0 %v2473, 127
        %v2510 = vpop.permute.xlu0 %2509
        %2511 = vrot.lane.b32.xlu0 %v2474, 127
        %v2512 = vpop.permute.xlu0 %2511
        %2513 = vrot.lane.b32.xlu0 %v2475, 127
        %v2514 = vpop.permute.xlu0 %2513
        %2515 = vrot.lane.b32.xlu0 %v2476, 127
        %v2516 = vpop.permute.xlu0 %2515
        %2517 = vrot.lane.b32.xlu0 %v2477, 127
        %v2518 = vpop.permute.xlu0 %2517
        %2519 = vrot.lane.b32.xlu0 %v2478, 127
        %v2520 = vpop.permute.xlu0 %2519
        %2521 = vrot.lane.b32.xlu0 %v2479, 127
        %v2522 = vpop.permute.xlu0 %2521
        %2523 = vrot.lane.b32.xlu0 %v2480, 127
        %v2524 = vpop.permute.xlu0 %2523
        %2525 = vrot.lane.b32.xlu0 %v2481, 127
        %v2526 = vpop.permute.xlu0 %2525
        %2527 = vrot.lane.b32.xlu0 %v2482, 127
        %v2528 = vpop.permute.xlu0 %2527
        %2529 = vrot.lane.b32.xlu0 %v2483, 127
        %v2530 = vpop.permute.xlu0 %2529
        %2531 = vrot.lane.b32.xlu0 %v2484, 127
        %v2532 = vpop.permute.xlu0 %2531
        %v2549 = vadd.f32 %v2453, %v2502
        %v2550 = vadd.f32 %v2454, %v2504
        %v2551 = vadd.f32 %v2455, %v2506
        %v2552 = vadd.f32 %v2456, %v2508
        %v2553 = vadd.f32 %v2457, %v2510
        %v2554 = vadd.f32 %v2458, %v2512
        %v2555 = vadd.f32 %v2459, %v2514
        %v2556 = vadd.f32 %v2460, %v2516
        %v2557 = vadd.f32 %v2461, %v2518
        %v2558 = vadd.f32 %v2462, %v2520
        %v2559 = vadd.f32 %v2463, %v2522
        %v2560 = vadd.f32 %v2464, %v2524
        %v2561 = vadd.f32 %v2465, %v2526
        %v2562 = vadd.f32 %v2466, %v2528
        %v2563 = vadd.f32 %v2467, %v2530
        %v2564 = vadd.f32 %v2468, %v2532
        %v2565 = vmul.f32 %v2437, 0.036000773
        %v2566 = vmul.f32 %v2438, 0.036000773
        %v2567 = vmul.f32 %v2439, 0.036000773
        %v2568 = vmul.f32 %v2440, 0.036000773
        %v2569 = vmul.f32 %v2441, 0.036000773
        %v2570 = vmul.f32 %v2442, 0.036000773
        %v2571 = vmul.f32 %v2443, 0.036000773
        %v2572 = vmul.f32 %v2444, 0.036000773
        %v2573 = vmul.f32 %v2445, 0.036000773
        %v2574 = vmul.f32 %v2446, 0.036000773
        %v2575 = vmul.f32 %v2447, 0.036000773
        %v2576 = vmul.f32 %v2448, 0.036000773
        %v2577 = vmul.f32 %v2449, 0.036000773
        %v2578 = vmul.f32 %v2450, 0.036000773
        %v2579 = vmul.f32 %v2451, 0.036000773
        %v2580 = vmul.f32 %v2452, 0.036000773
        %2597 = vrot.lane.b32.xlu0 %v2565, 126
        %v2598 = vpop.permute.xlu0 %2597
        %2599 = vrot.lane.b32.xlu0 %v2566, 126
        %v2600 = vpop.permute.xlu0 %2599
        %2601 = vrot.lane.b32.xlu0 %v2567, 126
        %v2602 = vpop.permute.xlu0 %2601
        %2603 = vrot.lane.b32.xlu0 %v2568, 126
        %v2604 = vpop.permute.xlu0 %2603
        %2605 = vrot.lane.b32.xlu0 %v2569, 126
        %v2606 = vpop.permute.xlu0 %2605
        %2607 = vrot.lane.b32.xlu0 %v2570, 126
        %v2608 = vpop.permute.xlu0 %2607
        %2609 = vrot.lane.b32.xlu0 %v2571, 126
        %v2610 = vpop.permute.xlu0 %2609
        %2611 = vrot.lane.b32.xlu0 %v2572, 126
        %v2612 = vpop.permute.xlu0 %2611
        %2613 = vrot.lane.b32.xlu0 %v2573, 126
        %v2614 = vpop.permute.xlu0 %2613
        %2615 = vrot.lane.b32.xlu0 %v2574, 126
        %v2616 = vpop.permute.xlu0 %2615
        %2617 = vrot.lane.b32.xlu0 %v2575, 126
        %v2618 = vpop.permute.xlu0 %2617
        %2619 = vrot.lane.b32.xlu0 %v2576, 126
        %v2620 = vpop.permute.xlu0 %2619
        %2621 = vrot.lane.b32.xlu0 %v2577, 126
        %v2622 = vpop.permute.xlu0 %2621
        %2623 = vrot.lane.b32.xlu0 %v2578, 126
        %v2624 = vpop.permute.xlu0 %2623
        %2625 = vrot.lane.b32.xlu0 %v2579, 126
        %v2626 = vpop.permute.xlu0 %2625
        %2627 = vrot.lane.b32.xlu0 %v2580, 126
        %v2628 = vpop.permute.xlu0 %2627
        %v2645 = vadd.f32 %v2549, %v2598
        %v2646 = vadd.f32 %v2550, %v2600
        %v2647 = vadd.f32 %v2551, %v2602
        %v2648 = vadd.f32 %v2552, %v2604
        %v2649 = vadd.f32 %v2553, %v2606
        %v2650 = vadd.f32 %v2554, %v2608
        %v2651 = vadd.f32 %v2555, %v2610
        %v2652 = vadd.f32 %v2556, %v2612
        %v2653 = vadd.f32 %v2557, %v2614
        %v2654 = vadd.f32 %v2558, %v2616
        %v2655 = vadd.f32 %v2559, %v2618
        %v2656 = vadd.f32 %v2560, %v2620
        %v2657 = vadd.f32 %v2561, %v2622
        %v2658 = vadd.f32 %v2562, %v2624
        %v2659 = vadd.f32 %v2563, %v2626
        %v2660 = vadd.f32 %v2564, %v2628
        %v2661 = vmul.f32 %v2437, 0.10936069
        %v2662 = vmul.f32 %v2438, 0.10936069
        %v2663 = vmul.f32 %v2439, 0.10936069
        %v2664 = vmul.f32 %v2440, 0.10936069
        %v2665 = vmul.f32 %v2441, 0.10936069
        %v2666 = vmul.f32 %v2442, 0.10936069
        %v2667 = vmul.f32 %v2443, 0.10936069
        %v2668 = vmul.f32 %v2444, 0.10936069
        %v2669 = vmul.f32 %v2445, 0.10936069
        %v2670 = vmul.f32 %v2446, 0.10936069
        %v2671 = vmul.f32 %v2447, 0.10936069
        %v2672 = vmul.f32 %v2448, 0.10936069
        %v2673 = vmul.f32 %v2449, 0.10936069
        %v2674 = vmul.f32 %v2450, 0.10936069
        %v2675 = vmul.f32 %v2451, 0.10936069
        %v2676 = vmul.f32 %v2452, 0.10936069
        %2693 = vrot.lane.b32.xlu0 %v2661, 125
        %v2694 = vpop.permute.xlu0 %2693
        %2695 = vrot.lane.b32.xlu0 %v2662, 125
        %v2696 = vpop.permute.xlu0 %2695
        %2697 = vrot.lane.b32.xlu0 %v2663, 125
        %v2698 = vpop.permute.xlu0 %2697
        %2699 = vrot.lane.b32.xlu0 %v2664, 125
        %v2700 = vpop.permute.xlu0 %2699
        %2701 = vrot.lane.b32.xlu0 %v2665, 125
        %v2702 = vpop.permute.xlu0 %2701
        %2703 = vrot.lane.b32.xlu0 %v2666, 125
        %v2704 = vpop.permute.xlu0 %2703
        %2705 = vrot.lane.b32.xlu0 %v2667, 125
        %v2706 = vpop.permute.xlu0 %2705
        %2707 = vrot.lane.b32.xlu0 %v2668, 125
        %v2708 = vpop.permute.xlu0 %2707
        %2709 = vrot.lane.b32.xlu0 %v2669, 125
        %v2710 = vpop.permute.xlu0 %2709
        %2711 = vrot.lane.b32.xlu0 %v2670, 125
        %v2712 = vpop.permute.xlu0 %2711
        %2713 = vrot.lane.b32.xlu0 %v2671, 125
        %v2714 = vpop.permute.xlu0 %2713
        %2715 = vrot.lane.b32.xlu0 %v2672, 125
        %v2716 = vpop.permute.xlu0 %2715
        %2717 = vrot.lane.b32.xlu0 %v2673, 125
        %v2718 = vpop.permute.xlu0 %2717
        %2719 = vrot.lane.b32.xlu0 %v2674, 125
        %v2720 = vpop.permute.xlu0 %2719
        %2721 = vrot.lane.b32.xlu0 %v2675, 125
        %v2722 = vpop.permute.xlu0 %2721
        %2723 = vrot.lane.b32.xlu0 %v2676, 125
        %v2724 = vpop.permute.xlu0 %2723
        %v2741 = vadd.f32 %v2645, %v2694
        %v2742 = vadd.f32 %v2646, %v2696
        %v2743 = vadd.f32 %v2647, %v2698
        %v2744 = vadd.f32 %v2648, %v2700
        %v2745 = vadd.f32 %v2649, %v2702
        %v2746 = vadd.f32 %v2650, %v2704
        %v2747 = vadd.f32 %v2651, %v2706
        %v2748 = vadd.f32 %v2652, %v2708
        %v2749 = vadd.f32 %v2653, %v2710
        %v2750 = vadd.f32 %v2654, %v2712
        %v2751 = vadd.f32 %v2655, %v2714
        %v2752 = vadd.f32 %v2656, %v2716
        %v2753 = vadd.f32 %v2657, %v2718
        %v2754 = vadd.f32 %v2658, %v2720
        %v2755 = vadd.f32 %v2659, %v2722
        %v2756 = vadd.f32 %v2660, %v2724
        %v2757 = vmul.f32 %v2437, 0.21300554
        %v2758 = vmul.f32 %v2438, 0.21300554
        %v2759 = vmul.f32 %v2439, 0.21300554
        %v2760 = vmul.f32 %v2440, 0.21300554
        %v2761 = vmul.f32 %v2441, 0.21300554
        %v2762 = vmul.f32 %v2442, 0.21300554
        %v2763 = vmul.f32 %v2443, 0.21300554
        %v2764 = vmul.f32 %v2444, 0.21300554
        %v2765 = vmul.f32 %v2445, 0.21300554
        %v2766 = vmul.f32 %v2446, 0.21300554
        %v2767 = vmul.f32 %v2447, 0.21300554
        %v2768 = vmul.f32 %v2448, 0.21300554
        %v2769 = vmul.f32 %v2449, 0.21300554
        %v2770 = vmul.f32 %v2450, 0.21300554
        %v2771 = vmul.f32 %v2451, 0.21300554
        %v2772 = vmul.f32 %v2452, 0.21300554
        %2789 = vrot.lane.b32.xlu0 %v2757, 124
        %v2790 = vpop.permute.xlu0 %2789
        %2791 = vrot.lane.b32.xlu0 %v2758, 124
        %v2792 = vpop.permute.xlu0 %2791
        %2793 = vrot.lane.b32.xlu0 %v2759, 124
        %v2794 = vpop.permute.xlu0 %2793
        %2795 = vrot.lane.b32.xlu0 %v2760, 124
        %v2796 = vpop.permute.xlu0 %2795
        %2797 = vrot.lane.b32.xlu0 %v2761, 124
        %v2798 = vpop.permute.xlu0 %2797
        %2799 = vrot.lane.b32.xlu0 %v2762, 124
        %v2800 = vpop.permute.xlu0 %2799
        %2801 = vrot.lane.b32.xlu0 %v2763, 124
        %v2802 = vpop.permute.xlu0 %2801
        %2803 = vrot.lane.b32.xlu0 %v2764, 124
        %v2804 = vpop.permute.xlu0 %2803
        %2805 = vrot.lane.b32.xlu0 %v2765, 124
        %v2806 = vpop.permute.xlu0 %2805
        %2807 = vrot.lane.b32.xlu0 %v2766, 124
        %v2808 = vpop.permute.xlu0 %2807
        %2809 = vrot.lane.b32.xlu0 %v2767, 124
        %v2810 = vpop.permute.xlu0 %2809
        %2811 = vrot.lane.b32.xlu0 %v2768, 124
        %v2812 = vpop.permute.xlu0 %2811
        %2813 = vrot.lane.b32.xlu0 %v2769, 124
        %v2814 = vpop.permute.xlu0 %2813
        %2815 = vrot.lane.b32.xlu0 %v2770, 124
        %v2816 = vpop.permute.xlu0 %2815
        %2817 = vrot.lane.b32.xlu0 %v2771, 124
        %v2818 = vpop.permute.xlu0 %2817
        %2819 = vrot.lane.b32.xlu0 %v2772, 124
        %v2820 = vpop.permute.xlu0 %2819
        %v2837 = vadd.f32 %v2741, %v2790
        %v2838 = vadd.f32 %v2742, %v2792
        %v2839 = vadd.f32 %v2743, %v2794
        %v2840 = vadd.f32 %v2744, %v2796
        %v2841 = vadd.f32 %v2745, %v2798
        %v2842 = vadd.f32 %v2746, %v2800
        %v2843 = vadd.f32 %v2747, %v2802
        %v2844 = vadd.f32 %v2748, %v2804
        %v2845 = vadd.f32 %v2749, %v2806
        %v2846 = vadd.f32 %v2750, %v2808
        %v2847 = vadd.f32 %v2751, %v2810
        %v2848 = vadd.f32 %v2752, %v2812
        %v2849 = vadd.f32 %v2753, %v2814
        %v2850 = vadd.f32 %v2754, %v2816
        %v2851 = vadd.f32 %v2755, %v2818
        %v2852 = vadd.f32 %v2756, %v2820
        %v2853 = vmul.f32 %v2437, 0.26601171
        %v2854 = vmul.f32 %v2438, 0.26601171
        %v2855 = vmul.f32 %v2439, 0.26601171
        %v2856 = vmul.f32 %v2440, 0.26601171
        %v2857 = vmul.f32 %v2441, 0.26601171
        %v2858 = vmul.f32 %v2442, 0.26601171
        %v2859 = vmul.f32 %v2443, 0.26601171
        %v2860 = vmul.f32 %v2444, 0.26601171
        %v2861 = vmul.f32 %v2445, 0.26601171
        %v2862 = vmul.f32 %v2446, 0.26601171
        %v2863 = vmul.f32 %v2447, 0.26601171
        %v2864 = vmul.f32 %v2448, 0.26601171
        %v2865 = vmul.f32 %v2449, 0.26601171
        %v2866 = vmul.f32 %v2450, 0.26601171
        %v2867 = vmul.f32 %v2451, 0.26601171
        %v2868 = vmul.f32 %v2452, 0.26601171
        %2885 = vrot.lane.b32.xlu0 %v2853, 123
        %v2886 = vpop.permute.xlu0 %2885
        %2887 = vrot.lane.b32.xlu0 %v2854, 123
        %v2888 = vpop.permute.xlu0 %2887
        %2889 = vrot.lane.b32.xlu0 %v2855, 123
        %v2890 = vpop.permute.xlu0 %2889
        %2891 = vrot.lane.b32.xlu0 %v2856, 123
        %v2892 = vpop.permute.xlu0 %2891
        %2893 = vrot.lane.b32.xlu0 %v2857, 123
        %v2894 = vpop.permute.xlu0 %2893
        %2895 = vrot.lane.b32.xlu0 %v2858, 123
        %v2896 = vpop.permute.xlu0 %2895
        %2897 = vrot.lane.b32.xlu0 %v2859, 123
        %v2898 = vpop.permute.xlu0 %2897
        %2899 = vrot.lane.b32.xlu0 %v2860, 123
        %v2900 = vpop.permute.xlu0 %2899
        %2901 = vrot.lane.b32.xlu0 %v2861, 123
        %v2902 = vpop.permute.xlu0 %2901
        %2903 = vrot.lane.b32.xlu0 %v2862, 123
        %v2904 = vpop.permute.xlu0 %2903
        %2905 = vrot.lane.b32.xlu0 %v2863, 123
        %v2906 = vpop.permute.xlu0 %2905
        %2907 = vrot.lane.b32.xlu0 %v2864, 123
        %v2908 = vpop.permute.xlu0 %2907
        %2909 = vrot.lane.b32.xlu0 %v2865, 123
        %v2910 = vpop.permute.xlu0 %2909
        %2911 = vrot.lane.b32.xlu0 %v2866, 123
        %v2912 = vpop.permute.xlu0 %2911
        %2913 = vrot.lane.b32.xlu0 %v2867, 123
        %v2914 = vpop.permute.xlu0 %2913
        %2915 = vrot.lane.b32.xlu0 %v2868, 123
        %v2916 = vpop.permute.xlu0 %2915
        %v2933 = vadd.f32 %v2837, %v2886
        %v2934 = vadd.f32 %v2838, %v2888
        %v2935 = vadd.f32 %v2839, %v2890
        %v2936 = vadd.f32 %v2840, %v2892
        %v2937 = vadd.f32 %v2841, %v2894
        %v2938 = vadd.f32 %v2842, %v2896
        %v2939 = vadd.f32 %v2843, %v2898
        %v2940 = vadd.f32 %v2844, %v2900
        %v2941 = vadd.f32 %v2845, %v2902
        %v2942 = vadd.f32 %v2846, %v2904
        %v2943 = vadd.f32 %v2847, %v2906
        %v2944 = vadd.f32 %v2848, %v2908
        %v2945 = vadd.f32 %v2849, %v2910
        %v2946 = vadd.f32 %v2850, %v2912
        %v2947 = vadd.f32 %v2851, %v2914
        %v2948 = vadd.f32 %v2852, %v2916
        %2949 = vrot.lane.b32.xlu0 %v2757, 122
        %v2950 = vpop.permute.xlu0 %2949
        %2951 = vrot.lane.b32.xlu0 %v2758, 122
        %v2952 = vpop.permute.xlu0 %2951
        %2953 = vrot.lane.b32.xlu0 %v2759, 122
        %v2954 = vpop.permute.xlu0 %2953
        %2955 = vrot.lane.b32.xlu0 %v2760, 122
        %v2956 = vpop.permute.xlu0 %2955
        %2957 = vrot.lane.b32.xlu0 %v2761, 122
        %v2958 = vpop.permute.xlu0 %2957
        %2959 = vrot.lane.b32.xlu0 %v2762, 122
        %v2960 = vpop.permute.xlu0 %2959
        %2961 = vrot.lane.b32.xlu0 %v2763, 122
        %v2962 = vpop.permute.xlu0 %2961
        %2963 = vrot.lane.b32.xlu0 %v2764, 122
        %v2964 = vpop.permute.xlu0 %2963
        %2965 = vrot.lane.b32.xlu0 %v2765, 122
        %v2966 = vpop.permute.xlu0 %2965
        %2967 = vrot.lane.b32.xlu0 %v2766, 122
        %v2968 = vpop.permute.xlu0 %2967
        %2969 = vrot.lane.b32.xlu0 %v2767, 122
        %v2970 = vpop.permute.xlu0 %2969
        %2971 = vrot.lane.b32.xlu0 %v2768, 122
        %v2972 = vpop.permute.xlu0 %2971
        %2973 = vrot.lane.b32.xlu0 %v2769, 122
        %v2974 = vpop.permute.xlu0 %2973
        %2975 = vrot.lane.b32.xlu0 %v2770, 122
        %v2976 = vpop.permute.xlu0 %2975
        %2977 = vrot.lane.b32.xlu0 %v2771, 122
        %v2978 = vpop.permute.xlu0 %2977
        %2979 = vrot.lane.b32.xlu0 %v2772, 122
        %v2980 = vpop.permute.xlu0 %2979
        %v2997 = vadd.f32 %v2933, %v2950
        %v2998 = vadd.f32 %v2934, %v2952
        %v2999 = vadd.f32 %v2935, %v2954
        %v3000 = vadd.f32 %v2936, %v2956
        %v3001 = vadd.f32 %v2937, %v2958
        %v3002 = vadd.f32 %v2938, %v2960
        %v3003 = vadd.f32 %v2939, %v2962
        %v3004 = vadd.f32 %v2940, %v2964
        %v3005 = vadd.f32 %v2941, %v2966
        %v3006 = vadd.f32 %v2942, %v2968
        %v3007 = vadd.f32 %v2943, %v2970
        %v3008 = vadd.f32 %v2944, %v2972
        %v3009 = vadd.f32 %v2945, %v2974
        %v3010 = vadd.f32 %v2946, %v2976
        %v3011 = vadd.f32 %v2947, %v2978
        %v3012 = vadd.f32 %v2948, %v2980
        %3013 = vrot.lane.b32.xlu0 %v2661, 121
        %v3014 = vpop.permute.xlu0 %3013
        %3015 = vrot.lane.b32.xlu0 %v2662, 121
        %v3016 = vpop.permute.xlu0 %3015
        %3017 = vrot.lane.b32.xlu0 %v2663, 121
        %v3018 = vpop.permute.xlu0 %3017
        %3019 = vrot.lane.b32.xlu0 %v2664, 121
        %v3020 = vpop.permute.xlu0 %3019
        %3021 = vrot.lane.b32.xlu0 %v2665, 121
        %v3022 = vpop.permute.xlu0 %3021
        %3023 = vrot.lane.b32.xlu0 %v2666, 121
        %v3024 = vpop.permute.xlu0 %3023
        %3025 = vrot.lane.b32.xlu0 %v2667, 121
        %v3026 = vpop.permute.xlu0 %3025
        %3027 = vrot.lane.b32.xlu0 %v2668, 121
        %v3028 = vpop.permute.xlu0 %3027
        %3029 = vrot.lane.b32.xlu0 %v2669, 121
        %v3030 = vpop.permute.xlu0 %3029
        %3031 = vrot.lane.b32.xlu0 %v2670, 121
        %v3032 = vpop.permute.xlu0 %3031
        %3033 = vrot.lane.b32.xlu0 %v2671, 121
        %v3034 = vpop.permute.xlu0 %3033
        %3035 = vrot.lane.b32.xlu0 %v2672, 121
        %v3036 = vpop.permute.xlu0 %3035
        %3037 = vrot.lane.b32.xlu0 %v2673, 121
        %v3038 = vpop.permute.xlu0 %3037
        %3039 = vrot.lane.b32.xlu0 %v2674, 121
        %v3040 = vpop.permute.xlu0 %3039
        %3041 = vrot.lane.b32.xlu0 %v2675, 121
        %v3042 = vpop.permute.xlu0 %3041
        %3043 = vrot.lane.b32.xlu0 %v2676, 121
        %v3044 = vpop.permute.xlu0 %3043
        %v3061 = vadd.f32 %v2997, %v3014
        %v3062 = vadd.f32 %v2998, %v3016
        %v3063 = vadd.f32 %v2999, %v3018
        %v3064 = vadd.f32 %v3000, %v3020
        %v3065 = vadd.f32 %v3001, %v3022
        %v3066 = vadd.f32 %v3002, %v3024
        %v3067 = vadd.f32 %v3003, %v3026
        %v3068 = vadd.f32 %v3004, %v3028
        %v3069 = vadd.f32 %v3005, %v3030
        %v3070 = vadd.f32 %v3006, %v3032
        %v3071 = vadd.f32 %v3007, %v3034
        %v3072 = vadd.f32 %v3008, %v3036
        %v3073 = vadd.f32 %v3009, %v3038
        %v3074 = vadd.f32 %v3010, %v3040
        %v3075 = vadd.f32 %v3011, %v3042
        %v3076 = vadd.f32 %v3012, %v3044
        %3077 = vrot.lane.b32.xlu0 %v2565, 120
        %v3078 = vpop.permute.xlu0 %3077
        %3079 = vrot.lane.b32.xlu0 %v2566, 120
        %v3080 = vpop.permute.xlu0 %3079
        %3081 = vrot.lane.b32.xlu0 %v2567, 120
        %v3082 = vpop.permute.xlu0 %3081
        %3083 = vrot.lane.b32.xlu0 %v2568, 120
        %v3084 = vpop.permute.xlu0 %3083
        %3085 = vrot.lane.b32.xlu0 %v2569, 120
        %v3086 = vpop.permute.xlu0 %3085
        %3087 = vrot.lane.b32.xlu0 %v2570, 120
        %v3088 = vpop.permute.xlu0 %3087
        %3089 = vrot.lane.b32.xlu0 %v2571, 120
        %v3090 = vpop.permute.xlu0 %3089
        %3091 = vrot.lane.b32.xlu0 %v2572, 120
        %v3092 = vpop.permute.xlu0 %3091
        %3093 = vrot.lane.b32.xlu0 %v2573, 120
        %v3094 = vpop.permute.xlu0 %3093
        %3095 = vrot.lane.b32.xlu0 %v2574, 120
        %v3096 = vpop.permute.xlu0 %3095
        %3097 = vrot.lane.b32.xlu0 %v2575, 120
        %v3098 = vpop.permute.xlu0 %3097
        %3099 = vrot.lane.b32.xlu0 %v2576, 120
        %v3100 = vpop.permute.xlu0 %3099
        %3101 = vrot.lane.b32.xlu0 %v2577, 120
        %v3102 = vpop.permute.xlu0 %3101
        %3103 = vrot.lane.b32.xlu0 %v2578, 120
        %v3104 = vpop.permute.xlu0 %3103
        %3105 = vrot.lane.b32.xlu0 %v2579, 120
        %v3106 = vpop.permute.xlu0 %3105
        %3107 = vrot.lane.b32.xlu0 %v2580, 120
        %v3108 = vpop.permute.xlu0 %3107
        %v3125 = vadd.f32 %v3061, %v3078
        %v3126 = vadd.f32 %v3062, %v3080
        %v3127 = vadd.f32 %v3063, %v3082
        %v3128 = vadd.f32 %v3064, %v3084
        %v3129 = vadd.f32 %v3065, %v3086
        %v3130 = vadd.f32 %v3066, %v3088
        %v3131 = vadd.f32 %v3067, %v3090
        %v3132 = vadd.f32 %v3068, %v3092
        %v3133 = vadd.f32 %v3069, %v3094
        %v3134 = vadd.f32 %v3070, %v3096
        %v3135 = vadd.f32 %v3071, %v3098
        %v3136 = vadd.f32 %v3072, %v3100
        %v3137 = vadd.f32 %v3073, %v3102
        %v3138 = vadd.f32 %v3074, %v3104
        %v3139 = vadd.f32 %v3075, %v3106
        %v3140 = vadd.f32 %v3076, %v3108
        %3141 = vrot.lane.b32.xlu0 %v2469, 119
        %v3142 = vpop.permute.xlu0 %3141
        %3143 = vrot.lane.b32.xlu0 %v2470, 119
        %v3144 = vpop.permute.xlu0 %3143
        %3145 = vrot.lane.b32.xlu0 %v2471, 119
        %v3146 = vpop.permute.xlu0 %3145
        %3147 = vrot.lane.b32.xlu0 %v2472, 119
        %v3148 = vpop.permute.xlu0 %3147
        %3149 = vrot.lane.b32.xlu0 %v2473, 119
        %v3150 = vpop.permute.xlu0 %3149
        %3151 = vrot.lane.b32.xlu0 %v2474, 119
        %v3152 = vpop.permute.xlu0 %3151
        %3153 = vrot.lane.b32.xlu0 %v2475, 119
        %v3154 = vpop.permute.xlu0 %3153
        %3155 = vrot.lane.b32.xlu0 %v2476, 119
        %v3156 = vpop.permute.xlu0 %3155
        %3157 = vrot.lane.b32.xlu0 %v2477, 119
        %v3158 = vpop.permute.xlu0 %3157
        %3159 = vrot.lane.b32.xlu0 %v2478, 119
        %v3160 = vpop.permute.xlu0 %3159
        %3161 = vrot.lane.b32.xlu0 %v2479, 119
        %v3162 = vpop.permute.xlu0 %3161
        %3163 = vrot.lane.b32.xlu0 %v2480, 119
        %v3164 = vpop.permute.xlu0 %3163
        %3165 = vrot.lane.b32.xlu0 %v2481, 119
        %v3166 = vpop.permute.xlu0 %3165
        %3167 = vrot.lane.b32.xlu0 %v2482, 119
        %v3168 = vpop.permute.xlu0 %3167
        %3169 = vrot.lane.b32.xlu0 %v2483, 119
        %v3170 = vpop.permute.xlu0 %3169
        %3171 = vrot.lane.b32.xlu0 %v2484, 119
        %v3172 = vpop.permute.xlu0 %3171
        %v3189 = vadd.f32 %v3125, %v3142
        %v3190 = vadd.f32 %v3126, %v3144
        %v3191 = vadd.f32 %v3127, %v3146
        %v3192 = vadd.f32 %v3128, %v3148
        %v3193 = vadd.f32 %v3129, %v3150
        %v3194 = vadd.f32 %v3130, %v3152
        %v3195 = vadd.f32 %v3131, %v3154
        %v3196 = vadd.f32 %v3132, %v3156
        %v3197 = vadd.f32 %v3133, %v3158
        %v3198 = vadd.f32 %v3134, %v3160
        %v3199 = vadd.f32 %v3135, %v3162
        %v3200 = vadd.f32 %v3136, %v3164
        %v3201 = vadd.f32 %v3137, %v3166
        %v3202 = vadd.f32 %v3138, %v3168
        %v3203 = vadd.f32 %v3139, %v3170
        %v3204 = vadd.f32 %v3140, %v3172
        %3221 = vrot.lane.b32.xlu0 %v2453, 118
        %v3222 = vpop.permute.xlu0 %3221
        %3223 = vrot.lane.b32.xlu0 %v2454, 118
        %v3224 = vpop.permute.xlu0 %3223
        %3225 = vrot.lane.b32.xlu0 %v2455, 118
        %v3226 = vpop.permute.xlu0 %3225
        %3227 = vrot.lane.b32.xlu0 %v2456, 118
        %v3228 = vpop.permute.xlu0 %3227
        %3229 = vrot.lane.b32.xlu0 %v2457, 118
        %v3230 = vpop.permute.xlu0 %3229
        %3231 = vrot.lane.b32.xlu0 %v2458, 118
        %v3232 = vpop.permute.xlu0 %3231
        %3233 = vrot.lane.b32.xlu0 %v2459, 118
        %v3234 = vpop.permute.xlu0 %3233
        %3235 = vrot.lane.b32.xlu0 %v2460, 118
        %v3236 = vpop.permute.xlu0 %3235
        %3237 = vrot.lane.b32.xlu0 %v2461, 118
        %v3238 = vpop.permute.xlu0 %3237
        %3239 = vrot.lane.b32.xlu0 %v2462, 118
        %v3240 = vpop.permute.xlu0 %3239
        %3241 = vrot.lane.b32.xlu0 %v2463, 118
        %v3242 = vpop.permute.xlu0 %3241
        %3243 = vrot.lane.b32.xlu0 %v2464, 118
        %v3244 = vpop.permute.xlu0 %3243
        %3245 = vrot.lane.b32.xlu0 %v2465, 118
        %v3246 = vpop.permute.xlu0 %3245
        %3247 = vrot.lane.b32.xlu0 %v2466, 118
        %v3248 = vpop.permute.xlu0 %3247
        %3249 = vrot.lane.b32.xlu0 %v2467, 118
        %v3250 = vpop.permute.xlu0 %3249
        %3251 = vrot.lane.b32.xlu0 %v2468, 118
        %v3252 = vpop.permute.xlu0 %3251
        %v3269 = vadd.f32 %v3189, %v3222
        %v3270 = vadd.f32 %v3190, %v3224
        %v3271 = vadd.f32 %v3191, %v3226
        %v3272 = vadd.f32 %v3192, %v3228
        %v3273 = vadd.f32 %v3193, %v3230
        %v3274 = vadd.f32 %v3194, %v3232
        %v3275 = vadd.f32 %v3195, %v3234
        %v3276 = vadd.f32 %v3196, %v3236
        %v3277 = vadd.f32 %v3197, %v3238
        %v3278 = vadd.f32 %v3198, %v3240
        %v3279 = vadd.f32 %v3199, %v3242
        %v3280 = vadd.f32 %v3200, %v3244
        %v3281 = vadd.f32 %v3201, %v3246
        %v3282 = vadd.f32 %v3202, %v3248
        %v3283 = vadd.f32 %v3203, %v3250
        %v3284 = vadd.f32 %v3204, %v3252
        %3285 = vst.msk [vmem:[#allocation3] sm:$0xff] %vm1009, %v3269
        %3286 = vst.msk [vmem:[#allocation3 + $0x8] sm:$0xff] %vm1009, %v3270
        %3287 = vst.msk [vmem:[#allocation3 + $0x10] sm:$0xff] %vm1009, %v3271
        %3288 = vst.msk [vmem:[#allocation3 + $0x18] sm:$0x3] %vm1013, %v3272
        %3289 = vst.msk [vmem:[#allocation3 + $0x20] sm:$0xff] %vm1009, %v3273
        %3290 = vst.msk [vmem:[#allocation3 + $0x28] sm:$0xff] %vm1009, %v3274
        %3291 = vst.msk [vmem:[#allocation3 + $0x30] sm:$0xff] %vm1009, %v3275
        %3292 = vst.msk [vmem:[#allocation3 + $0x38] sm:$0x3] %vm1013, %v3276
        %3293 = vst.msk [vmem:[#allocation3 + $0x40] sm:$0xff] %vm1009, %v3277
        %3294 = vst.msk [vmem:[#allocation3 + $0x48] sm:$0xff] %vm1009, %v3278
        %3295 = vst.msk [vmem:[#allocation3 + $0x50] sm:$0xff] %vm1009, %v3279
        %3296 = vst.msk [vmem:[#allocation3 + $0x58] sm:$0x3] %vm1013, %v3280
        %3297 = vst.msk [vmem:[#allocation3 + $0x60] sm:$0xff] %vm1009, %v3281
        %3298 = vst.msk [vmem:[#allocation3 + $0x68] sm:$0xff] %vm1009, %v3282
        %3299 = vst.msk [vmem:[#allocation3 + $0x70] sm:$0xff] %vm1009, %v3283
        %3300 = vst.msk [vmem:[#allocation3 + $0x78] sm:$0x3] %vm1013, %v3284
        %v3301 = vld [vmem:[#allocation3] sm:$0xff]
        %v3302 = vld [vmem:[#allocation3 + $0x8] sm:$0xff]
        %v3303 = vld [vmem:[#allocation3 + $0x20] sm:$0xff]
        %v3304 = vld [vmem:[#allocation3 + $0x28] sm:$0xff]
        %v3305 = vld [vmem:[#allocation3 + $0x40] sm:$0xff]
        %v3306 = vld [vmem:[#allocation3 + $0x48] sm:$0xff]
        %v3307 = vld [vmem:[#allocation3 + $0x60] sm:$0xff]
        %v3308 = vld [vmem:[#allocation3 + $0x68] sm:$0xff]
        %v3309 = vmul.f32 %v3301, 0.0010283801
        %v3310 = vmul.f32 %v3302, 0.0010283801
        %v3311 = vmul.f32 %v3303, 0.0010283801
        %v3312 = vmul.f32 %v3304, 0.0010283801
        %v3313 = vmul.f32 %v3305, 0.0010283801
        %v3314 = vmul.f32 %v3306, 0.0010283801
        %v3315 = vmul.f32 %v3307, 0.0010283801
        %v3316 = vmul.f32 %v3308, 0.0010283801
        %v3317 = vld [vmem:[#allocation3 + $0x1] sm:$0xff]
        %v3318 = vld [vmem:[#allocation3 + $0x9] sm:$0xff]
        %v3319 = vld [vmem:[#allocation3 + $0x21] sm:$0xff]
        %v3320 = vld [vmem:[#allocation3 + $0x29] sm:$0xff]
        %v3321 = vld [vmem:[#allocation3 + $0x41] sm:$0xff]
        %v3322 = vld [vmem:[#allocation3 + $0x49] sm:$0xff]
        %v3323 = vld [vmem:[#allocation3 + $0x61] sm:$0xff]
        %v3324 = vld [vmem:[#allocation3 + $0x69] sm:$0xff]
        %v3325 = vmul.f32 %v3317, 0.007598758
        %v3326 = vmul.f32 %v3318, 0.007598758
        %v3327 = vmul.f32 %v3319, 0.007598758
        %v3328 = vmul.f32 %v3320, 0.007598758
        %v3329 = vmul.f32 %v3321, 0.007598758
        %v3330 = vmul.f32 %v3322, 0.007598758
        %v3331 = vmul.f32 %v3323, 0.007598758
        %v3332 = vmul.f32 %v3324, 0.007598758
        %v3333 = vadd.f32 %v3309, %v3325
        %v3334 = vadd.f32 %v3310, %v3326
        %v3335 = vadd.f32 %v3311, %v3327
        %v3336 = vadd.f32 %v3312, %v3328
        %v3337 = vadd.f32 %v3313, %v3329
        %v3338 = vadd.f32 %v3314, %v3330
        %v3339 = vadd.f32 %v3315, %v3331
        %v3340 = vadd.f32 %v3316, %v3332
        %v3341 = vld [vmem:[#allocation3 + $0x2] sm:$0xff]
        %v3342 = vld [vmem:[#allocation3 + $0xa] sm:$0xff]
        %v3343 = vld [vmem:[#allocation3 + $0x22] sm:$0xff]
        %v3344 = vld [vmem:[#allocation3 + $0x2a] sm:$0xff]
        %v3345 = vld [vmem:[#allocation3 + $0x42] sm:$0xff]
        %v3346 = vld [vmem:[#allocation3 + $0x4a] sm:$0xff]
        %v3347 = vld [vmem:[#allocation3 + $0x62] sm:$0xff]
        %v3348 = vld [vmem:[#allocation3 + $0x6a] sm:$0xff]
        %v3349 = vmul.f32 %v3341, 0.036000773
        %v3350 = vmul.f32 %v3342, 0.036000773
        %v3351 = vmul.f32 %v3343, 0.036000773
        %v3352 = vmul.f32 %v3344, 0.036000773
        %v3353 = vmul.f32 %v3345, 0.036000773
        %v3354 = vmul.f32 %v3346, 0.036000773
        %v3355 = vmul.f32 %v3347, 0.036000773
        %v3356 = vmul.f32 %v3348, 0.036000773
        %v3357 = vadd.f32 %v3333, %v3349
        %v3358 = vadd.f32 %v3334, %v3350
        %v3359 = vadd.f32 %v3335, %v3351
        %v3360 = vadd.f32 %v3336, %v3352
        %v3361 = vadd.f32 %v3337, %v3353
        %v3362 = vadd.f32 %v3338, %v3354
        %v3363 = vadd.f32 %v3339, %v3355
        %v3364 = vadd.f32 %v3340, %v3356
        %v3365 = vld [vmem:[#allocation3 + $0x3] sm:$0xff]
        %v3366 = vld [vmem:[#allocation3 + $0xb] sm:$0xff]
        %v3367 = vld [vmem:[#allocation3 + $0x23] sm:$0xff]
        %v3368 = vld [vmem:[#allocation3 + $0x2b] sm:$0xff]
        %v3369 = vld [vmem:[#allocation3 + $0x43] sm:$0xff]
        %v3370 = vld [vmem:[#allocation3 + $0x4b] sm:$0xff]
        %v3371 = vld [vmem:[#allocation3 + $0x63] sm:$0xff]
        %v3372 = vld [vmem:[#allocation3 + $0x6b] sm:$0xff]
        %v3373 = vmul.f32 %v3365, 0.10936069
        %v3374 = vmul.f32 %v3366, 0.10936069
        %v3375 = vmul.f32 %v3367, 0.10936069
        %v3376 = vmul.f32 %v3368, 0.10936069
        %v3377 = vmul.f32 %v3369, 0.10936069
        %v3378 = vmul.f32 %v3370, 0.10936069
        %v3379 = vmul.f32 %v3371, 0.10936069
        %v3380 = vmul.f32 %v3372, 0.10936069
        %v3381 = vadd.f32 %v3357, %v3373
        %v3382 = vadd.f32 %v3358, %v3374
        %v3383 = vadd.f32 %v3359, %v3375
        %v3384 = vadd.f32 %v3360, %v3376
        %v3385 = vadd.f32 %v3361, %v3377
        %v3386 = vadd.f32 %v3362, %v3378
        %v3387 = vadd.f32 %v3363, %v3379
        %v3388 = vadd.f32 %v3364, %v3380
        %v3389 = vld [vmem:[#allocation3 + $0x4] sm:$0xff]
        %v3390 = vld [vmem:[#allocation3 + $0xc] sm:$0xff]
        %v3391 = vld [vmem:[#allocation3 + $0x24] sm:$0xff]
        %v3392 = vld [vmem:[#allocation3 + $0x2c] sm:$0xff]
        %v3393 = vld [vmem:[#allocation3 + $0x44] sm:$0xff]
        %v3394 = vld [vmem:[#allocation3 + $0x4c] sm:$0xff]
        %v3395 = vld [vmem:[#allocation3 + $0x64] sm:$0xff]
        %v3396 = vld [vmem:[#allocation3 + $0x6c] sm:$0xff]
        %v3397 = vmul.f32 %v3389, 0.21300554
        %v3398 = vmul.f32 %v3390, 0.21300554
        %v3399 = vmul.f32 %v3391, 0.21300554
        %v3400 = vmul.f32 %v3392, 0.21300554
        %v3401 = vmul.f32 %v3393, 0.21300554
        %v3402 = vmul.f32 %v3394, 0.21300554
        %v3403 = vmul.f32 %v3395, 0.21300554
        %v3404 = vmul.f32 %v3396, 0.21300554
        %v3405 = vadd.f32 %v3381, %v3397
        %v3406 = vadd.f32 %v3382, %v3398
        %v3407 = vadd.f32 %v3383, %v3399
        %v3408 = vadd.f32 %v3384, %v3400
        %v3409 = vadd.f32 %v3385, %v3401
        %v3410 = vadd.f32 %v3386, %v3402
        %v3411 = vadd.f32 %v3387, %v3403
        %v3412 = vadd.f32 %v3388, %v3404
        %v3413 = vld [vmem:[#allocation3 + $0x5] sm:$0xff]
        %v3414 = vld [vmem:[#allocation3 + $0xd] sm:$0xff]
        %v3415 = vld [vmem:[#allocation3 + $0x25] sm:$0xff]
        %v3416 = vld [vmem:[#allocation3 + $0x2d] sm:$0xff]
        %v3417 = vld [vmem:[#allocation3 + $0x45] sm:$0xff]
        %v3418 = vld [vmem:[#allocation3 + $0x4d] sm:$0xff]
        %v3419 = vld [vmem:[#allocation3 + $0x65] sm:$0xff]
        %v3420 = vld [vmem:[#allocation3 + $0x6d] sm:$0xff]
        %v3421 = vmul.f32 %v3413, 0.26601171
        %v3422 = vmul.f32 %v3414, 0.26601171
        %v3423 = vmul.f32 %v3415, 0.26601171
        %v3424 = vmul.f32 %v3416, 0.26601171
        %v3425 = vmul.f32 %v3417, 0.26601171
        %v3426 = vmul.f32 %v3418, 0.26601171
        %v3427 = vmul.f32 %v3419, 0.26601171
        %v3428 = vmul.f32 %v3420, 0.26601171
        %v3429 = vadd.f32 %v3405, %v3421
        %v3430 = vadd.f32 %v3406, %v3422
        %v3431 = vadd.f32 %v3407, %v3423
        %v3432 = vadd.f32 %v3408, %v3424
        %v3433 = vadd.f32 %v3409, %v3425
        %v3434 = vadd.f32 %v3410, %v3426
        %v3435 = vadd.f32 %v3411, %v3427
        %v3436 = vadd.f32 %v3412, %v3428
        %v3437 = vld [vmem:[#allocation3 + $0x6] sm:$0xff]
        %v3438 = vld [vmem:[#allocation3 + $0xe] sm:$0xff]
        %v3439 = vld [vmem:[#allocation3 + $0x26] sm:$0xff]
        %v3440 = vld [vmem:[#allocation3 + $0x2e] sm:$0xff]
        %v3441 = vld [vmem:[#allocation3 + $0x46] sm:$0xff]
        %v3442 = vld [vmem:[#allocation3 + $0x4e] sm:$0xff]
        %v3443 = vld [vmem:[#allocation3 + $0x66] sm:$0xff]
        %v3444 = vld [vmem:[#allocation3 + $0x6e] sm:$0xff]
        %v3445 = vmul.f32 %v3437, 0.21300554
        %v3446 = vmul.f32 %v3438, 0.21300554
        %v3447 = vmul.f32 %v3439, 0.21300554
        %v3448 = vmul.f32 %v3440, 0.21300554
        %v3449 = vmul.f32 %v3441, 0.21300554
        %v3450 = vmul.f32 %v3442, 0.21300554
        %v3451 = vmul.f32 %v3443, 0.21300554
        %v3452 = vmul.f32 %v3444, 0.21300554
        %v3453 = vadd.f32 %v3429, %v3445
        %v3454 = vadd.f32 %v3430, %v3446
        %v3455 = vadd.f32 %v3431, %v3447
        %v3456 = vadd.f32 %v3432, %v3448
        %v3457 = vadd.f32 %v3433, %v3449
        %v3458 = vadd.f32 %v3434, %v3450
        %v3459 = vadd.f32 %v3435, %v3451
        %v3460 = vadd.f32 %v3436, %v3452
        %v3461 = vld [vmem:[#allocation3 + $0x7] sm:$0xff]
        %v3462 = vld [vmem:[#allocation3 + $0xf] sm:$0xff]
        %v3463 = vld [vmem:[#allocation3 + $0x27] sm:$0xff]
        %v3464 = vld [vmem:[#allocation3 + $0x2f] sm:$0xff]
        %v3465 = vld [vmem:[#allocation3 + $0x47] sm:$0xff]
        %v3466 = vld [vmem:[#allocation3 + $0x4f] sm:$0xff]
        %v3467 = vld [vmem:[#allocation3 + $0x67] sm:$0xff]
        %v3468 = vld [vmem:[#allocation3 + $0x6f] sm:$0xff]
        %v3469 = vmul.f32 %v3461, 0.10936069
        %v3470 = vmul.f32 %v3462, 0.10936069
        %v3471 = vmul.f32 %v3463, 0.10936069
        %v3472 = vmul.f32 %v3464, 0.10936069
        %v3473 = vmul.f32 %v3465, 0.10936069
        %v3474 = vmul.f32 %v3466, 0.10936069
        %v3475 = vmul.f32 %v3467, 0.10936069
        %v3476 = vmul.f32 %v3468, 0.10936069
        %v3477 = vadd.f32 %v3453, %v3469
        %v3478 = vadd.f32 %v3454, %v3470
        %v3479 = vadd.f32 %v3455, %v3471
        %v3480 = vadd.f32 %v3456, %v3472
        %v3481 = vadd.f32 %v3457, %v3473
        %v3482 = vadd.f32 %v3458, %v3474
        %v3483 = vadd.f32 %v3459, %v3475
        %v3484 = vadd.f32 %v3460, %v3476
        %v3485 = vld [vmem:[#allocation3 + $0x10] sm:$0xff]
        %v3486 = vld [vmem:[#allocation3 + $0x30] sm:$0xff]
        %v3487 = vld [vmem:[#allocation3 + $0x50] sm:$0xff]
        %v3488 = vld [vmem:[#allocation3 + $0x70] sm:$0xff]
        %v3489 = vmul.f32 %v3302, 0.036000773
        %v3490 = vmul.f32 %v3485, 0.036000773
        %v3491 = vmul.f32 %v3304, 0.036000773
        %v3492 = vmul.f32 %v3486, 0.036000773
        %v3493 = vmul.f32 %v3306, 0.036000773
        %v3494 = vmul.f32 %v3487, 0.036000773
        %v3495 = vmul.f32 %v3308, 0.036000773
        %v3496 = vmul.f32 %v3488, 0.036000773
        %v3497 = vadd.f32 %v3477, %v3489
        %v3498 = vadd.f32 %v3478, %v3490
        %v3499 = vadd.f32 %v3479, %v3491
        %v3500 = vadd.f32 %v3480, %v3492
        %v3501 = vadd.f32 %v3481, %v3493
        %v3502 = vadd.f32 %v3482, %v3494
        %v3503 = vadd.f32 %v3483, %v3495
        %v3504 = vadd.f32 %v3484, %v3496
        %v3505 = vld [vmem:[#allocation3 + $0x11] sm:$0xff]
        %v3506 = vld [vmem:[#allocation3 + $0x31] sm:$0xff]
        %v3507 = vld [vmem:[#allocation3 + $0x51] sm:$0xff]
        %v3508 = vld [vmem:[#allocation3 + $0x71] sm:$0xff]
        %v3509 = vmul.f32 %v3505, 0.007598758
        %v3510 = vmul.f32 %v3506, 0.007598758
        %v3511 = vmul.f32 %v3507, 0.007598758
        %v3512 = vmul.f32 %v3508, 0.007598758
        %v3513 = vadd.f32 %v3497, %v3326
        %v3514 = vadd.f32 %v3498, %v3509
        %v3515 = vadd.f32 %v3499, %v3328
        %v3516 = vadd.f32 %v3500, %v3510
        %v3517 = vadd.f32 %v3501, %v3330
        %v3518 = vadd.f32 %v3502, %v3511
        %v3519 = vadd.f32 %v3503, %v3332
        %v3520 = vadd.f32 %v3504, %v3512
        %v3521 = vld [vmem:[#allocation3 + $0x12] sm:$0xff]
        %v3522 = vld [vmem:[#allocation3 + $0x32] sm:$0xff]
        %v3523 = vld [vmem:[#allocation3 + $0x52] sm:$0xff]
        %v3524 = vld [vmem:[#allocation3 + $0x72] sm:$0xff]
        %v3525 = vmul.f32 %v3342, 0.0010283801
        %v3526 = vmul.f32 %v3521, 0.0010283801
        %v3527 = vmul.f32 %v3344, 0.0010283801
        %v3528 = vmul.f32 %v3522, 0.0010283801
        %v3529 = vmul.f32 %v3346, 0.0010283801
        %v3530 = vmul.f32 %v3523, 0.0010283801
        %v3531 = vmul.f32 %v3348, 0.0010283801
        %v3532 = vmul.f32 %v3524, 0.0010283801
        %v3533 = vadd.f32 %v3513, %v3525
        %v3534 = vadd.f32 %v3514, %v3526
        %v3535 = vadd.f32 %v3515, %v3527
        %v3536 = vadd.f32 %v3516, %v3528
        %v3537 = vadd.f32 %v3517, %v3529
        %v3538 = vadd.f32 %v3518, %v3530
        %v3539 = vadd.f32 %v3519, %v3531
        %v3540 = vadd.f32 %v3520, %v3532
        %v3541 = vmul.f32 %v2371, %v2371
        %v3542 = vmul.f32 %v2372, %v2372
        %v3543 = vmul.f32 %v2373, %v2373
        %v3544 = vmul.f32 %v2374, %v2374
        %v3545 = vmul.f32 %v2375, %v2375
        %v3546 = vmul.f32 %v2376, %v2376
        %v3547 = vmul.f32 %v2377, %v2377
        %v3548 = vmul.f32 %v2378, %v2378
        %v3549 = vmul.f32 %v2379, %v2379
        %v3550 = vmul.f32 %v2380, %v2380
        %v3551 = vmul.f32 %v2381, %v2381
        %v3552 = vmul.f32 %v2382, %v2382
        %v3553 = vmul.f32 %v2383, %v2383
        %v3554 = vmul.f32 %v2384, %v2384
        %v3555 = vmul.f32 %v2385, %v2385
        %v3556 = vmul.f32 %v2386, %v2386
        %3557 = vst.msk [vmem:[#allocation2] sm:$0xff] %vm2419, %v3541
        %3558 = vst.msk [vmem:[#allocation2 + $0x8] sm:$0xff] %vm2419, %v3542
        %3559 = vst.msk [vmem:[#allocation2 + $0x10] sm:$0xff] %vm2419, %v3543
        %3560 = vst.msk [vmem:[#allocation2 + $0x18] sm:$0x3] %vm2423, %v3544
        %3561 = vst.msk [vmem:[#allocation2 + $0x20] sm:$0xff] %vm2419, %v3545
        %3562 = vst.msk [vmem:[#allocation2 + $0x28] sm:$0xff] %vm2419, %v3546
        %3563 = vst.msk [vmem:[#allocation2 + $0x30] sm:$0xff] %vm2419, %v3547
        %3564 = vst.msk [vmem:[#allocation2 + $0x38] sm:$0x3] %vm2423, %v3548
        %3565 = vst.msk [vmem:[#allocation2 + $0x40] sm:$0xff] %vm2419, %v3549
        %3566 = vst.msk [vmem:[#allocation2 + $0x48] sm:$0xff] %vm2419, %v3550
        %3567 = vst.msk [vmem:[#allocation2 + $0x50] sm:$0xff] %vm2419, %v3551
        %3568 = vst.msk [vmem:[#allocation2 + $0x58] sm:$0x3] %vm2423, %v3552
        %3569 = vst.msk [vmem:[#allocation2 + $0x60] sm:$0xff] %vm2419, %v3553
        %3570 = vst.msk [vmem:[#allocation2 + $0x68] sm:$0xff] %vm2419, %v3554
        %3571 = vst.msk [vmem:[#allocation2 + $0x70] sm:$0xff] %vm2419, %v3555
        %3572 = vst.msk [vmem:[#allocation2 + $0x78] sm:$0x3] %vm2423, %v3556
        %v3573 = vld [vmem:[#allocation2] sm:$0xff]
        %v3574 = vld [vmem:[#allocation2 + $0x8] sm:$0xff]
        %v3575 = vld [vmem:[#allocation2 + $0x10] sm:$0xff]
        %v3576 = vld [vmem:[#allocation2 + $0x18] sm:$0x3]
        %v3577 = vld [vmem:[#allocation2 + $0x20] sm:$0xff]
        %v3578 = vld [vmem:[#allocation2 + $0x28] sm:$0xff]
        %v3579 = vld [vmem:[#allocation2 + $0x30] sm:$0xff]
        %v3580 = vld [vmem:[#allocation2 + $0x38] sm:$0x3]
        %v3581 = vld [vmem:[#allocation2 + $0x40] sm:$0xff]
        %v3582 = vld [vmem:[#allocation2 + $0x48] sm:$0xff]
        %v3583 = vld [vmem:[#allocation2 + $0x50] sm:$0xff]
        %v3584 = vld [vmem:[#allocation2 + $0x58] sm:$0x3]
        %v3585 = vld [vmem:[#allocation2 + $0x60] sm:$0xff]
        %v3586 = vld [vmem:[#allocation2 + $0x68] sm:$0xff]
        %v3587 = vld [vmem:[#allocation2 + $0x70] sm:$0xff]
        %v3588 = vld [vmem:[#allocation2 + $0x78] sm:$0x3]
        %v3589 = vmul.f32 %v3573, 0.0010283801
        %v3590 = vmul.f32 %v3574, 0.0010283801
        %v3591 = vmul.f32 %v3575, 0.0010283801
        %v3592 = vmul.f32 %v3576, 0.0010283801
        %v3593 = vmul.f32 %v3577, 0.0010283801
        %v3594 = vmul.f32 %v3578, 0.0010283801
        %v3595 = vmul.f32 %v3579, 0.0010283801
        %v3596 = vmul.f32 %v3580, 0.0010283801
        %v3597 = vmul.f32 %v3581, 0.0010283801
        %v3598 = vmul.f32 %v3582, 0.0010283801
        %v3599 = vmul.f32 %v3583, 0.0010283801
        %v3600 = vmul.f32 %v3584, 0.0010283801
        %v3601 = vmul.f32 %v3585, 0.0010283801
        %v3602 = vmul.f32 %v3586, 0.0010283801
        %v3603 = vmul.f32 %v3587, 0.0010283801
        %v3604 = vmul.f32 %v3588, 0.0010283801
        %v3605 = vmul.f32 %v3573, 0.007598758
        %v3606 = vmul.f32 %v3574, 0.007598758
        %v3607 = vmul.f32 %v3575, 0.007598758
        %v3608 = vmul.f32 %v3576, 0.007598758
        %v3609 = vmul.f32 %v3577, 0.007598758
        %v3610 = vmul.f32 %v3578, 0.007598758
        %v3611 = vmul.f32 %v3579, 0.007598758
        %v3612 = vmul.f32 %v3580, 0.007598758
        %v3613 = vmul.f32 %v3581, 0.007598758
        %v3614 = vmul.f32 %v3582, 0.007598758
        %v3615 = vmul.f32 %v3583, 0.007598758
        %v3616 = vmul.f32 %v3584, 0.007598758
        %v3617 = vmul.f32 %v3585, 0.007598758
        %v3618 = vmul.f32 %v3586, 0.007598758
        %v3619 = vmul.f32 %v3587, 0.007598758
        %v3620 = vmul.f32 %v3588, 0.007598758
        %3637 = vrot.lane.b32.xlu0 %v3605, 127
        %v3638 = vpop.permute.xlu0 %3637
        %3639 = vrot.lane.b32.xlu0 %v3606, 127
        %v3640 = vpop.permute.xlu0 %3639
        %3641 = vrot.lane.b32.xlu0 %v3607, 127
        %v3642 = vpop.permute.xlu0 %3641
        %3643 = vrot.lane.b32.xlu0 %v3608, 127
        %v3644 = vpop.permute.xlu0 %3643
        %3645 = vrot.lane.b32.xlu0 %v3609, 127
        %v3646 = vpop.permute.xlu0 %3645
        %3647 = vrot.lane.b32.xlu0 %v3610, 127
        %v3648 = vpop.permute.xlu0 %3647
        %3649 = vrot.lane.b32.xlu0 %v3611, 127
        %v3650 = vpop.permute.xlu0 %3649
        %3651 = vrot.lane.b32.xlu0 %v3612, 127
        %v3652 = vpop.permute.xlu0 %3651
        %3653 = vrot.lane.b32.xlu0 %v3613, 127
        %v3654 = vpop.permute.xlu0 %3653
        %3655 = vrot.lane.b32.xlu0 %v3614, 127
        %v3656 = vpop.permute.xlu0 %3655
        %3657 = vrot.lane.b32.xlu0 %v3615, 127
        %v3658 = vpop.permute.xlu0 %3657
        %3659 = vrot.lane.b32.xlu0 %v3616, 127
        %v3660 = vpop.permute.xlu0 %3659
        %3661 = vrot.lane.b32.xlu0 %v3617, 127
        %v3662 = vpop.permute.xlu0 %3661
        %3663 = vrot.lane.b32.xlu0 %v3618, 127
        %v3664 = vpop.permute.xlu0 %3663
        %3665 = vrot.lane.b32.xlu0 %v3619, 127
        %v3666 = vpop.permute.xlu0 %3665
        %3667 = vrot.lane.b32.xlu0 %v3620, 127
        %v3668 = vpop.permute.xlu0 %3667
        %v3685 = vadd.f32 %v3589, %v3638
        %v3686 = vadd.f32 %v3590, %v3640
        %v3687 = vadd.f32 %v3591, %v3642
        %v3688 = vadd.f32 %v3592, %v3644
        %v3689 = vadd.f32 %v3593, %v3646
        %v3690 = vadd.f32 %v3594, %v3648
        %v3691 = vadd.f32 %v3595, %v3650
        %v3692 = vadd.f32 %v3596, %v3652
        %v3693 = vadd.f32 %v3597, %v3654
        %v3694 = vadd.f32 %v3598, %v3656
        %v3695 = vadd.f32 %v3599, %v3658
        %v3696 = vadd.f32 %v3600, %v3660
        %v3697 = vadd.f32 %v3601, %v3662
        %v3698 = vadd.f32 %v3602, %v3664
        %v3699 = vadd.f32 %v3603, %v3666
        %v3700 = vadd.f32 %v3604, %v3668
        %v3701 = vmul.f32 %v3573, 0.036000773
        %v3702 = vmul.f32 %v3574, 0.036000773
        %v3703 = vmul.f32 %v3575, 0.036000773
        %v3704 = vmul.f32 %v3576, 0.036000773
        %v3705 = vmul.f32 %v3577, 0.036000773
        %v3706 = vmul.f32 %v3578, 0.036000773
        %v3707 = vmul.f32 %v3579, 0.036000773
        %v3708 = vmul.f32 %v3580, 0.036000773
        %v3709 = vmul.f32 %v3581, 0.036000773
        %v3710 = vmul.f32 %v3582, 0.036000773
        %v3711 = vmul.f32 %v3583, 0.036000773
        %v3712 = vmul.f32 %v3584, 0.036000773
        %v3713 = vmul.f32 %v3585, 0.036000773
        %v3714 = vmul.f32 %v3586, 0.036000773
        %v3715 = vmul.f32 %v3587, 0.036000773
        %v3716 = vmul.f32 %v3588, 0.036000773
        %3733 = vrot.lane.b32.xlu0 %v3701, 126
        %v3734 = vpop.permute.xlu0 %3733
        %3735 = vrot.lane.b32.xlu0 %v3702, 126
        %v3736 = vpop.permute.xlu0 %3735
        %3737 = vrot.lane.b32.xlu0 %v3703, 126
        %v3738 = vpop.permute.xlu0 %3737
        %3739 = vrot.lane.b32.xlu0 %v3704, 126
        %v3740 = vpop.permute.xlu0 %3739
        %3741 = vrot.lane.b32.xlu0 %v3705, 126
        %v3742 = vpop.permute.xlu0 %3741
        %3743 = vrot.lane.b32.xlu0 %v3706, 126
        %v3744 = vpop.permute.xlu0 %3743
        %3745 = vrot.lane.b32.xlu0 %v3707, 126
        %v3746 = vpop.permute.xlu0 %3745
        %3747 = vrot.lane.b32.xlu0 %v3708, 126
        %v3748 = vpop.permute.xlu0 %3747
        %3749 = vrot.lane.b32.xlu0 %v3709, 126
        %v3750 = vpop.permute.xlu0 %3749
        %3751 = vrot.lane.b32.xlu0 %v3710, 126
        %v3752 = vpop.permute.xlu0 %3751
        %3753 = vrot.lane.b32.xlu0 %v3711, 126
        %v3754 = vpop.permute.xlu0 %3753
        %3755 = vrot.lane.b32.xlu0 %v3712, 126
        %v3756 = vpop.permute.xlu0 %3755
        %3757 = vrot.lane.b32.xlu0 %v3713, 126
        %v3758 = vpop.permute.xlu0 %3757
        %3759 = vrot.lane.b32.xlu0 %v3714, 126
        %v3760 = vpop.permute.xlu0 %3759
        %3761 = vrot.lane.b32.xlu0 %v3715, 126
        %v3762 = vpop.permute.xlu0 %3761
        %3763 = vrot.lane.b32.xlu0 %v3716, 126
        %v3764 = vpop.permute.xlu0 %3763
        %v3781 = vadd.f32 %v3685, %v3734
        %v3782 = vadd.f32 %v3686, %v3736
        %v3783 = vadd.f32 %v3687, %v3738
        %v3784 = vadd.f32 %v3688, %v3740
        %v3785 = vadd.f32 %v3689, %v3742
        %v3786 = vadd.f32 %v3690, %v3744
        %v3787 = vadd.f32 %v3691, %v3746
        %v3788 = vadd.f32 %v3692, %v3748
        %v3789 = vadd.f32 %v3693, %v3750
        %v3790 = vadd.f32 %v3694, %v3752
        %v3791 = vadd.f32 %v3695, %v3754
        %v3792 = vadd.f32 %v3696, %v3756
        %v3793 = vadd.f32 %v3697, %v3758
        %v3794 = vadd.f32 %v3698, %v3760
        %v3795 = vadd.f32 %v3699, %v3762
        %v3796 = vadd.f32 %v3700, %v3764
        %v3797 = vmul.f32 %v3573, 0.10936069
        %v3798 = vmul.f32 %v3574, 0.10936069
        %v3799 = vmul.f32 %v3575, 0.10936069
        %v3800 = vmul.f32 %v3576, 0.10936069
        %v3801 = vmul.f32 %v3577, 0.10936069
        %v3802 = vmul.f32 %v3578, 0.10936069
        %v3803 = vmul.f32 %v3579, 0.10936069
        %v3804 = vmul.f32 %v3580, 0.10936069
        %v3805 = vmul.f32 %v3581, 0.10936069
        %v3806 = vmul.f32 %v3582, 0.10936069
        %v3807 = vmul.f32 %v3583, 0.10936069
        %v3808 = vmul.f32 %v3584, 0.10936069
        %v3809 = vmul.f32 %v3585, 0.10936069
        %v3810 = vmul.f32 %v3586, 0.10936069
        %v3811 = vmul.f32 %v3587, 0.10936069
        %v3812 = vmul.f32 %v3588, 0.10936069
        %3829 = vrot.lane.b32.xlu0 %v3797, 125
        %v3830 = vpop.permute.xlu0 %3829
        %3831 = vrot.lane.b32.xlu0 %v3798, 125
        %v3832 = vpop.permute.xlu0 %3831
        %3833 = vrot.lane.b32.xlu0 %v3799, 125
        %v3834 = vpop.permute.xlu0 %3833
        %3835 = vrot.lane.b32.xlu0 %v3800, 125
        %v3836 = vpop.permute.xlu0 %3835
        %3837 = vrot.lane.b32.xlu0 %v3801, 125
        %v3838 = vpop.permute.xlu0 %3837
        %3839 = vrot.lane.b32.xlu0 %v3802, 125
        %v3840 = vpop.permute.xlu0 %3839
        %3841 = vrot.lane.b32.xlu0 %v3803, 125
        %v3842 = vpop.permute.xlu0 %3841
        %3843 = vrot.lane.b32.xlu0 %v3804, 125
        %v3844 = vpop.permute.xlu0 %3843
        %3845 = vrot.lane.b32.xlu0 %v3805, 125
        %v3846 = vpop.permute.xlu0 %3845
        %3847 = vrot.lane.b32.xlu0 %v3806, 125
        %v3848 = vpop.permute.xlu0 %3847
        %3849 = vrot.lane.b32.xlu0 %v3807, 125
        %v3850 = vpop.permute.xlu0 %3849
        %3851 = vrot.lane.b32.xlu0 %v3808, 125
        %v3852 = vpop.permute.xlu0 %3851
        %3853 = vrot.lane.b32.xlu0 %v3809, 125
        %v3854 = vpop.permute.xlu0 %3853
        %3855 = vrot.lane.b32.xlu0 %v3810, 125
        %v3856 = vpop.permute.xlu0 %3855
        %3857 = vrot.lane.b32.xlu0 %v3811, 125
        %v3858 = vpop.permute.xlu0 %3857
        %3859 = vrot.lane.b32.xlu0 %v3812, 125
        %v3860 = vpop.permute.xlu0 %3859
        %v3877 = vadd.f32 %v3781, %v3830
        %v3878 = vadd.f32 %v3782, %v3832
        %v3879 = vadd.f32 %v3783, %v3834
        %v3880 = vadd.f32 %v3784, %v3836
        %v3881 = vadd.f32 %v3785, %v3838
        %v3882 = vadd.f32 %v3786, %v3840
        %v3883 = vadd.f32 %v3787, %v3842
        %v3884 = vadd.f32 %v3788, %v3844
        %v3885 = vadd.f32 %v3789, %v3846
        %v3886 = vadd.f32 %v3790, %v3848
        %v3887 = vadd.f32 %v3791, %v3850
        %v3888 = vadd.f32 %v3792, %v3852
        %v3889 = vadd.f32 %v3793, %v3854
        %v3890 = vadd.f32 %v3794, %v3856
        %v3891 = vadd.f32 %v3795, %v3858
        %v3892 = vadd.f32 %v3796, %v3860
        %v3893 = vmul.f32 %v3573, 0.21300554
        %v3894 = vmul.f32 %v3574, 0.21300554
        %v3895 = vmul.f32 %v3575, 0.21300554
        %v3896 = vmul.f32 %v3576, 0.21300554
        %v3897 = vmul.f32 %v3577, 0.21300554
        %v3898 = vmul.f32 %v3578, 0.21300554
        %v3899 = vmul.f32 %v3579, 0.21300554
        %v3900 = vmul.f32 %v3580, 0.21300554
        %v3901 = vmul.f32 %v3581, 0.21300554
        %v3902 = vmul.f32 %v3582, 0.21300554
        %v3903 = vmul.f32 %v3583, 0.21300554
        %v3904 = vmul.f32 %v3584, 0.21300554
        %v3905 = vmul.f32 %v3585, 0.21300554
        %v3906 = vmul.f32 %v3586, 0.21300554
        %v3907 = vmul.f32 %v3587, 0.21300554
        %v3908 = vmul.f32 %v3588, 0.21300554
        %3925 = vrot.lane.b32.xlu0 %v3893, 124
        %v3926 = vpop.permute.xlu0 %3925
        %3927 = vrot.lane.b32.xlu0 %v3894, 124
        %v3928 = vpop.permute.xlu0 %3927
        %3929 = vrot.lane.b32.xlu0 %v3895, 124
        %v3930 = vpop.permute.xlu0 %3929
        %3931 = vrot.lane.b32.xlu0 %v3896, 124
        %v3932 = vpop.permute.xlu0 %3931
        %3933 = vrot.lane.b32.xlu0 %v3897, 124
        %v3934 = vpop.permute.xlu0 %3933
        %3935 = vrot.lane.b32.xlu0 %v3898, 124
        %v3936 = vpop.permute.xlu0 %3935
        %3937 = vrot.lane.b32.xlu0 %v3899, 124
        %v3938 = vpop.permute.xlu0 %3937
        %3939 = vrot.lane.b32.xlu0 %v3900, 124
        %v3940 = vpop.permute.xlu0 %3939
        %3941 = vrot.lane.b32.xlu0 %v3901, 124
        %v3942 = vpop.permute.xlu0 %3941
        %3943 = vrot.lane.b32.xlu0 %v3902, 124
        %v3944 = vpop.permute.xlu0 %3943
        %3945 = vrot.lane.b32.xlu0 %v3903, 124
        %v3946 = vpop.permute.xlu0 %3945
        %3947 = vrot.lane.b32.xlu0 %v3904, 124
        %v3948 = vpop.permute.xlu0 %3947
        %3949 = vrot.lane.b32.xlu0 %v3905, 124
        %v3950 = vpop.permute.xlu0 %3949
        %3951 = vrot.lane.b32.xlu0 %v3906, 124
        %v3952 = vpop.permute.xlu0 %3951
        %3953 = vrot.lane.b32.xlu0 %v3907, 124
        %v3954 = vpop.permute.xlu0 %3953
        %3955 = vrot.lane.b32.xlu0 %v3908, 124
        %v3956 = vpop.permute.xlu0 %3955
        %v3973 = vadd.f32 %v3877, %v3926
        %v3974 = vadd.f32 %v3878, %v3928
        %v3975 = vadd.f32 %v3879, %v3930
        %v3976 = vadd.f32 %v3880, %v3932
        %v3977 = vadd.f32 %v3881, %v3934
        %v3978 = vadd.f32 %v3882, %v3936
        %v3979 = vadd.f32 %v3883, %v3938
        %v3980 = vadd.f32 %v3884, %v3940
        %v3981 = vadd.f32 %v3885, %v3942
        %v3982 = vadd.f32 %v3886, %v3944
        %v3983 = vadd.f32 %v3887, %v3946
        %v3984 = vadd.f32 %v3888, %v3948
        %v3985 = vadd.f32 %v3889, %v3950
        %v3986 = vadd.f32 %v3890, %v3952
        %v3987 = vadd.f32 %v3891, %v3954
        %v3988 = vadd.f32 %v3892, %v3956
        %v3989 = vmul.f32 %v3573, 0.26601171
        %v3990 = vmul.f32 %v3574, 0.26601171
        %v3991 = vmul.f32 %v3575, 0.26601171
        %v3992 = vmul.f32 %v3576, 0.26601171
        %v3993 = vmul.f32 %v3577, 0.26601171
        %v3994 = vmul.f32 %v3578, 0.26601171
        %v3995 = vmul.f32 %v3579, 0.26601171
        %v3996 = vmul.f32 %v3580, 0.26601171
        %v3997 = vmul.f32 %v3581, 0.26601171
        %v3998 = vmul.f32 %v3582, 0.26601171
        %v3999 = vmul.f32 %v3583, 0.26601171
        %v4000 = vmul.f32 %v3584, 0.26601171
        %v4001 = vmul.f32 %v3585, 0.26601171
        %v4002 = vmul.f32 %v3586, 0.26601171
        %v4003 = vmul.f32 %v3587, 0.26601171
        %v4004 = vmul.f32 %v3588, 0.26601171
        %4021 = vrot.lane.b32.xlu0 %v3989, 123
        %v4022 = vpop.permute.xlu0 %4021
        %4023 = vrot.lane.b32.xlu0 %v3990, 123
        %v4024 = vpop.permute.xlu0 %4023
        %4025 = vrot.lane.b32.xlu0 %v3991, 123
        %v4026 = vpop.permute.xlu0 %4025
        %4027 = vrot.lane.b32.xlu0 %v3992, 123
        %v4028 = vpop.permute.xlu0 %4027
        %4029 = vrot.lane.b32.xlu0 %v3993, 123
        %v4030 = vpop.permute.xlu0 %4029
        %4031 = vrot.lane.b32.xlu0 %v3994, 123
        %v4032 = vpop.permute.xlu0 %4031
        %4033 = vrot.lane.b32.xlu0 %v3995, 123
        %v4034 = vpop.permute.xlu0 %4033
        %4035 = vrot.lane.b32.xlu0 %v3996, 123
        %v4036 = vpop.permute.xlu0 %4035
        %4037 = vrot.lane.b32.xlu0 %v3997, 123
        %v4038 = vpop.permute.xlu0 %4037
        %4039 = vrot.lane.b32.xlu0 %v3998, 123
        %v4040 = vpop.permute.xlu0 %4039
        %4041 = vrot.lane.b32.xlu0 %v3999, 123
        %v4042 = vpop.permute.xlu0 %4041
        %4043 = vrot.lane.b32.xlu0 %v4000, 123
        %v4044 = vpop.permute.xlu0 %4043
        %4045 = vrot.lane.b32.xlu0 %v4001, 123
        %v4046 = vpop.permute.xlu0 %4045
        %4047 = vrot.lane.b32.xlu0 %v4002, 123
        %v4048 = vpop.permute.xlu0 %4047
        %4049 = vrot.lane.b32.xlu0 %v4003, 123
        %v4050 = vpop.permute.xlu0 %4049
        %4051 = vrot.lane.b32.xlu0 %v4004, 123
        %v4052 = vpop.permute.xlu0 %4051
        %v4069 = vadd.f32 %v3973, %v4022
        %v4070 = vadd.f32 %v3974, %v4024
        %v4071 = vadd.f32 %v3975, %v4026
        %v4072 = vadd.f32 %v3976, %v4028
        %v4073 = vadd.f32 %v3977, %v4030
        %v4074 = vadd.f32 %v3978, %v4032
        %v4075 = vadd.f32 %v3979, %v4034
        %v4076 = vadd.f32 %v3980, %v4036
        %v4077 = vadd.f32 %v3981, %v4038
        %v4078 = vadd.f32 %v3982, %v4040
        %v4079 = vadd.f32 %v3983, %v4042
        %v4080 = vadd.f32 %v3984, %v4044
        %v4081 = vadd.f32 %v3985, %v4046
        %v4082 = vadd.f32 %v3986, %v4048
        %v4083 = vadd.f32 %v3987, %v4050
        %v4084 = vadd.f32 %v3988, %v4052
        %4085 = vrot.lane.b32.xlu0 %v3893, 122
        %v4086 = vpop.permute.xlu0 %4085
        %4087 = vrot.lane.b32.xlu0 %v3894, 122
        %v4088 = vpop.permute.xlu0 %4087
        %4089 = vrot.lane.b32.xlu0 %v3895, 122
        %v4090 = vpop.permute.xlu0 %4089
        %4091 = vrot.lane.b32.xlu0 %v3896, 122
        %v4092 = vpop.permute.xlu0 %4091
        %4093 = vrot.lane.b32.xlu0 %v3897, 122
        %v4094 = vpop.permute.xlu0 %4093
        %4095 = vrot.lane.b32.xlu0 %v3898, 122
        %v4096 = vpop.permute.xlu0 %4095
        %4097 = vrot.lane.b32.xlu0 %v3899, 122
        %v4098 = vpop.permute.xlu0 %4097
        %4099 = vrot.lane.b32.xlu0 %v3900, 122
        %v4100 = vpop.permute.xlu0 %4099
        %4101 = vrot.lane.b32.xlu0 %v3901, 122
        %v4102 = vpop.permute.xlu0 %4101
        %4103 = vrot.lane.b32.xlu0 %v3902, 122
        %v4104 = vpop.permute.xlu0 %4103
        %4105 = vrot.lane.b32.xlu0 %v3903, 122
        %v4106 = vpop.permute.xlu0 %4105
        %4107 = vrot.lane.b32.xlu0 %v3904, 122
        %v4108 = vpop.permute.xlu0 %4107
        %4109 = vrot.lane.b32.xlu0 %v3905, 122
        %v4110 = vpop.permute.xlu0 %4109
        %4111 = vrot.lane.b32.xlu0 %v3906, 122
        %v4112 = vpop.permute.xlu0 %4111
        %4113 = vrot.lane.b32.xlu0 %v3907, 122
        %v4114 = vpop.permute.xlu0 %4113
        %4115 = vrot.lane.b32.xlu0 %v3908, 122
        %v4116 = vpop.permute.xlu0 %4115
        %v4133 = vadd.f32 %v4069, %v4086
        %v4134 = vadd.f32 %v4070, %v4088
        %v4135 = vadd.f32 %v4071, %v4090
        %v4136 = vadd.f32 %v4072, %v4092
        %v4137 = vadd.f32 %v4073, %v4094
        %v4138 = vadd.f32 %v4074, %v4096
        %v4139 = vadd.f32 %v4075, %v4098
        %v4140 = vadd.f32 %v4076, %v4100
        %v4141 = vadd.f32 %v4077, %v4102
        %v4142 = vadd.f32 %v4078, %v4104
        %v4143 = vadd.f32 %v4079, %v4106
        %v4144 = vadd.f32 %v4080, %v4108
        %v4145 = vadd.f32 %v4081, %v4110
        %v4146 = vadd.f32 %v4082, %v4112
        %v4147 = vadd.f32 %v4083, %v4114
        %v4148 = vadd.f32 %v4084, %v4116
        %4149 = vrot.lane.b32.xlu0 %v3797, 121
        %v4150 = vpop.permute.xlu0 %4149
        %4151 = vrot.lane.b32.xlu0 %v3798, 121
        %v4152 = vpop.permute.xlu0 %4151
        %4153 = vrot.lane.b32.xlu0 %v3799, 121
        %v4154 = vpop.permute.xlu0 %4153
        %4155 = vrot.lane.b32.xlu0 %v3800, 121
        %v4156 = vpop.permute.xlu0 %4155
        %4157 = vrot.lane.b32.xlu0 %v3801, 121
        %v4158 = vpop.permute.xlu0 %4157
        %4159 = vrot.lane.b32.xlu0 %v3802, 121
        %v4160 = vpop.permute.xlu0 %4159
        %4161 = vrot.lane.b32.xlu0 %v3803, 121
        %v4162 = vpop.permute.xlu0 %4161
        %4163 = vrot.lane.b32.xlu0 %v3804, 121
        %v4164 = vpop.permute.xlu0 %4163
        %4165 = vrot.lane.b32.xlu0 %v3805, 121
        %v4166 = vpop.permute.xlu0 %4165
        %4167 = vrot.lane.b32.xlu0 %v3806, 121
        %v4168 = vpop.permute.xlu0 %4167
        %4169 = vrot.lane.b32.xlu0 %v3807, 121
        %v4170 = vpop.permute.xlu0 %4169
        %4171 = vrot.lane.b32.xlu0 %v3808, 121
        %v4172 = vpop.permute.xlu0 %4171
        %4173 = vrot.lane.b32.xlu0 %v3809, 121
        %v4174 = vpop.permute.xlu0 %4173
        %4175 = vrot.lane.b32.xlu0 %v3810, 121
        %v4176 = vpop.permute.xlu0 %4175
        %4177 = vrot.lane.b32.xlu0 %v3811, 121
        %v4178 = vpop.permute.xlu0 %4177
        %4179 = vrot.lane.b32.xlu0 %v3812, 121
        %v4180 = vpop.permute.xlu0 %4179
        %v4197 = vadd.f32 %v4133, %v4150
        %v4198 = vadd.f32 %v4134, %v4152
        %v4199 = vadd.f32 %v4135, %v4154
        %v4200 = vadd.f32 %v4136, %v4156
        %v4201 = vadd.f32 %v4137, %v4158
        %v4202 = vadd.f32 %v4138, %v4160
        %v4203 = vadd.f32 %v4139, %v4162
        %v4204 = vadd.f32 %v4140, %v4164
        %v4205 = vadd.f32 %v4141, %v4166
        %v4206 = vadd.f32 %v4142, %v4168
        %v4207 = vadd.f32 %v4143, %v4170
        %v4208 = vadd.f32 %v4144, %v4172
        %v4209 = vadd.f32 %v4145, %v4174
        %v4210 = vadd.f32 %v4146, %v4176
        %v4211 = vadd.f32 %v4147, %v4178
        %v4212 = vadd.f32 %v4148, %v4180
        %4213 = vrot.lane.b32.xlu0 %v3701, 120
        %v4214 = vpop.permute.xlu0 %4213
        %4215 = vrot.lane.b32.xlu0 %v3702, 120
        %v4216 = vpop.permute.xlu0 %4215
        %4217 = vrot.lane.b32.xlu0 %v3703, 120
        %v4218 = vpop.permute.xlu0 %4217
        %4219 = vrot.lane.b32.xlu0 %v3704, 120
        %v4220 = vpop.permute.xlu0 %4219
        %4221 = vrot.lane.b32.xlu0 %v3705, 120
        %v4222 = vpop.permute.xlu0 %4221
        %4223 = vrot.lane.b32.xlu0 %v3706, 120
        %v4224 = vpop.permute.xlu0 %4223
        %4225 = vrot.lane.b32.xlu0 %v3707, 120
        %v4226 = vpop.permute.xlu0 %4225
        %4227 = vrot.lane.b32.xlu0 %v3708, 120
        %v4228 = vpop.permute.xlu0 %4227
        %4229 = vrot.lane.b32.xlu0 %v3709, 120
        %v4230 = vpop.permute.xlu0 %4229
        %4231 = vrot.lane.b32.xlu0 %v3710, 120
        %v4232 = vpop.permute.xlu0 %4231
        %4233 = vrot.lane.b32.xlu0 %v3711, 120
        %v4234 = vpop.permute.xlu0 %4233
        %4235 = vrot.lane.b32.xlu0 %v3712, 120
        %v4236 = vpop.permute.xlu0 %4235
        %4237 = vrot.lane.b32.xlu0 %v3713, 120
        %v4238 = vpop.permute.xlu0 %4237
        %4239 = vrot.lane.b32.xlu0 %v3714, 120
        %v4240 = vpop.permute.xlu0 %4239
        %4241 = vrot.lane.b32.xlu0 %v3715, 120
        %v4242 = vpop.permute.xlu0 %4241
        %4243 = vrot.lane.b32.xlu0 %v3716, 120
        %v4244 = vpop.permute.xlu0 %4243
        %v4261 = vadd.f32 %v4197, %v4214
        %v4262 = vadd.f32 %v4198, %v4216
        %v4263 = vadd.f32 %v4199, %v4218
        %v4264 = vadd.f32 %v4200, %v4220
        %v4265 = vadd.f32 %v4201, %v4222
        %v4266 = vadd.f32 %v4202, %v4224
        %v4267 = vadd.f32 %v4203, %v4226
        %v4268 = vadd.f32 %v4204, %v4228
        %v4269 = vadd.f32 %v4205, %v4230
        %v4270 = vadd.f32 %v4206, %v4232
        %v4271 = vadd.f32 %v4207, %v4234
        %v4272 = vadd.f32 %v4208, %v4236
        %v4273 = vadd.f32 %v4209, %v4238
        %v4274 = vadd.f32 %v4210, %v4240
        %v4275 = vadd.f32 %v4211, %v4242
        %v4276 = vadd.f32 %v4212, %v4244
        %4277 = vrot.lane.b32.xlu0 %v3605, 119
        %v4278 = vpop.permute.xlu0 %4277
        %4279 = vrot.lane.b32.xlu0 %v3606, 119
        %v4280 = vpop.permute.xlu0 %4279
        %4281 = vrot.lane.b32.xlu0 %v3607, 119
        %v4282 = vpop.permute.xlu0 %4281
        %4283 = vrot.lane.b32.xlu0 %v3608, 119
        %v4284 = vpop.permute.xlu0 %4283
        %4285 = vrot.lane.b32.xlu0 %v3609, 119
        %v4286 = vpop.permute.xlu0 %4285
        %4287 = vrot.lane.b32.xlu0 %v3610, 119
        %v4288 = vpop.permute.xlu0 %4287
        %4289 = vrot.lane.b32.xlu0 %v3611, 119
        %v4290 = vpop.permute.xlu0 %4289
        %4291 = vrot.lane.b32.xlu0 %v3612, 119
        %v4292 = vpop.permute.xlu0 %4291
        %4293 = vrot.lane.b32.xlu0 %v3613, 119
        %v4294 = vpop.permute.xlu0 %4293
        %4295 = vrot.lane.b32.xlu0 %v3614, 119
        %v4296 = vpop.permute.xlu0 %4295
        %4297 = vrot.lane.b32.xlu0 %v3615, 119
        %v4298 = vpop.permute.xlu0 %4297
        %4299 = vrot.lane.b32.xlu0 %v3616, 119
        %v4300 = vpop.permute.xlu0 %4299
        %4301 = vrot.lane.b32.xlu0 %v3617, 119
        %v4302 = vpop.permute.xlu0 %4301
        %4303 = vrot.lane.b32.xlu0 %v3618, 119
        %v4304 = vpop.permute.xlu0 %4303
        %4305 = vrot.lane.b32.xlu0 %v3619, 119
        %v4306 = vpop.permute.xlu0 %4305
        %4307 = vrot.lane.b32.xlu0 %v3620, 119
        %v4308 = vpop.permute.xlu0 %4307
        %v4325 = vadd.f32 %v4261, %v4278
        %v4326 = vadd.f32 %v4262, %v4280
        %v4327 = vadd.f32 %v4263, %v4282
        %v4328 = vadd.f32 %v4264, %v4284
        %v4329 = vadd.f32 %v4265, %v4286
        %v4330 = vadd.f32 %v4266, %v4288
        %v4331 = vadd.f32 %v4267, %v4290
        %v4332 = vadd.f32 %v4268, %v4292
        %v4333 = vadd.f32 %v4269, %v4294
        %v4334 = vadd.f32 %v4270, %v4296
        %v4335 = vadd.f32 %v4271, %v4298
        %v4336 = vadd.f32 %v4272, %v4300
        %v4337 = vadd.f32 %v4273, %v4302
        %v4338 = vadd.f32 %v4274, %v4304
        %v4339 = vadd.f32 %v4275, %v4306
        %v4340 = vadd.f32 %v4276, %v4308
        %4357 = vrot.lane.b32.xlu0 %v3589, 118
        %v4358 = vpop.permute.xlu0 %4357
        %4359 = vrot.lane.b32.xlu0 %v3590, 118
        %v4360 = vpop.permute.xlu0 %4359
        %4361 = vrot.lane.b32.xlu0 %v3591, 118
        %v4362 = vpop.permute.xlu0 %4361
        %4363 = vrot.lane.b32.xlu0 %v3592, 118
        %v4364 = vpop.permute.xlu0 %4363
        %4365 = vrot.lane.b32.xlu0 %v3593, 118
        %v4366 = vpop.permute.xlu0 %4365
        %4367 = vrot.lane.b32.xlu0 %v3594, 118
        %v4368 = vpop.permute.xlu0 %4367
        %4369 = vrot.lane.b32.xlu0 %v3595, 118
        %v4370 = vpop.permute.xlu0 %4369
        %4371 = vrot.lane.b32.xlu0 %v3596, 118
        %v4372 = vpop.permute.xlu0 %4371
        %4373 = vrot.lane.b32.xlu0 %v3597, 118
        %v4374 = vpop.permute.xlu0 %4373
        %4375 = vrot.lane.b32.xlu0 %v3598, 118
        %v4376 = vpop.permute.xlu0 %4375
        %4377 = vrot.lane.b32.xlu0 %v3599, 118
        %v4378 = vpop.permute.xlu0 %4377
        %4379 = vrot.lane.b32.xlu0 %v3600, 118
        %v4380 = vpop.permute.xlu0 %4379
        %4381 = vrot.lane.b32.xlu0 %v3601, 118
        %v4382 = vpop.permute.xlu0 %4381
        %4383 = vrot.lane.b32.xlu0 %v3602, 118
        %v4384 = vpop.permute.xlu0 %4383
        %4385 = vrot.lane.b32.xlu0 %v3603, 118
        %v4386 = vpop.permute.xlu0 %4385
        %4387 = vrot.lane.b32.xlu0 %v3604, 118
        %v4388 = vpop.permute.xlu0 %4387
        %v4405 = vadd.f32 %v4325, %v4358
        %v4406 = vadd.f32 %v4326, %v4360
        %v4407 = vadd.f32 %v4327, %v4362
        %v4408 = vadd.f32 %v4328, %v4364
        %v4409 = vadd.f32 %v4329, %v4366
        %v4410 = vadd.f32 %v4330, %v4368
        %v4411 = vadd.f32 %v4331, %v4370
        %v4412 = vadd.f32 %v4332, %v4372
        %v4413 = vadd.f32 %v4333, %v4374
        %v4414 = vadd.f32 %v4334, %v4376
        %v4415 = vadd.f32 %v4335, %v4378
        %v4416 = vadd.f32 %v4336, %v4380
        %v4417 = vadd.f32 %v4337, %v4382
        %v4418 = vadd.f32 %v4338, %v4384
        %v4419 = vadd.f32 %v4339, %v4386
        %v4420 = vadd.f32 %v4340, %v4388
        %4421 = vst.msk [vmem:[#allocation3] sm:$0xff] %vm1009, %v4405
        %4422 = vst.msk [vmem:[#allocation3 + $0x8] sm:$0xff] %vm1009, %v4406
        %4423 = vst.msk [vmem:[#allocation3 + $0x10] sm:$0xff] %vm1009, %v4407
        %4424 = vst.msk [vmem:[#allocation3 + $0x18] sm:$0x3] %vm1013, %v4408
        %4425 = vst.msk [vmem:[#allocation3 + $0x20] sm:$0xff] %vm1009, %v4409
        %4426 = vst.msk [vmem:[#allocation3 + $0x28] sm:$0xff] %vm1009, %v4410
        %4427 = vst.msk [vmem:[#allocation3 + $0x30] sm:$0xff] %vm1009, %v4411
        %4428 = vst.msk [vmem:[#allocation3 + $0x38] sm:$0x3] %vm1013, %v4412
        %4429 = vst.msk [vmem:[#allocation3 + $0x40] sm:$0xff] %vm1009, %v4413
        %4430 = vst.msk [vmem:[#allocation3 + $0x48] sm:$0xff] %vm1009, %v4414
        %4431 = vst.msk [vmem:[#allocation3 + $0x50] sm:$0xff] %vm1009, %v4415
        %4432 = vst.msk [vmem:[#allocation3 + $0x58] sm:$0x3] %vm1013, %v4416
        %4433 = vst.msk [vmem:[#allocation3 + $0x60] sm:$0xff] %vm1009, %v4417
        %4434 = vst.msk [vmem:[#allocation3 + $0x68] sm:$0xff] %vm1009, %v4418
        %4435 = vst.msk [vmem:[#allocation3 + $0x70] sm:$0xff] %vm1009, %v4419
        %4436 = vst.msk [vmem:[#allocation3 + $0x78] sm:$0x3] %vm1013, %v4420
        %v4437 = vld [vmem:[#allocation3] sm:$0xff]
        %v4438 = vld [vmem:[#allocation3 + $0x8] sm:$0xff]
        %v4439 = vld [vmem:[#allocation3 + $0x20] sm:$0xff]
        %v4440 = vld [vmem:[#allocation3 + $0x28] sm:$0xff]
        %v4441 = vld [vmem:[#allocation3 + $0x40] sm:$0xff]
        %v4442 = vld [vmem:[#allocation3 + $0x48] sm:$0xff]
        %v4443 = vld [vmem:[#allocation3 + $0x60] sm:$0xff]
        %v4444 = vld [vmem:[#allocation3 + $0x68] sm:$0xff]
        %v4445 = vmul.f32 %v4437, 0.0010283801
        %v4446 = vmul.f32 %v4438, 0.0010283801
        %v4447 = vmul.f32 %v4439, 0.0010283801
        %v4448 = vmul.f32 %v4440, 0.0010283801
        %v4449 = vmul.f32 %v4441, 0.0010283801
        %v4450 = vmul.f32 %v4442, 0.0010283801
        %v4451 = vmul.f32 %v4443, 0.0010283801
        %v4452 = vmul.f32 %v4444, 0.0010283801
        %v4453 = vld [vmem:[#allocation3 + $0x1] sm:$0xff]
        %v4454 = vld [vmem:[#allocation3 + $0x9] sm:$0xff]
        %v4455 = vld [vmem:[#allocation3 + $0x21] sm:$0xff]
        %v4456 = vld [vmem:[#allocation3 + $0x29] sm:$0xff]
        %v4457 = vld [vmem:[#allocation3 + $0x41] sm:$0xff]
        %v4458 = vld [vmem:[#allocation3 + $0x49] sm:$0xff]
        %v4459 = vld [vmem:[#allocation3 + $0x61] sm:$0xff]
        %v4460 = vld [vmem:[#allocation3 + $0x69] sm:$0xff]
        %v4461 = vmul.f32 %v4453, 0.007598758
        %v4462 = vmul.f32 %v4454, 0.007598758
        %v4463 = vmul.f32 %v4455, 0.007598758
        %v4464 = vmul.f32 %v4456, 0.007598758
        %v4465 = vmul.f32 %v4457, 0.007598758
        %v4466 = vmul.f32 %v4458, 0.007598758
        %v4467 = vmul.f32 %v4459, 0.007598758
        %v4468 = vmul.f32 %v4460, 0.007598758
        %v4469 = vadd.f32 %v4445, %v4461
        %v4470 = vadd.f32 %v4446, %v4462
        %v4471 = vadd.f32 %v4447, %v4463
        %v4472 = vadd.f32 %v4448, %v4464
        %v4473 = vadd.f32 %v4449, %v4465
        %v4474 = vadd.f32 %v4450, %v4466
        %v4475 = vadd.f32 %v4451, %v4467
        %v4476 = vadd.f32 %v4452, %v4468
        %v4477 = vld [vmem:[#allocation3 + $0x2] sm:$0xff]
        %v4478 = vld [vmem:[#allocation3 + $0xa] sm:$0xff]
        %v4479 = vld [vmem:[#allocation3 + $0x22] sm:$0xff]
        %v4480 = vld [vmem:[#allocation3 + $0x2a] sm:$0xff]
        %v4481 = vld [vmem:[#allocation3 + $0x42] sm:$0xff]
        %v4482 = vld [vmem:[#allocation3 + $0x4a] sm:$0xff]
        %v4483 = vld [vmem:[#allocation3 + $0x62] sm:$0xff]
        %v4484 = vld [vmem:[#allocation3 + $0x6a] sm:$0xff]
        %v4485 = vmul.f32 %v4477, 0.036000773
        %v4486 = vmul.f32 %v4478, 0.036000773
        %v4487 = vmul.f32 %v4479, 0.036000773
        %v4488 = vmul.f32 %v4480, 0.036000773
        %v4489 = vmul.f32 %v4481, 0.036000773
        %v4490 = vmul.f32 %v4482, 0.036000773
        %v4491 = vmul.f32 %v4483, 0.036000773
        %v4492 = vmul.f32 %v4484, 0.036000773
        %v4493 = vadd.f32 %v4469, %v4485
        %v4494 = vadd.f32 %v4470, %v4486
        %v4495 = vadd.f32 %v4471, %v4487
        %v4496 = vadd.f32 %v4472, %v4488
        %v4497 = vadd.f32 %v4473, %v4489
        %v4498 = vadd.f32 %v4474, %v4490
        %v4499 = vadd.f32 %v4475, %v4491
        %v4500 = vadd.f32 %v4476, %v4492
        %v4501 = vld [vmem:[#allocation3 + $0x3] sm:$0xff]
        %v4502 = vld [vmem:[#allocation3 + $0xb] sm:$0xff]
        %v4503 = vld [vmem:[#allocation3 + $0x23] sm:$0xff]
        %v4504 = vld [vmem:[#allocation3 + $0x2b] sm:$0xff]
        %v4505 = vld [vmem:[#allocation3 + $0x43] sm:$0xff]
        %v4506 = vld [vmem:[#allocation3 + $0x4b] sm:$0xff]
        %v4507 = vld [vmem:[#allocation3 + $0x63] sm:$0xff]
        %v4508 = vld [vmem:[#allocation3 + $0x6b] sm:$0xff]
        %v4509 = vmul.f32 %v4501, 0.10936069
        %v4510 = vmul.f32 %v4502, 0.10936069
        %v4511 = vmul.f32 %v4503, 0.10936069
        %v4512 = vmul.f32 %v4504, 0.10936069
        %v4513 = vmul.f32 %v4505, 0.10936069
        %v4514 = vmul.f32 %v4506, 0.10936069
        %v4515 = vmul.f32 %v4507, 0.10936069
        %v4516 = vmul.f32 %v4508, 0.10936069
        %v4517 = vadd.f32 %v4493, %v4509
        %v4518 = vadd.f32 %v4494, %v4510
        %v4519 = vadd.f32 %v4495, %v4511
        %v4520 = vadd.f32 %v4496, %v4512
        %v4521 = vadd.f32 %v4497, %v4513
        %v4522 = vadd.f32 %v4498, %v4514
        %v4523 = vadd.f32 %v4499, %v4515
        %v4524 = vadd.f32 %v4500, %v4516
        %v4525 = vld [vmem:[#allocation3 + $0x4] sm:$0xff]
        %v4526 = vld [vmem:[#allocation3 + $0xc] sm:$0xff]
        %v4527 = vld [vmem:[#allocation3 + $0x24] sm:$0xff]
        %v4528 = vld [vmem:[#allocation3 + $0x2c] sm:$0xff]
        %v4529 = vld [vmem:[#allocation3 + $0x44] sm:$0xff]
        %v4530 = vld [vmem:[#allocation3 + $0x4c] sm:$0xff]
        %v4531 = vld [vmem:[#allocation3 + $0x64] sm:$0xff]
        %v4532 = vld [vmem:[#allocation3 + $0x6c] sm:$0xff]
        %v4533 = vmul.f32 %v4525, 0.21300554
        %v4534 = vmul.f32 %v4526, 0.21300554
        %v4535 = vmul.f32 %v4527, 0.21300554
        %v4536 = vmul.f32 %v4528, 0.21300554
        %v4537 = vmul.f32 %v4529, 0.21300554
        %v4538 = vmul.f32 %v4530, 0.21300554
        %v4539 = vmul.f32 %v4531, 0.21300554
        %v4540 = vmul.f32 %v4532, 0.21300554
        %v4541 = vadd.f32 %v4517, %v4533
        %v4542 = vadd.f32 %v4518, %v4534
        %v4543 = vadd.f32 %v4519, %v4535
        %v4544 = vadd.f32 %v4520, %v4536
        %v4545 = vadd.f32 %v4521, %v4537
        %v4546 = vadd.f32 %v4522, %v4538
        %v4547 = vadd.f32 %v4523, %v4539
        %v4548 = vadd.f32 %v4524, %v4540
        %v4549 = vld [vmem:[#allocation3 + $0x5] sm:$0xff]
        %v4550 = vld [vmem:[#allocation3 + $0xd] sm:$0xff]
        %v4551 = vld [vmem:[#allocation3 + $0x25] sm:$0xff]
        %v4552 = vld [vmem:[#allocation3 + $0x2d] sm:$0xff]
        %v4553 = vld [vmem:[#allocation3 + $0x45] sm:$0xff]
        %v4554 = vld [vmem:[#allocation3 + $0x4d] sm:$0xff]
        %v4555 = vld [vmem:[#allocation3 + $0x65] sm:$0xff]
        %v4556 = vld [vmem:[#allocation3 + $0x6d] sm:$0xff]
        %v4557 = vmul.f32 %v4549, 0.26601171
        %v4558 = vmul.f32 %v4550, 0.26601171
        %v4559 = vmul.f32 %v4551, 0.26601171
        %v4560 = vmul.f32 %v4552, 0.26601171
        %v4561 = vmul.f32 %v4553, 0.26601171
        %v4562 = vmul.f32 %v4554, 0.26601171
        %v4563 = vmul.f32 %v4555, 0.26601171
        %v4564 = vmul.f32 %v4556, 0.26601171
        %v4565 = vadd.f32 %v4541, %v4557
        %v4566 = vadd.f32 %v4542, %v4558
        %v4567 = vadd.f32 %v4543, %v4559
        %v4568 = vadd.f32 %v4544, %v4560
        %v4569 = vadd.f32 %v4545, %v4561
        %v4570 = vadd.f32 %v4546, %v4562
        %v4571 = vadd.f32 %v4547, %v4563
        %v4572 = vadd.f32 %v4548, %v4564
        %v4573 = vld [vmem:[#allocation3 + $0x6] sm:$0xff]
        %v4574 = vld [vmem:[#allocation3 + $0xe] sm:$0xff]
        %v4575 = vld [vmem:[#allocation3 + $0x26] sm:$0xff]
        %v4576 = vld [vmem:[#allocation3 + $0x2e] sm:$0xff]
        %v4577 = vld [vmem:[#allocation3 + $0x46] sm:$0xff]
        %v4578 = vld [vmem:[#allocation3 + $0x4e] sm:$0xff]
        %v4579 = vld [vmem:[#allocation3 + $0x66] sm:$0xff]
        %v4580 = vld [vmem:[#allocation3 + $0x6e] sm:$0xff]
        %v4581 = vmul.f32 %v4573, 0.21300554
        %v4582 = vmul.f32 %v4574, 0.21300554
        %v4583 = vmul.f32 %v4575, 0.21300554
        %v4584 = vmul.f32 %v4576, 0.21300554
        %v4585 = vmul.f32 %v4577, 0.21300554
        %v4586 = vmul.f32 %v4578, 0.21300554
        %v4587 = vmul.f32 %v4579, 0.21300554
        %v4588 = vmul.f32 %v4580, 0.21300554
        %v4589 = vadd.f32 %v4565, %v4581
        %v4590 = vadd.f32 %v4566, %v4582
        %v4591 = vadd.f32 %v4567, %v4583
        %v4592 = vadd.f32 %v4568, %v4584
        %v4593 = vadd.f32 %v4569, %v4585
        %v4594 = vadd.f32 %v4570, %v4586
        %v4595 = vadd.f32 %v4571, %v4587
        %v4596 = vadd.f32 %v4572, %v4588
        %v4597 = vld [vmem:[#allocation3 + $0x7] sm:$0xff]
        %v4598 = vld [vmem:[#allocation3 + $0xf] sm:$0xff]
        %v4599 = vld [vmem:[#allocation3 + $0x27] sm:$0xff]
        %v4600 = vld [vmem:[#allocation3 + $0x2f] sm:$0xff]
        %v4601 = vld [vmem:[#allocation3 + $0x47] sm:$0xff]
        %v4602 = vld [vmem:[#allocation3 + $0x4f] sm:$0xff]
        %v4603 = vld [vmem:[#allocation3 + $0x67] sm:$0xff]
        %v4604 = vld [vmem:[#allocation3 + $0x6f] sm:$0xff]
        %v4605 = vmul.f32 %v4597, 0.10936069
        %v4606 = vmul.f32 %v4598, 0.10936069
        %v4607 = vmul.f32 %v4599, 0.10936069
        %v4608 = vmul.f32 %v4600, 0.10936069
        %v4609 = vmul.f32 %v4601, 0.10936069
        %v4610 = vmul.f32 %v4602, 0.10936069
        %v4611 = vmul.f32 %v4603, 0.10936069
        %v4612 = vmul.f32 %v4604, 0.10936069
        %v4613 = vadd.f32 %v4589, %v4605
        %v4614 = vadd.f32 %v4590, %v4606
        %v4615 = vadd.f32 %v4591, %v4607
        %v4616 = vadd.f32 %v4592, %v4608
        %v4617 = vadd.f32 %v4593, %v4609
        %v4618 = vadd.f32 %v4594, %v4610
        %v4619 = vadd.f32 %v4595, %v4611
        %v4620 = vadd.f32 %v4596, %v4612
        %v4621 = vld [vmem:[#allocation3 + $0x10] sm:$0xff]
        %v4622 = vld [vmem:[#allocation3 + $0x30] sm:$0xff]
        %v4623 = vld [vmem:[#allocation3 + $0x50] sm:$0xff]
        %v4624 = vld [vmem:[#allocation3 + $0x70] sm:$0xff]
        %v4625 = vmul.f32 %v4438, 0.036000773
        %v4626 = vmul.f32 %v4621, 0.036000773
        %v4627 = vmul.f32 %v4440, 0.036000773
        %v4628 = vmul.f32 %v4622, 0.036000773
        %v4629 = vmul.f32 %v4442, 0.036000773
        %v4630 = vmul.f32 %v4623, 0.036000773
        %v4631 = vmul.f32 %v4444, 0.036000773
        %v4632 = vmul.f32 %v4624, 0.036000773
        %v4633 = vadd.f32 %v4613, %v4625
        %v4634 = vadd.f32 %v4614, %v4626
        %v4635 = vadd.f32 %v4615, %v4627
        %v4636 = vadd.f32 %v4616, %v4628
        %v4637 = vadd.f32 %v4617, %v4629
        %v4638 = vadd.f32 %v4618, %v4630
        %v4639 = vadd.f32 %v4619, %v4631
        %v4640 = vadd.f32 %v4620, %v4632
        %v4641 = vld [vmem:[#allocation3 + $0x11] sm:$0xff]
        %v4642 = vld [vmem:[#allocation3 + $0x31] sm:$0xff]
        %v4643 = vld [vmem:[#allocation3 + $0x51] sm:$0xff]
        %v4644 = vld [vmem:[#allocation3 + $0x71] sm:$0xff]
        %v4645 = vmul.f32 %v4641, 0.007598758
        %v4646 = vmul.f32 %v4642, 0.007598758
        %v4647 = vmul.f32 %v4643, 0.007598758
        %v4648 = vmul.f32 %v4644, 0.007598758
        %v4649 = vadd.f32 %v4633, %v4462
        %v4650 = vadd.f32 %v4634, %v4645
        %v4651 = vadd.f32 %v4635, %v4464
        %v4652 = vadd.f32 %v4636, %v4646
        %v4653 = vadd.f32 %v4637, %v4466
        %v4654 = vadd.f32 %v4638, %v4647
        %v4655 = vadd.f32 %v4639, %v4468
        %v4656 = vadd.f32 %v4640, %v4648
        %v4657 = vld [vmem:[#allocation3 + $0x12] sm:$0xff]
        %v4658 = vld [vmem:[#allocation3 + $0x32] sm:$0xff]
        %v4659 = vld [vmem:[#allocation3 + $0x52] sm:$0xff]
        %v4660 = vld [vmem:[#allocation3 + $0x72] sm:$0xff]
        %v4661 = vmul.f32 %v4478, 0.0010283801
        %v4662 = vmul.f32 %v4657, 0.0010283801
        %v4663 = vmul.f32 %v4480, 0.0010283801
        %v4664 = vmul.f32 %v4658, 0.0010283801
        %v4665 = vmul.f32 %v4482, 0.0010283801
        %v4666 = vmul.f32 %v4659, 0.0010283801
        %v4667 = vmul.f32 %v4484, 0.0010283801
        %v4668 = vmul.f32 %v4660, 0.0010283801
        %v4669 = vadd.f32 %v4649, %v4661
        %v4670 = vadd.f32 %v4650, %v4662
        %v4671 = vadd.f32 %v4651, %v4663
        %v4672 = vadd.f32 %v4652, %v4664
        %v4673 = vadd.f32 %v4653, %v4665
        %v4674 = vadd.f32 %v4654, %v4666
        %v4675 = vadd.f32 %v4655, %v4667
        %v4676 = vadd.f32 %v4656, %v4668
        %v4677 = vmul.f32 %v2387, %v2387
        %v4678 = vmul.f32 %v2388, %v2388
        %v4679 = vmul.f32 %v2389, %v2389
        %v4680 = vmul.f32 %v2390, %v2390
        %v4681 = vmul.f32 %v2391, %v2391
        %v4682 = vmul.f32 %v2392, %v2392
        %v4683 = vmul.f32 %v2393, %v2393
        %v4684 = vmul.f32 %v2394, %v2394
        %v4685 = vmul.f32 %v2395, %v2395
        %v4686 = vmul.f32 %v2396, %v2396
        %v4687 = vmul.f32 %v2397, %v2397
        %v4688 = vmul.f32 %v2398, %v2398
        %v4689 = vmul.f32 %v2399, %v2399
        %v4690 = vmul.f32 %v2400, %v2400
        %v4691 = vmul.f32 %v2401, %v2401
        %v4692 = vmul.f32 %v2402, %v2402
        %4693 = vst.msk [vmem:[#allocation2] sm:$0xff] %vm2419, %v4677
        %4694 = vst.msk [vmem:[#allocation2 + $0x8] sm:$0xff] %vm2419, %v4678
        %4695 = vst.msk [vmem:[#allocation2 + $0x10] sm:$0xff] %vm2419, %v4679
        %4696 = vst.msk [vmem:[#allocation2 + $0x18] sm:$0x3] %vm2423, %v4680
        %4697 = vst.msk [vmem:[#allocation2 + $0x20] sm:$0xff] %vm2419, %v4681
        %4698 = vst.msk [vmem:[#allocation2 + $0x28] sm:$0xff] %vm2419, %v4682
        %4699 = vst.msk [vmem:[#allocation2 + $0x30] sm:$0xff] %vm2419, %v4683
        %4700 = vst.msk [vmem:[#allocation2 + $0x38] sm:$0x3] %vm2423, %v4684
        %4701 = vst.msk [vmem:[#allocation2 + $0x40] sm:$0xff] %vm2419, %v4685
        %4702 = vst.msk [vmem:[#allocation2 + $0x48] sm:$0xff] %vm2419, %v4686
        %4703 = vst.msk [vmem:[#allocation2 + $0x50] sm:$0xff] %vm2419, %v4687
        %4704 = vst.msk [vmem:[#allocation2 + $0x58] sm:$0x3] %vm2423, %v4688
        %4705 = vst.msk [vmem:[#allocation2 + $0x60] sm:$0xff] %vm2419, %v4689
        %4706 = vst.msk [vmem:[#allocation2 + $0x68] sm:$0xff] %vm2419, %v4690
        %4707 = vst.msk [vmem:[#allocation2 + $0x70] sm:$0xff] %vm2419, %v4691
        %4708 = vst.msk [vmem:[#allocation2 + $0x78] sm:$0x3] %vm2423, %v4692
        %v4709 = vld [vmem:[#allocation2] sm:$0xff]
        %v4710 = vld [vmem:[#allocation2 + $0x8] sm:$0xff]
        %v4711 = vld [vmem:[#allocation2 + $0x10] sm:$0xff]
        %v4712 = vld [vmem:[#allocation2 + $0x18] sm:$0x3]
        %v4713 = vld [vmem:[#allocation2 + $0x20] sm:$0xff]
        %v4714 = vld [vmem:[#allocation2 + $0x28] sm:$0xff]
        %v4715 = vld [vmem:[#allocation2 + $0x30] sm:$0xff]
        %v4716 = vld [vmem:[#allocation2 + $0x38] sm:$0x3]
        %v4717 = vld [vmem:[#allocation2 + $0x40] sm:$0xff]
        %v4718 = vld [vmem:[#allocation2 + $0x48] sm:$0xff]
        %v4719 = vld [vmem:[#allocation2 + $0x50] sm:$0xff]
        %v4720 = vld [vmem:[#allocation2 + $0x58] sm:$0x3]
        %v4721 = vld [vmem:[#allocation2 + $0x60] sm:$0xff]
        %v4722 = vld [vmem:[#allocation2 + $0x68] sm:$0xff]
        %v4723 = vld [vmem:[#allocation2 + $0x70] sm:$0xff]
        %v4724 = vld [vmem:[#allocation2 + $0x78] sm:$0x3]
        %v4725 = vmul.f32 %v4709, 0.0010283801
        %v4726 = vmul.f32 %v4710, 0.0010283801
        %v4727 = vmul.f32 %v4711, 0.0010283801
        %v4728 = vmul.f32 %v4712, 0.0010283801
        %v4729 = vmul.f32 %v4713, 0.0010283801
        %v4730 = vmul.f32 %v4714, 0.0010283801
        %v4731 = vmul.f32 %v4715, 0.0010283801
        %v4732 = vmul.f32 %v4716, 0.0010283801
        %v4733 = vmul.f32 %v4717, 0.0010283801
        %v4734 = vmul.f32 %v4718, 0.0010283801
        %v4735 = vmul.f32 %v4719, 0.0010283801
        %v4736 = vmul.f32 %v4720, 0.0010283801
        %v4737 = vmul.f32 %v4721, 0.0010283801
        %v4738 = vmul.f32 %v4722, 0.0010283801
        %v4739 = vmul.f32 %v4723, 0.0010283801
        %v4740 = vmul.f32 %v4724, 0.0010283801
        %v4741 = vmul.f32 %v4709, 0.007598758
        %v4742 = vmul.f32 %v4710, 0.007598758
        %v4743 = vmul.f32 %v4711, 0.007598758
        %v4744 = vmul.f32 %v4712, 0.007598758
        %v4745 = vmul.f32 %v4713, 0.007598758
        %v4746 = vmul.f32 %v4714, 0.007598758
        %v4747 = vmul.f32 %v4715, 0.007598758
        %v4748 = vmul.f32 %v4716, 0.007598758
        %v4749 = vmul.f32 %v4717, 0.007598758
        %v4750 = vmul.f32 %v4718, 0.007598758
        %v4751 = vmul.f32 %v4719, 0.007598758
        %v4752 = vmul.f32 %v4720, 0.007598758
        %v4753 = vmul.f32 %v4721, 0.007598758
        %v4754 = vmul.f32 %v4722, 0.007598758
        %v4755 = vmul.f32 %v4723, 0.007598758
        %v4756 = vmul.f32 %v4724, 0.007598758
        %4773 = vrot.lane.b32.xlu0 %v4741, 127
        %v4774 = vpop.permute.xlu0 %4773
        %4775 = vrot.lane.b32.xlu0 %v4742, 127
        %v4776 = vpop.permute.xlu0 %4775
        %4777 = vrot.lane.b32.xlu0 %v4743, 127
        %v4778 = vpop.permute.xlu0 %4777
        %4779 = vrot.lane.b32.xlu0 %v4744, 127
        %v4780 = vpop.permute.xlu0 %4779
        %4781 = vrot.lane.b32.xlu0 %v4745, 127
        %v4782 = vpop.permute.xlu0 %4781
        %4783 = vrot.lane.b32.xlu0 %v4746, 127
        %v4784 = vpop.permute.xlu0 %4783
        %4785 = vrot.lane.b32.xlu0 %v4747, 127
        %v4786 = vpop.permute.xlu0 %4785
        %4787 = vrot.lane.b32.xlu0 %v4748, 127
        %v4788 = vpop.permute.xlu0 %4787
        %4789 = vrot.lane.b32.xlu0 %v4749, 127
        %v4790 = vpop.permute.xlu0 %4789
        %4791 = vrot.lane.b32.xlu0 %v4750, 127
        %v4792 = vpop.permute.xlu0 %4791
        %4793 = vrot.lane.b32.xlu0 %v4751, 127
        %v4794 = vpop.permute.xlu0 %4793
        %4795 = vrot.lane.b32.xlu0 %v4752, 127
        %v4796 = vpop.permute.xlu0 %4795
        %4797 = vrot.lane.b32.xlu0 %v4753, 127
        %v4798 = vpop.permute.xlu0 %4797
        %4799 = vrot.lane.b32.xlu0 %v4754, 127
        %v4800 = vpop.permute.xlu0 %4799
        %4801 = vrot.lane.b32.xlu0 %v4755, 127
        %v4802 = vpop.permute.xlu0 %4801
        %4803 = vrot.lane.b32.xlu0 %v4756, 127
        %v4804 = vpop.permute.xlu0 %4803
        %v4821 = vadd.f32 %v4725, %v4774
        %v4822 = vadd.f32 %v4726, %v4776
        %v4823 = vadd.f32 %v4727, %v4778
        %v4824 = vadd.f32 %v4728, %v4780
        %v4825 = vadd.f32 %v4729, %v4782
        %v4826 = vadd.f32 %v4730, %v4784
        %v4827 = vadd.f32 %v4731, %v4786
        %v4828 = vadd.f32 %v4732, %v4788
        %v4829 = vadd.f32 %v4733, %v4790
        %v4830 = vadd.f32 %v4734, %v4792
        %v4831 = vadd.f32 %v4735, %v4794
        %v4832 = vadd.f32 %v4736, %v4796
        %v4833 = vadd.f32 %v4737, %v4798
        %v4834 = vadd.f32 %v4738, %v4800
        %v4835 = vadd.f32 %v4739, %v4802
        %v4836 = vadd.f32 %v4740, %v4804
        %v4837 = vmul.f32 %v4709, 0.036000773
        %v4838 = vmul.f32 %v4710, 0.036000773
        %v4839 = vmul.f32 %v4711, 0.036000773
        %v4840 = vmul.f32 %v4712, 0.036000773
        %v4841 = vmul.f32 %v4713, 0.036000773
        %v4842 = vmul.f32 %v4714, 0.036000773
        %v4843 = vmul.f32 %v4715, 0.036000773
        %v4844 = vmul.f32 %v4716, 0.036000773
        %v4845 = vmul.f32 %v4717, 0.036000773
        %v4846 = vmul.f32 %v4718, 0.036000773
        %v4847 = vmul.f32 %v4719, 0.036000773
        %v4848 = vmul.f32 %v4720, 0.036000773
        %v4849 = vmul.f32 %v4721, 0.036000773
        %v4850 = vmul.f32 %v4722, 0.036000773
        %v4851 = vmul.f32 %v4723, 0.036000773
        %v4852 = vmul.f32 %v4724, 0.036000773
        %4869 = vrot.lane.b32.xlu0 %v4837, 126
        %v4870 = vpop.permute.xlu0 %4869
        %4871 = vrot.lane.b32.xlu0 %v4838, 126
        %v4872 = vpop.permute.xlu0 %4871
        %4873 = vrot.lane.b32.xlu0 %v4839, 126
        %v4874 = vpop.permute.xlu0 %4873
        %4875 = vrot.lane.b32.xlu0 %v4840, 126
        %v4876 = vpop.permute.xlu0 %4875
        %4877 = vrot.lane.b32.xlu0 %v4841, 126
        %v4878 = vpop.permute.xlu0 %4877
        %4879 = vrot.lane.b32.xlu0 %v4842, 126
        %v4880 = vpop.permute.xlu0 %4879
        %4881 = vrot.lane.b32.xlu0 %v4843, 126
        %v4882 = vpop.permute.xlu0 %4881
        %4883 = vrot.lane.b32.xlu0 %v4844, 126
        %v4884 = vpop.permute.xlu0 %4883
        %4885 = vrot.lane.b32.xlu0 %v4845, 126
        %v4886 = vpop.permute.xlu0 %4885
        %4887 = vrot.lane.b32.xlu0 %v4846, 126
        %v4888 = vpop.permute.xlu0 %4887
        %4889 = vrot.lane.b32.xlu0 %v4847, 126
        %v4890 = vpop.permute.xlu0 %4889
        %4891 = vrot.lane.b32.xlu0 %v4848, 126
        %v4892 = vpop.permute.xlu0 %4891
        %4893 = vrot.lane.b32.xlu0 %v4849, 126
        %v4894 = vpop.permute.xlu0 %4893
        %4895 = vrot.lane.b32.xlu0 %v4850, 126
        %v4896 = vpop.permute.xlu0 %4895
        %4897 = vrot.lane.b32.xlu0 %v4851, 126
        %v4898 = vpop.permute.xlu0 %4897
        %4899 = vrot.lane.b32.xlu0 %v4852, 126
        %v4900 = vpop.permute.xlu0 %4899
        %v4917 = vadd.f32 %v4821, %v4870
        %v4918 = vadd.f32 %v4822, %v4872
        %v4919 = vadd.f32 %v4823, %v4874
        %v4920 = vadd.f32 %v4824, %v4876
        %v4921 = vadd.f32 %v4825, %v4878
        %v4922 = vadd.f32 %v4826, %v4880
        %v4923 = vadd.f32 %v4827, %v4882
        %v4924 = vadd.f32 %v4828, %v4884
        %v4925 = vadd.f32 %v4829, %v4886
        %v4926 = vadd.f32 %v4830, %v4888
        %v4927 = vadd.f32 %v4831, %v4890
        %v4928 = vadd.f32 %v4832, %v4892
        %v4929 = vadd.f32 %v4833, %v4894
        %v4930 = vadd.f32 %v4834, %v4896
        %v4931 = vadd.f32 %v4835, %v4898
        %v4932 = vadd.f32 %v4836, %v4900
        %v4933 = vmul.f32 %v4709, 0.10936069
        %v4934 = vmul.f32 %v4710, 0.10936069
        %v4935 = vmul.f32 %v4711, 0.10936069
        %v4936 = vmul.f32 %v4712, 0.10936069
        %v4937 = vmul.f32 %v4713, 0.10936069
        %v4938 = vmul.f32 %v4714, 0.10936069
        %v4939 = vmul.f32 %v4715, 0.10936069
        %v4940 = vmul.f32 %v4716, 0.10936069
        %v4941 = vmul.f32 %v4717, 0.10936069
        %v4942 = vmul.f32 %v4718, 0.10936069
        %v4943 = vmul.f32 %v4719, 0.10936069
        %v4944 = vmul.f32 %v4720, 0.10936069
        %v4945 = vmul.f32 %v4721, 0.10936069
        %v4946 = vmul.f32 %v4722, 0.10936069
        %v4947 = vmul.f32 %v4723, 0.10936069
        %v4948 = vmul.f32 %v4724, 0.10936069
        %4965 = vrot.lane.b32.xlu0 %v4933, 125
        %v4966 = vpop.permute.xlu0 %4965
        %4967 = vrot.lane.b32.xlu0 %v4934, 125
        %v4968 = vpop.permute.xlu0 %4967
        %4969 = vrot.lane.b32.xlu0 %v4935, 125
        %v4970 = vpop.permute.xlu0 %4969
        %4971 = vrot.lane.b32.xlu0 %v4936, 125
        %v4972 = vpop.permute.xlu0 %4971
        %4973 = vrot.lane.b32.xlu0 %v4937, 125
        %v4974 = vpop.permute.xlu0 %4973
        %4975 = vrot.lane.b32.xlu0 %v4938, 125
        %v4976 = vpop.permute.xlu0 %4975
        %4977 = vrot.lane.b32.xlu0 %v4939, 125
        %v4978 = vpop.permute.xlu0 %4977
        %4979 = vrot.lane.b32.xlu0 %v4940, 125
        %v4980 = vpop.permute.xlu0 %4979
        %4981 = vrot.lane.b32.xlu0 %v4941, 125
        %v4982 = vpop.permute.xlu0 %4981
        %4983 = vrot.lane.b32.xlu0 %v4942, 125
        %v4984 = vpop.permute.xlu0 %4983
        %4985 = vrot.lane.b32.xlu0 %v4943, 125
        %v4986 = vpop.permute.xlu0 %4985
        %4987 = vrot.lane.b32.xlu0 %v4944, 125
        %v4988 = vpop.permute.xlu0 %4987
        %4989 = vrot.lane.b32.xlu0 %v4945, 125
        %v4990 = vpop.permute.xlu0 %4989
        %4991 = vrot.lane.b32.xlu0 %v4946, 125
        %v4992 = vpop.permute.xlu0 %4991
        %4993 = vrot.lane.b32.xlu0 %v4947, 125
        %v4994 = vpop.permute.xlu0 %4993
        %4995 = vrot.lane.b32.xlu0 %v4948, 125
        %v4996 = vpop.permute.xlu0 %4995
        %v5013 = vadd.f32 %v4917, %v4966
        %v5014 = vadd.f32 %v4918, %v4968
        %v5015 = vadd.f32 %v4919, %v4970
        %v5016 = vadd.f32 %v4920, %v4972
        %v5017 = vadd.f32 %v4921, %v4974
        %v5018 = vadd.f32 %v4922, %v4976
        %v5019 = vadd.f32 %v4923, %v4978
        %v5020 = vadd.f32 %v4924, %v4980
        %v5021 = vadd.f32 %v4925, %v4982
        %v5022 = vadd.f32 %v4926, %v4984
        %v5023 = vadd.f32 %v4927, %v4986
        %v5024 = vadd.f32 %v4928, %v4988
        %v5025 = vadd.f32 %v4929, %v4990
        %v5026 = vadd.f32 %v4930, %v4992
        %v5027 = vadd.f32 %v4931, %v4994
        %v5028 = vadd.f32 %v4932, %v4996
        %v5029 = vmul.f32 %v4709, 0.21300554
        %v5030 = vmul.f32 %v4710, 0.21300554
        %v5031 = vmul.f32 %v4711, 0.21300554
        %v5032 = vmul.f32 %v4712, 0.21300554
        %v5033 = vmul.f32 %v4713, 0.21300554
        %v5034 = vmul.f32 %v4714, 0.21300554
        %v5035 = vmul.f32 %v4715, 0.21300554
        %v5036 = vmul.f32 %v4716, 0.21300554
        %v5037 = vmul.f32 %v4717, 0.21300554
        %v5038 = vmul.f32 %v4718, 0.21300554
        %v5039 = vmul.f32 %v4719, 0.21300554
        %v5040 = vmul.f32 %v4720, 0.21300554
        %v5041 = vmul.f32 %v4721, 0.21300554
        %v5042 = vmul.f32 %v4722, 0.21300554
        %v5043 = vmul.f32 %v4723, 0.21300554
        %v5044 = vmul.f32 %v4724, 0.21300554
        %5061 = vrot.lane.b32.xlu0 %v5029, 124
        %v5062 = vpop.permute.xlu0 %5061
        %5063 = vrot.lane.b32.xlu0 %v5030, 124
        %v5064 = vpop.permute.xlu0 %5063
        %5065 = vrot.lane.b32.xlu0 %v5031, 124
        %v5066 = vpop.permute.xlu0 %5065
        %5067 = vrot.lane.b32.xlu0 %v5032, 124
        %v5068 = vpop.permute.xlu0 %5067
        %5069 = vrot.lane.b32.xlu0 %v5033, 124
        %v5070 = vpop.permute.xlu0 %5069
        %5071 = vrot.lane.b32.xlu0 %v5034, 124
        %v5072 = vpop.permute.xlu0 %5071
        %5073 = vrot.lane.b32.xlu0 %v5035, 124
        %v5074 = vpop.permute.xlu0 %5073
        %5075 = vrot.lane.b32.xlu0 %v5036, 124
        %v5076 = vpop.permute.xlu0 %5075
        %5077 = vrot.lane.b32.xlu0 %v5037, 124
        %v5078 = vpop.permute.xlu0 %5077
        %5079 = vrot.lane.b32.xlu0 %v5038, 124
        %v5080 = vpop.permute.xlu0 %5079
        %5081 = vrot.lane.b32.xlu0 %v5039, 124
        %v5082 = vpop.permute.xlu0 %5081
        %5083 = vrot.lane.b32.xlu0 %v5040, 124
        %v5084 = vpop.permute.xlu0 %5083
        %5085 = vrot.lane.b32.xlu0 %v5041, 124
        %v5086 = vpop.permute.xlu0 %5085
        %5087 = vrot.lane.b32.xlu0 %v5042, 124
        %v5088 = vpop.permute.xlu0 %5087
        %5089 = vrot.lane.b32.xlu0 %v5043, 124
        %v5090 = vpop.permute.xlu0 %5089
        %5091 = vrot.lane.b32.xlu0 %v5044, 124
        %v5092 = vpop.permute.xlu0 %5091
        %v5109 = vadd.f32 %v5013, %v5062
        %v5110 = vadd.f32 %v5014, %v5064
        %v5111 = vadd.f32 %v5015, %v5066
        %v5112 = vadd.f32 %v5016, %v5068
        %v5113 = vadd.f32 %v5017, %v5070
        %v5114 = vadd.f32 %v5018, %v5072
        %v5115 = vadd.f32 %v5019, %v5074
        %v5116 = vadd.f32 %v5020, %v5076
        %v5117 = vadd.f32 %v5021, %v5078
        %v5118 = vadd.f32 %v5022, %v5080
        %v5119 = vadd.f32 %v5023, %v5082
        %v5120 = vadd.f32 %v5024, %v5084
        %v5121 = vadd.f32 %v5025, %v5086
        %v5122 = vadd.f32 %v5026, %v5088
        %v5123 = vadd.f32 %v5027, %v5090
        %v5124 = vadd.f32 %v5028, %v5092
        %v5125 = vmul.f32 %v4709, 0.26601171
        %v5126 = vmul.f32 %v4710, 0.26601171
        %v5127 = vmul.f32 %v4711, 0.26601171
        %v5128 = vmul.f32 %v4712, 0.26601171
        %v5129 = vmul.f32 %v4713, 0.26601171
        %v5130 = vmul.f32 %v4714, 0.26601171
        %v5131 = vmul.f32 %v4715, 0.26601171
        %v5132 = vmul.f32 %v4716, 0.26601171
        %v5133 = vmul.f32 %v4717, 0.26601171
        %v5134 = vmul.f32 %v4718, 0.26601171
        %v5135 = vmul.f32 %v4719, 0.26601171
        %v5136 = vmul.f32 %v4720, 0.26601171
        %v5137 = vmul.f32 %v4721, 0.26601171
        %v5138 = vmul.f32 %v4722, 0.26601171
        %v5139 = vmul.f32 %v4723, 0.26601171
        %v5140 = vmul.f32 %v4724, 0.26601171
        %5157 = vrot.lane.b32.xlu0 %v5125, 123
        %v5158 = vpop.permute.xlu0 %5157
        %5159 = vrot.lane.b32.xlu0 %v5126, 123
        %v5160 = vpop.permute.xlu0 %5159
        %5161 = vrot.lane.b32.xlu0 %v5127, 123
        %v5162 = vpop.permute.xlu0 %5161
        %5163 = vrot.lane.b32.xlu0 %v5128, 123
        %v5164 = vpop.permute.xlu0 %5163
        %5165 = vrot.lane.b32.xlu0 %v5129, 123
        %v5166 = vpop.permute.xlu0 %5165
        %5167 = vrot.lane.b32.xlu0 %v5130, 123
        %v5168 = vpop.permute.xlu0 %5167
        %5169 = vrot.lane.b32.xlu0 %v5131, 123
        %v5170 = vpop.permute.xlu0 %5169
        %5171 = vrot.lane.b32.xlu0 %v5132, 123
        %v5172 = vpop.permute.xlu0 %5171
        %5173 = vrot.lane.b32.xlu0 %v5133, 123
        %v5174 = vpop.permute.xlu0 %5173
        %5175 = vrot.lane.b32.xlu0 %v5134, 123
        %v5176 = vpop.permute.xlu0 %5175
        %5177 = vrot.lane.b32.xlu0 %v5135, 123
        %v5178 = vpop.permute.xlu0 %5177
        %5179 = vrot.lane.b32.xlu0 %v5136, 123
        %v5180 = vpop.permute.xlu0 %5179
        %5181 = vrot.lane.b32.xlu0 %v5137, 123
        %v5182 = vpop.permute.xlu0 %5181
        %5183 = vrot.lane.b32.xlu0 %v5138, 123
        %v5184 = vpop.permute.xlu0 %5183
        %5185 = vrot.lane.b32.xlu0 %v5139, 123
        %v5186 = vpop.permute.xlu0 %5185
        %5187 = vrot.lane.b32.xlu0 %v5140, 123
        %v5188 = vpop.permute.xlu0 %5187
        %v5205 = vadd.f32 %v5109, %v5158
        %v5206 = vadd.f32 %v5110, %v5160
        %v5207 = vadd.f32 %v5111, %v5162
        %v5208 = vadd.f32 %v5112, %v5164
        %v5209 = vadd.f32 %v5113, %v5166
        %v5210 = vadd.f32 %v5114, %v5168
        %v5211 = vadd.f32 %v5115, %v5170
        %v5212 = vadd.f32 %v5116, %v5172
        %v5213 = vadd.f32 %v5117, %v5174
        %v5214 = vadd.f32 %v5118, %v5176
        %v5215 = vadd.f32 %v5119, %v5178
        %v5216 = vadd.f32 %v5120, %v5180
        %v5217 = vadd.f32 %v5121, %v5182
        %v5218 = vadd.f32 %v5122, %v5184
        %v5219 = vadd.f32 %v5123, %v5186
        %v5220 = vadd.f32 %v5124, %v5188
        %5221 = vrot.lane.b32.xlu0 %v5029, 122
        %v5222 = vpop.permute.xlu0 %5221
        %5223 = vrot.lane.b32.xlu0 %v5030, 122
        %v5224 = vpop.permute.xlu0 %5223
        %5225 = vrot.lane.b32.xlu0 %v5031, 122
        %v5226 = vpop.permute.xlu0 %5225
        %5227 = vrot.lane.b32.xlu0 %v5032, 122
        %v5228 = vpop.permute.xlu0 %5227
        %5229 = vrot.lane.b32.xlu0 %v5033, 122
        %v5230 = vpop.permute.xlu0 %5229
        %5231 = vrot.lane.b32.xlu0 %v5034, 122
        %v5232 = vpop.permute.xlu0 %5231
        %5233 = vrot.lane.b32.xlu0 %v5035, 122
        %v5234 = vpop.permute.xlu0 %5233
        %5235 = vrot.lane.b32.xlu0 %v5036, 122
        %v5236 = vpop.permute.xlu0 %5235
        %5237 = vrot.lane.b32.xlu0 %v5037, 122
        %v5238 = vpop.permute.xlu0 %5237
        %5239 = vrot.lane.b32.xlu0 %v5038, 122
        %v5240 = vpop.permute.xlu0 %5239
        %5241 = vrot.lane.b32.xlu0 %v5039, 122
        %v5242 = vpop.permute.xlu0 %5241
        %5243 = vrot.lane.b32.xlu0 %v5040, 122
        %v5244 = vpop.permute.xlu0 %5243
        %5245 = vrot.lane.b32.xlu0 %v5041, 122
        %v5246 = vpop.permute.xlu0 %5245
        %5247 = vrot.lane.b32.xlu0 %v5042, 122
        %v5248 = vpop.permute.xlu0 %5247
        %5249 = vrot.lane.b32.xlu0 %v5043, 122
        %v5250 = vpop.permute.xlu0 %5249
        %5251 = vrot.lane.b32.xlu0 %v5044, 122
        %v5252 = vpop.permute.xlu0 %5251
        %v5269 = vadd.f32 %v5205, %v5222
        %v5270 = vadd.f32 %v5206, %v5224
        %v5271 = vadd.f32 %v5207, %v5226
        %v5272 = vadd.f32 %v5208, %v5228
        %v5273 = vadd.f32 %v5209, %v5230
        %v5274 = vadd.f32 %v5210, %v5232
        %v5275 = vadd.f32 %v5211, %v5234
        %v5276 = vadd.f32 %v5212, %v5236
        %v5277 = vadd.f32 %v5213, %v5238
        %v5278 = vadd.f32 %v5214, %v5240
        %v5279 = vadd.f32 %v5215, %v5242
        %v5280 = vadd.f32 %v5216, %v5244
        %v5281 = vadd.f32 %v5217, %v5246
        %v5282 = vadd.f32 %v5218, %v5248
        %v5283 = vadd.f32 %v5219, %v5250
        %v5284 = vadd.f32 %v5220, %v5252
        %5285 = vrot.lane.b32.xlu0 %v4933, 121
        %v5286 = vpop.permute.xlu0 %5285
        %5287 = vrot.lane.b32.xlu0 %v4934, 121
        %v5288 = vpop.permute.xlu0 %5287
        %5289 = vrot.lane.b32.xlu0 %v4935, 121
        %v5290 = vpop.permute.xlu0 %5289
        %5291 = vrot.lane.b32.xlu0 %v4936, 121
        %v5292 = vpop.permute.xlu0 %5291
        %5293 = vrot.lane.b32.xlu0 %v4937, 121
        %v5294 = vpop.permute.xlu0 %5293
        %5295 = vrot.lane.b32.xlu0 %v4938, 121
        %v5296 = vpop.permute.xlu0 %5295
        %5297 = vrot.lane.b32.xlu0 %v4939, 121
        %v5298 = vpop.permute.xlu0 %5297
        %5299 = vrot.lane.b32.xlu0 %v4940, 121
        %v5300 = vpop.permute.xlu0 %5299
        %5301 = vrot.lane.b32.xlu0 %v4941, 121
        %v5302 = vpop.permute.xlu0 %5301
        %5303 = vrot.lane.b32.xlu0 %v4942, 121
        %v5304 = vpop.permute.xlu0 %5303
        %5305 = vrot.lane.b32.xlu0 %v4943, 121
        %v5306 = vpop.permute.xlu0 %5305
        %5307 = vrot.lane.b32.xlu0 %v4944, 121
        %v5308 = vpop.permute.xlu0 %5307
        %5309 = vrot.lane.b32.xlu0 %v4945, 121
        %v5310 = vpop.permute.xlu0 %5309
        %5311 = vrot.lane.b32.xlu0 %v4946, 121
        %v5312 = vpop.permute.xlu0 %5311
        %5313 = vrot.lane.b32.xlu0 %v4947, 121
        %v5314 = vpop.permute.xlu0 %5313
        %5315 = vrot.lane.b32.xlu0 %v4948, 121
        %v5316 = vpop.permute.xlu0 %5315
        %v5333 = vadd.f32 %v5269, %v5286
        %v5334 = vadd.f32 %v5270, %v5288
        %v5335 = vadd.f32 %v5271, %v5290
        %v5336 = vadd.f32 %v5272, %v5292
        %v5337 = vadd.f32 %v5273, %v5294
        %v5338 = vadd.f32 %v5274, %v5296
        %v5339 = vadd.f32 %v5275, %v5298
        %v5340 = vadd.f32 %v5276, %v5300
        %v5341 = vadd.f32 %v5277, %v5302
        %v5342 = vadd.f32 %v5278, %v5304
        %v5343 = vadd.f32 %v5279, %v5306
        %v5344 = vadd.f32 %v5280, %v5308
        %v5345 = vadd.f32 %v5281, %v5310
        %v5346 = vadd.f32 %v5282, %v5312
        %v5347 = vadd.f32 %v5283, %v5314
        %v5348 = vadd.f32 %v5284, %v5316
        %5349 = vrot.lane.b32.xlu0 %v4837, 120
        %v5350 = vpop.permute.xlu0 %5349
        %5351 = vrot.lane.b32.xlu0 %v4838, 120
        %v5352 = vpop.permute.xlu0 %5351
        %5353 = vrot.lane.b32.xlu0 %v4839, 120
        %v5354 = vpop.permute.xlu0 %5353
        %5355 = vrot.lane.b32.xlu0 %v4840, 120
        %v5356 = vpop.permute.xlu0 %5355
        %5357 = vrot.lane.b32.xlu0 %v4841, 120
        %v5358 = vpop.permute.xlu0 %5357
        %5359 = vrot.lane.b32.xlu0 %v4842, 120
        %v5360 = vpop.permute.xlu0 %5359
        %5361 = vrot.lane.b32.xlu0 %v4843, 120
        %v5362 = vpop.permute.xlu0 %5361
        %5363 = vrot.lane.b32.xlu0 %v4844, 120
        %v5364 = vpop.permute.xlu0 %5363
        %5365 = vrot.lane.b32.xlu0 %v4845, 120
        %v5366 = vpop.permute.xlu0 %5365
        %5367 = vrot.lane.b32.xlu0 %v4846, 120
        %v5368 = vpop.permute.xlu0 %5367
        %5369 = vrot.lane.b32.xlu0 %v4847, 120
        %v5370 = vpop.permute.xlu0 %5369
        %5371 = vrot.lane.b32.xlu0 %v4848, 120
        %v5372 = vpop.permute.xlu0 %5371
        %5373 = vrot.lane.b32.xlu0 %v4849, 120
        %v5374 = vpop.permute.xlu0 %5373
        %5375 = vrot.lane.b32.xlu0 %v4850, 120
        %v5376 = vpop.permute.xlu0 %5375
        %5377 = vrot.lane.b32.xlu0 %v4851, 120
        %v5378 = vpop.permute.xlu0 %5377
        %5379 = vrot.lane.b32.xlu0 %v4852, 120
        %v5380 = vpop.permute.xlu0 %5379
        %v5397 = vadd.f32 %v5333, %v5350
        %v5398 = vadd.f32 %v5334, %v5352
        %v5399 = vadd.f32 %v5335, %v5354
        %v5400 = vadd.f32 %v5336, %v5356
        %v5401 = vadd.f32 %v5337, %v5358
        %v5402 = vadd.f32 %v5338, %v5360
        %v5403 = vadd.f32 %v5339, %v5362
        %v5404 = vadd.f32 %v5340, %v5364
        %v5405 = vadd.f32 %v5341, %v5366
        %v5406 = vadd.f32 %v5342, %v5368
        %v5407 = vadd.f32 %v5343, %v5370
        %v5408 = vadd.f32 %v5344, %v5372
        %v5409 = vadd.f32 %v5345, %v5374
        %v5410 = vadd.f32 %v5346, %v5376
        %v5411 = vadd.f32 %v5347, %v5378
        %v5412 = vadd.f32 %v5348, %v5380
        %5413 = vrot.lane.b32.xlu0 %v4741, 119
        %v5414 = vpop.permute.xlu0 %5413
        %5415 = vrot.lane.b32.xlu0 %v4742, 119
        %v5416 = vpop.permute.xlu0 %5415
        %5417 = vrot.lane.b32.xlu0 %v4743, 119
        %v5418 = vpop.permute.xlu0 %5417
        %5419 = vrot.lane.b32.xlu0 %v4744, 119
        %v5420 = vpop.permute.xlu0 %5419
        %5421 = vrot.lane.b32.xlu0 %v4745, 119
        %v5422 = vpop.permute.xlu0 %5421
        %5423 = vrot.lane.b32.xlu0 %v4746, 119
        %v5424 = vpop.permute.xlu0 %5423
        %5425 = vrot.lane.b32.xlu0 %v4747, 119
        %v5426 = vpop.permute.xlu0 %5425
        %5427 = vrot.lane.b32.xlu0 %v4748, 119
        %v5428 = vpop.permute.xlu0 %5427
        %5429 = vrot.lane.b32.xlu0 %v4749, 119
        %v5430 = vpop.permute.xlu0 %5429
        %5431 = vrot.lane.b32.xlu0 %v4750, 119
        %v5432 = vpop.permute.xlu0 %5431
        %5433 = vrot.lane.b32.xlu0 %v4751, 119
        %v5434 = vpop.permute.xlu0 %5433
        %5435 = vrot.lane.b32.xlu0 %v4752, 119
        %v5436 = vpop.permute.xlu0 %5435
        %5437 = vrot.lane.b32.xlu0 %v4753, 119
        %v5438 = vpop.permute.xlu0 %5437
        %5439 = vrot.lane.b32.xlu0 %v4754, 119
        %v5440 = vpop.permute.xlu0 %5439
        %5441 = vrot.lane.b32.xlu0 %v4755, 119
        %v5442 = vpop.permute.xlu0 %5441
        %5443 = vrot.lane.b32.xlu0 %v4756, 119
        %v5444 = vpop.permute.xlu0 %5443
        %v5461 = vadd.f32 %v5397, %v5414
        %v5462 = vadd.f32 %v5398, %v5416
        %v5463 = vadd.f32 %v5399, %v5418
        %v5464 = vadd.f32 %v5400, %v5420
        %v5465 = vadd.f32 %v5401, %v5422
        %v5466 = vadd.f32 %v5402, %v5424
        %v5467 = vadd.f32 %v5403, %v5426
        %v5468 = vadd.f32 %v5404, %v5428
        %v5469 = vadd.f32 %v5405, %v5430
        %v5470 = vadd.f32 %v5406, %v5432
        %v5471 = vadd.f32 %v5407, %v5434
        %v5472 = vadd.f32 %v5408, %v5436
        %v5473 = vadd.f32 %v5409, %v5438
        %v5474 = vadd.f32 %v5410, %v5440
        %v5475 = vadd.f32 %v5411, %v5442
        %v5476 = vadd.f32 %v5412, %v5444
        %5493 = vrot.lane.b32.xlu0 %v4725, 118
        %v5494 = vpop.permute.xlu0 %5493
        %5495 = vrot.lane.b32.xlu0 %v4726, 118
        %v5496 = vpop.permute.xlu0 %5495
        %5497 = vrot.lane.b32.xlu0 %v4727, 118
        %v5498 = vpop.permute.xlu0 %5497
        %5499 = vrot.lane.b32.xlu0 %v4728, 118
        %v5500 = vpop.permute.xlu0 %5499
        %5501 = vrot.lane.b32.xlu0 %v4729, 118
        %v5502 = vpop.permute.xlu0 %5501
        %5503 = vrot.lane.b32.xlu0 %v4730, 118
        %v5504 = vpop.permute.xlu0 %5503
        %5505 = vrot.lane.b32.xlu0 %v4731, 118
        %v5506 = vpop.permute.xlu0 %5505
        %5507 = vrot.lane.b32.xlu0 %v4732, 118
        %v5508 = vpop.permute.xlu0 %5507
        %5509 = vrot.lane.b32.xlu0 %v4733, 118
        %v5510 = vpop.permute.xlu0 %5509
        %5511 = vrot.lane.b32.xlu0 %v4734, 118
        %v5512 = vpop.permute.xlu0 %5511
        %5513 = vrot.lane.b32.xlu0 %v4735, 118
        %v5514 = vpop.permute.xlu0 %5513
        %5515 = vrot.lane.b32.xlu0 %v4736, 118
        %v5516 = vpop.permute.xlu0 %5515
        %5517 = vrot.lane.b32.xlu0 %v4737, 118
        %v5518 = vpop.permute.xlu0 %5517
        %5519 = vrot.lane.b32.xlu0 %v4738, 118
        %v5520 = vpop.permute.xlu0 %5519
        %5521 = vrot.lane.b32.xlu0 %v4739, 118
        %v5522 = vpop.permute.xlu0 %5521
        %5523 = vrot.lane.b32.xlu0 %v4740, 118
        %v5524 = vpop.permute.xlu0 %5523
        %v5541 = vadd.f32 %v5461, %v5494
        %v5542 = vadd.f32 %v5462, %v5496
        %v5543 = vadd.f32 %v5463, %v5498
        %v5544 = vadd.f32 %v5464, %v5500
        %v5545 = vadd.f32 %v5465, %v5502
        %v5546 = vadd.f32 %v5466, %v5504
        %v5547 = vadd.f32 %v5467, %v5506
        %v5548 = vadd.f32 %v5468, %v5508
        %v5549 = vadd.f32 %v5469, %v5510
        %v5550 = vadd.f32 %v5470, %v5512
        %v5551 = vadd.f32 %v5471, %v5514
        %v5552 = vadd.f32 %v5472, %v5516
        %v5553 = vadd.f32 %v5473, %v5518
        %v5554 = vadd.f32 %v5474, %v5520
        %v5555 = vadd.f32 %v5475, %v5522
        %v5556 = vadd.f32 %v5476, %v5524
        %5557 = vst.msk [vmem:[#allocation3] sm:$0xff] %vm1009, %v5541
        %5558 = vst.msk [vmem:[#allocation3 + $0x8] sm:$0xff] %vm1009, %v5542
        %5559 = vst.msk [vmem:[#allocation3 + $0x10] sm:$0xff] %vm1009, %v5543
        %5560 = vst.msk [vmem:[#allocation3 + $0x18] sm:$0x3] %vm1013, %v5544
        %5561 = vst.msk [vmem:[#allocation3 + $0x20] sm:$0xff] %vm1009, %v5545
        %5562 = vst.msk [vmem:[#allocation3 + $0x28] sm:$0xff] %vm1009, %v5546
        %5563 = vst.msk [vmem:[#allocation3 + $0x30] sm:$0xff] %vm1009, %v5547
        %5564 = vst.msk [vmem:[#allocation3 + $0x38] sm:$0x3] %vm1013, %v5548
        %5565 = vst.msk [vmem:[#allocation3 + $0x40] sm:$0xff] %vm1009, %v5549
        %5566 = vst.msk [vmem:[#allocation3 + $0x48] sm:$0xff] %vm1009, %v5550
        %5567 = vst.msk [vmem:[#allocation3 + $0x50] sm:$0xff] %vm1009, %v5551
        %5568 = vst.msk [vmem:[#allocation3 + $0x58] sm:$0x3] %vm1013, %v5552
        %5569 = vst.msk [vmem:[#allocation3 + $0x60] sm:$0xff] %vm1009, %v5553
        %5570 = vst.msk [vmem:[#allocation3 + $0x68] sm:$0xff] %vm1009, %v5554
        %5571 = vst.msk [vmem:[#allocation3 + $0x70] sm:$0xff] %vm1009, %v5555
        %5572 = vst.msk [vmem:[#allocation3 + $0x78] sm:$0x3] %vm1013, %v5556
        %v5573 = vld [vmem:[#allocation3] sm:$0xff]
        %v5574 = vld [vmem:[#allocation3 + $0x8] sm:$0xff]
        %v5575 = vld [vmem:[#allocation3 + $0x20] sm:$0xff]
        %v5576 = vld [vmem:[#allocation3 + $0x28] sm:$0xff]
        %v5577 = vld [vmem:[#allocation3 + $0x40] sm:$0xff]
        %v5578 = vld [vmem:[#allocation3 + $0x48] sm:$0xff]
        %v5579 = vld [vmem:[#allocation3 + $0x60] sm:$0xff]
        %v5580 = vld [vmem:[#allocation3 + $0x68] sm:$0xff]
        %v5581 = vmul.f32 %v5573, 0.0010283801
        %v5582 = vmul.f32 %v5574, 0.0010283801
        %v5583 = vmul.f32 %v5575, 0.0010283801
        %v5584 = vmul.f32 %v5576, 0.0010283801
        %v5585 = vmul.f32 %v5577, 0.0010283801
        %v5586 = vmul.f32 %v5578, 0.0010283801
        %v5587 = vmul.f32 %v5579, 0.0010283801
        %v5588 = vmul.f32 %v5580, 0.0010283801
        %v5589 = vld [vmem:[#allocation3 + $0x1] sm:$0xff]
        %v5590 = vld [vmem:[#allocation3 + $0x9] sm:$0xff]
        %v5591 = vld [vmem:[#allocation3 + $0x21] sm:$0xff]
        %v5592 = vld [vmem:[#allocation3 + $0x29] sm:$0xff]
        %v5593 = vld [vmem:[#allocation3 + $0x41] sm:$0xff]
        %v5594 = vld [vmem:[#allocation3 + $0x49] sm:$0xff]
        %v5595 = vld [vmem:[#allocation3 + $0x61] sm:$0xff]
        %v5596 = vld [vmem:[#allocation3 + $0x69] sm:$0xff]
        %v5597 = vmul.f32 %v5589, 0.007598758
        %v5598 = vmul.f32 %v5590, 0.007598758
        %v5599 = vmul.f32 %v5591, 0.007598758
        %v5600 = vmul.f32 %v5592, 0.007598758
        %v5601 = vmul.f32 %v5593, 0.007598758
        %v5602 = vmul.f32 %v5594, 0.007598758
        %v5603 = vmul.f32 %v5595, 0.007598758
        %v5604 = vmul.f32 %v5596, 0.007598758
        %v5605 = vadd.f32 %v5581, %v5597
        %v5606 = vadd.f32 %v5582, %v5598
        %v5607 = vadd.f32 %v5583, %v5599
        %v5608 = vadd.f32 %v5584, %v5600
        %v5609 = vadd.f32 %v5585, %v5601
        %v5610 = vadd.f32 %v5586, %v5602
        %v5611 = vadd.f32 %v5587, %v5603
        %v5612 = vadd.f32 %v5588, %v5604
        %v5613 = vld [vmem:[#allocation3 + $0x2] sm:$0xff]
        %v5614 = vld [vmem:[#allocation3 + $0xa] sm:$0xff]
        %v5615 = vld [vmem:[#allocation3 + $0x22] sm:$0xff]
        %v5616 = vld [vmem:[#allocation3 + $0x2a] sm:$0xff]
        %v5617 = vld [vmem:[#allocation3 + $0x42] sm:$0xff]
        %v5618 = vld [vmem:[#allocation3 + $0x4a] sm:$0xff]
        %v5619 = vld [vmem:[#allocation3 + $0x62] sm:$0xff]
        %v5620 = vld [vmem:[#allocation3 + $0x6a] sm:$0xff]
        %v5621 = vmul.f32 %v5613, 0.036000773
        %v5622 = vmul.f32 %v5614, 0.036000773
        %v5623 = vmul.f32 %v5615, 0.036000773
        %v5624 = vmul.f32 %v5616, 0.036000773
        %v5625 = vmul.f32 %v5617, 0.036000773
        %v5626 = vmul.f32 %v5618, 0.036000773
        %v5627 = vmul.f32 %v5619, 0.036000773
        %v5628 = vmul.f32 %v5620, 0.036000773
        %v5629 = vadd.f32 %v5605, %v5621
        %v5630 = vadd.f32 %v5606, %v5622
        %v5631 = vadd.f32 %v5607, %v5623
        %v5632 = vadd.f32 %v5608, %v5624
        %v5633 = vadd.f32 %v5609, %v5625
        %v5634 = vadd.f32 %v5610, %v5626
        %v5635 = vadd.f32 %v5611, %v5627
        %v5636 = vadd.f32 %v5612, %v5628
        %v5637 = vld [vmem:[#allocation3 + $0x3] sm:$0xff]
        %v5638 = vld [vmem:[#allocation3 + $0xb] sm:$0xff]
        %v5639 = vld [vmem:[#allocation3 + $0x23] sm:$0xff]
        %v5640 = vld [vmem:[#allocation3 + $0x2b] sm:$0xff]
        %v5641 = vld [vmem:[#allocation3 + $0x43] sm:$0xff]
        %v5642 = vld [vmem:[#allocation3 + $0x4b] sm:$0xff]
        %v5643 = vld [vmem:[#allocation3 + $0x63] sm:$0xff]
        %v5644 = vld [vmem:[#allocation3 + $0x6b] sm:$0xff]
        %v5645 = vmul.f32 %v5637, 0.10936069
        %v5646 = vmul.f32 %v5638, 0.10936069
        %v5647 = vmul.f32 %v5639, 0.10936069
        %v5648 = vmul.f32 %v5640, 0.10936069
        %v5649 = vmul.f32 %v5641, 0.10936069
        %v5650 = vmul.f32 %v5642, 0.10936069
        %v5651 = vmul.f32 %v5643, 0.10936069
        %v5652 = vmul.f32 %v5644, 0.10936069
        %v5653 = vadd.f32 %v5629, %v5645
        %v5654 = vadd.f32 %v5630, %v5646
        %v5655 = vadd.f32 %v5631, %v5647
        %v5656 = vadd.f32 %v5632, %v5648
        %v5657 = vadd.f32 %v5633, %v5649
        %v5658 = vadd.f32 %v5634, %v5650
        %v5659 = vadd.f32 %v5635, %v5651
        %v5660 = vadd.f32 %v5636, %v5652
        %v5661 = vld [vmem:[#allocation3 + $0x4] sm:$0xff]
        %v5662 = vld [vmem:[#allocation3 + $0xc] sm:$0xff]
        %v5663 = vld [vmem:[#allocation3 + $0x24] sm:$0xff]
        %v5664 = vld [vmem:[#allocation3 + $0x2c] sm:$0xff]
        %v5665 = vld [vmem:[#allocation3 + $0x44] sm:$0xff]
        %v5666 = vld [vmem:[#allocation3 + $0x4c] sm:$0xff]
        %v5667 = vld [vmem:[#allocation3 + $0x64] sm:$0xff]
        %v5668 = vld [vmem:[#allocation3 + $0x6c] sm:$0xff]
        %v5669 = vmul.f32 %v5661, 0.21300554
        %v5670 = vmul.f32 %v5662, 0.21300554
        %v5671 = vmul.f32 %v5663, 0.21300554
        %v5672 = vmul.f32 %v5664, 0.21300554
        %v5673 = vmul.f32 %v5665, 0.21300554
        %v5674 = vmul.f32 %v5666, 0.21300554
        %v5675 = vmul.f32 %v5667, 0.21300554
        %v5676 = vmul.f32 %v5668, 0.21300554
        %v5677 = vadd.f32 %v5653, %v5669
        %v5678 = vadd.f32 %v5654, %v5670
        %v5679 = vadd.f32 %v5655, %v5671
        %v5680 = vadd.f32 %v5656, %v5672
        %v5681 = vadd.f32 %v5657, %v5673
        %v5682 = vadd.f32 %v5658, %v5674
        %v5683 = vadd.f32 %v5659, %v5675
        %v5684 = vadd.f32 %v5660, %v5676
        %v5685 = vld [vmem:[#allocation3 + $0x5] sm:$0xff]
        %v5686 = vld [vmem:[#allocation3 + $0xd] sm:$0xff]
        %v5687 = vld [vmem:[#allocation3 + $0x25] sm:$0xff]
        %v5688 = vld [vmem:[#allocation3 + $0x2d] sm:$0xff]
        %v5689 = vld [vmem:[#allocation3 + $0x45] sm:$0xff]
        %v5690 = vld [vmem:[#allocation3 + $0x4d] sm:$0xff]
        %v5691 = vld [vmem:[#allocation3 + $0x65] sm:$0xff]
        %v5692 = vld [vmem:[#allocation3 + $0x6d] sm:$0xff]
        %v5693 = vmul.f32 %v5685, 0.26601171
        %v5694 = vmul.f32 %v5686, 0.26601171
        %v5695 = vmul.f32 %v5687, 0.26601171
        %v5696 = vmul.f32 %v5688, 0.26601171
        %v5697 = vmul.f32 %v5689, 0.26601171
        %v5698 = vmul.f32 %v5690, 0.26601171
        %v5699 = vmul.f32 %v5691, 0.26601171
        %v5700 = vmul.f32 %v5692, 0.26601171
        %v5701 = vadd.f32 %v5677, %v5693
        %v5702 = vadd.f32 %v5678, %v5694
        %v5703 = vadd.f32 %v5679, %v5695
        %v5704 = vadd.f32 %v5680, %v5696
        %v5705 = vadd.f32 %v5681, %v5697
        %v5706 = vadd.f32 %v5682, %v5698
        %v5707 = vadd.f32 %v5683, %v5699
        %v5708 = vadd.f32 %v5684, %v5700
        %v5709 = vld [vmem:[#allocation3 + $0x6] sm:$0xff]
        %v5710 = vld [vmem:[#allocation3 + $0xe] sm:$0xff]
        %v5711 = vld [vmem:[#allocation3 + $0x26] sm:$0xff]
        %v5712 = vld [vmem:[#allocation3 + $0x2e] sm:$0xff]
        %v5713 = vld [vmem:[#allocation3 + $0x46] sm:$0xff]
        %v5714 = vld [vmem:[#allocation3 + $0x4e] sm:$0xff]
        %v5715 = vld [vmem:[#allocation3 + $0x66] sm:$0xff]
        %v5716 = vld [vmem:[#allocation3 + $0x6e] sm:$0xff]
        %v5717 = vmul.f32 %v5709, 0.21300554
        %v5718 = vmul.f32 %v5710, 0.21300554
        %v5719 = vmul.f32 %v5711, 0.21300554
        %v5720 = vmul.f32 %v5712, 0.21300554
        %v5721 = vmul.f32 %v5713, 0.21300554
        %v5722 = vmul.f32 %v5714, 0.21300554
        %v5723 = vmul.f32 %v5715, 0.21300554
        %v5724 = vmul.f32 %v5716, 0.21300554
        %v5725 = vadd.f32 %v5701, %v5717
        %v5726 = vadd.f32 %v5702, %v5718
        %v5727 = vadd.f32 %v5703, %v5719
        %v5728 = vadd.f32 %v5704, %v5720
        %v5729 = vadd.f32 %v5705, %v5721
        %v5730 = vadd.f32 %v5706, %v5722
        %v5731 = vadd.f32 %v5707, %v5723
        %v5732 = vadd.f32 %v5708, %v5724
        %v5733 = vld [vmem:[#allocation3 + $0x7] sm:$0xff]
        %v5734 = vld [vmem:[#allocation3 + $0xf] sm:$0xff]
        %v5735 = vld [vmem:[#allocation3 + $0x27] sm:$0xff]
        %v5736 = vld [vmem:[#allocation3 + $0x2f] sm:$0xff]
        %v5737 = vld [vmem:[#allocation3 + $0x47] sm:$0xff]
        %v5738 = vld [vmem:[#allocation3 + $0x4f] sm:$0xff]
        %v5739 = vld [vmem:[#allocation3 + $0x67] sm:$0xff]
        %v5740 = vld [vmem:[#allocation3 + $0x6f] sm:$0xff]
        %v5741 = vmul.f32 %v5733, 0.10936069
        %v5742 = vmul.f32 %v5734, 0.10936069
        %v5743 = vmul.f32 %v5735, 0.10936069
        %v5744 = vmul.f32 %v5736, 0.10936069
        %v5745 = vmul.f32 %v5737, 0.10936069
        %v5746 = vmul.f32 %v5738, 0.10936069
        %v5747 = vmul.f32 %v5739, 0.10936069
        %v5748 = vmul.f32 %v5740, 0.10936069
        %v5749 = vadd.f32 %v5725, %v5741
        %v5750 = vadd.f32 %v5726, %v5742
        %v5751 = vadd.f32 %v5727, %v5743
        %v5752 = vadd.f32 %v5728, %v5744
        %v5753 = vadd.f32 %v5729, %v5745
        %v5754 = vadd.f32 %v5730, %v5746
        %v5755 = vadd.f32 %v5731, %v5747
        %v5756 = vadd.f32 %v5732, %v5748
        %v5757 = vld [vmem:[#allocation3 + $0x10] sm:$0xff]
        %v5758 = vld [vmem:[#allocation3 + $0x30] sm:$0xff]
        %v5759 = vld [vmem:[#allocation3 + $0x50] sm:$0xff]
        %v5760 = vld [vmem:[#allocation3 + $0x70] sm:$0xff]
        %v5761 = vmul.f32 %v5574, 0.036000773
        %v5762 = vmul.f32 %v5757, 0.036000773
        %v5763 = vmul.f32 %v5576, 0.036000773
        %v5764 = vmul.f32 %v5758, 0.036000773
        %v5765 = vmul.f32 %v5578, 0.036000773
        %v5766 = vmul.f32 %v5759, 0.036000773
        %v5767 = vmul.f32 %v5580, 0.036000773
        %v5768 = vmul.f32 %v5760, 0.036000773
        %v5769 = vadd.f32 %v5749, %v5761
        %v5770 = vadd.f32 %v5750, %v5762
        %v5771 = vadd.f32 %v5751, %v5763
        %v5772 = vadd.f32 %v5752, %v5764
        %v5773 = vadd.f32 %v5753, %v5765
        %v5774 = vadd.f32 %v5754, %v5766
        %v5775 = vadd.f32 %v5755, %v5767
        %v5776 = vadd.f32 %v5756, %v5768
        %v5777 = vld [vmem:[#allocation3 + $0x11] sm:$0xff]
        %v5778 = vld [vmem:[#allocation3 + $0x31] sm:$0xff]
        %v5779 = vld [vmem:[#allocation3 + $0x51] sm:$0xff]
        %v5780 = vld [vmem:[#allocation3 + $0x71] sm:$0xff]
        %v5781 = vmul.f32 %v5777, 0.007598758
        %v5782 = vmul.f32 %v5778, 0.007598758
        %v5783 = vmul.f32 %v5779, 0.007598758
        %v5784 = vmul.f32 %v5780, 0.007598758
        %v5785 = vadd.f32 %v5769, %v5598
        %v5786 = vadd.f32 %v5770, %v5781
        %v5787 = vadd.f32 %v5771, %v5600
        %v5788 = vadd.f32 %v5772, %v5782
        %v5789 = vadd.f32 %v5773, %v5602
        %v5790 = vadd.f32 %v5774, %v5783
        %v5791 = vadd.f32 %v5775, %v5604
        %v5792 = vadd.f32 %v5776, %v5784
        %v5793 = vld [vmem:[#allocation3 + $0x12] sm:$0xff]
        %v5794 = vld [vmem:[#allocation3 + $0x32] sm:$0xff]
        %v5795 = vld [vmem:[#allocation3 + $0x52] sm:$0xff]
        %v5796 = vld [vmem:[#allocation3 + $0x72] sm:$0xff]
        %v5797 = vmul.f32 %v5614, 0.0010283801
        %v5798 = vmul.f32 %v5793, 0.0010283801
        %v5799 = vmul.f32 %v5616, 0.0010283801
        %v5800 = vmul.f32 %v5794, 0.0010283801
        %v5801 = vmul.f32 %v5618, 0.0010283801
        %v5802 = vmul.f32 %v5795, 0.0010283801
        %v5803 = vmul.f32 %v5620, 0.0010283801
        %v5804 = vmul.f32 %v5796, 0.0010283801
        %v5805 = vadd.f32 %v5785, %v5797
        %v5806 = vadd.f32 %v5786, %v5798
        %v5807 = vadd.f32 %v5787, %v5799
        %v5808 = vadd.f32 %v5788, %v5800
        %v5809 = vadd.f32 %v5789, %v5801
        %v5810 = vadd.f32 %v5790, %v5802
        %v5811 = vadd.f32 %v5791, %v5803
        %v5812 = vadd.f32 %v5792, %v5804
        %v5813 = vmul.f32 %v1259, %v1259
        %v5814 = vmul.f32 %v1260, %v1260
        %v5815 = vmul.f32 %v1261, %v1261
        %v5816 = vmul.f32 %v1262, %v1262
        %v5817 = vmul.f32 %v1263, %v1263
        %v5818 = vmul.f32 %v1264, %v1264
        %v5819 = vmul.f32 %v1265, %v1265
        %v5820 = vmul.f32 %v1266, %v1266
        %v5821 = vmul.f32 %v2363, %v2363
        %v5822 = vmul.f32 %v2364, %v2364
        %v5823 = vmul.f32 %v2365, %v2365
        %v5824 = vmul.f32 %v2366, %v2366
        %v5825 = vmul.f32 %v2367, %v2367
        %v5826 = vmul.f32 %v2368, %v2368
        %v5827 = vmul.f32 %v2369, %v2369
        %v5828 = vmul.f32 %v2370, %v2370
        %v5829 = vmul.f32 %v1259, %v2363
        %v5830 = vmul.f32 %v1260, %v2364
        %v5831 = vmul.f32 %v1261, %v2365
        %v5832 = vmul.f32 %v1262, %v2366
        %v5833 = vmul.f32 %v1263, %v2367
        %v5834 = vmul.f32 %v1264, %v2368
        %v5835 = vmul.f32 %v1265, %v2369
        %v5836 = vmul.f32 %v1266, %v2370
        %v5837 = vsub.f32 %v4669, %v5813
        %v5838 = vsub.f32 %v4670, %v5814
        %v5839 = vsub.f32 %v4671, %v5815
        %v5840 = vsub.f32 %v4672, %v5816
        %v5841 = vsub.f32 %v4673, %v5817
        %v5842 = vsub.f32 %v4674, %v5818
        %v5843 = vsub.f32 %v4675, %v5819
        %v5844 = vsub.f32 %v4676, %v5820
        %v5845 = vsub.f32 %v5805, %v5821
        %v5846 = vsub.f32 %v5806, %v5822
        %v5847 = vsub.f32 %v5807, %v5823
        %v5848 = vsub.f32 %v5808, %v5824
        %v5849 = vsub.f32 %v5809, %v5825
        %v5850 = vsub.f32 %v5810, %v5826
        %v5851 = vsub.f32 %v5811, %v5827
        %v5852 = vsub.f32 %v5812, %v5828
        %v5853 = vsub.f32 %v3533, %v5829
        %v5854 = vsub.f32 %v3534, %v5830
        %v5855 = vsub.f32 %v3535, %v5831
        %v5856 = vsub.f32 %v3536, %v5832
        %v5857 = vsub.f32 %v3537, %v5833
        %v5858 = vsub.f32 %v3538, %v5834
        %v5859 = vsub.f32 %v3539, %v5835
        %v5860 = vsub.f32 %v3540, %v5836
        %v5861 = vmul.f32 %v5829, 2.0
        %v5862 = vmul.f32 %v5830, 2.0
        %v5863 = vmul.f32 %v5831, 2.0
        %v5864 = vmul.f32 %v5832, 2.0
        %v5865 = vmul.f32 %v5833, 2.0
        %v5866 = vmul.f32 %v5834, 2.0
        %v5867 = vmul.f32 %v5835, 2.0
        %v5868 = vmul.f32 %v5836, 2.0
        %v5869 = vadd.f32 %v5861, 0.0001
        %v5870 = vadd.f32 %v5862, 0.0001
        %v5871 = vadd.f32 %v5863, 0.0001
        %v5872 = vadd.f32 %v5864, 0.0001
        %v5873 = vadd.f32 %v5865, 0.0001
        %v5874 = vadd.f32 %v5866, 0.0001
        %v5875 = vadd.f32 %v5867, 0.0001
        %v5876 = vadd.f32 %v5868, 0.0001
        %v5877 = vmul.f32 %v5853, 2.0
        %v5878 = vmul.f32 %v5854, 2.0
        %v5879 = vmul.f32 %v5855, 2.0
        %v5880 = vmul.f32 %v5856, 2.0
        %v5881 = vmul.f32 %v5857, 2.0
        %v5882 = vmul.f32 %v5858, 2.0
        %v5883 = vmul.f32 %v5859, 2.0
        %v5884 = vmul.f32 %v5860, 2.0
        %v5885 = vadd.f32 %v5877, 0.0009
        %v5886 = vadd.f32 %v5878, 0.0009
        %v5887 = vadd.f32 %v5879, 0.0009
        %v5888 = vadd.f32 %v5880, 0.0009
        %v5889 = vadd.f32 %v5881, 0.0009
        %v5890 = vadd.f32 %v5882, 0.0009
        %v5891 = vadd.f32 %v5883, 0.0009
        %v5892 = vadd.f32 %v5884, 0.0009
        %v5893 = vmul.f32 %v5869, %v5885
        %v5894 = vmul.f32 %v5870, %v5886
        %v5895 = vmul.f32 %v5871, %v5887
        %v5896 = vmul.f32 %v5872, %v5888
        %v5897 = vmul.f32 %v5873, %v5889
        %v5898 = vmul.f32 %v5874, %v5890
        %v5899 = vmul.f32 %v5875, %v5891
        %v5900 = vmul.f32 %v5876, %v5892
        %v5901 = vadd.f32 %v5813, %v5821
        %v5902 = vadd.f32 %v5814, %v5822
        %v5903 = vadd.f32 %v5815, %v5823
        %v5904 = vadd.f32 %v5816, %v5824
        %v5905 = vadd.f32 %v5817, %v5825
        %v5906 = vadd.f32 %v5818, %v5826
        %v5907 = vadd.f32 %v5819, %v5827
        %v5908 = vadd.f32 %v5820, %v5828
        %v5909 = vadd.f32 %v5901, 0.0001
        %v5910 = vadd.f32 %v5902, 0.0001
        %v5911 = vadd.f32 %v5903, 0.0001
        %v5912 = vadd.f32 %v5904, 0.0001
        %v5913 = vadd.f32 %v5905, 0.0001
        %v5914 = vadd.f32 %v5906, 0.0001
        %v5915 = vadd.f32 %v5907, 0.0001
        %v5916 = vadd.f32 %v5908, 0.0001
        %v5917 = vadd.f32 %v5837, %v5845
        %v5918 = vadd.f32 %v5838, %v5846
        %v5919 = vadd.f32 %v5839, %v5847
        %v5920 = vadd.f32 %v5840, %v5848
        %v5921 = vadd.f32 %v5841, %v5849
        %v5922 = vadd.f32 %v5842, %v5850
        %v5923 = vadd.f32 %v5843, %v5851
        %v5924 = vadd.f32 %v5844, %v5852
        %v5925 = vadd.f32 %v5917, 0.0009
        %v5926 = vadd.f32 %v5918, 0.0009
        %v5927 = vadd.f32 %v5919, 0.0009
        %v5928 = vadd.f32 %v5920, 0.0009
        %v5929 = vadd.f32 %v5921, 0.0009
        %v5930 = vadd.f32 %v5922, 0.0009
        %v5931 = vadd.f32 %v5923, 0.0009
        %v5932 = vadd.f32 %v5924, 0.0009
        %v5933 = vmul.f32 %v5909, %v5925
        %v5934 = vmul.f32 %v5910, %v5926
        %v5935 = vmul.f32 %v5911, %v5927
        %v5936 = vmul.f32 %v5912, %v5928
        %v5937 = vmul.f32 %v5913, %v5929
        %v5938 = vmul.f32 %v5914, %v5930
        %v5939 = vmul.f32 %v5915, %v5931
        %v5940 = vmul.f32 %v5916, %v5932
        %v5941 = vrcp.pop %v5933
        %v5942 = vmul.f32 %v5933, %v5941
        %v5943 = vsub.f32 1.0, %v5942
        %v5944 = vmul.f32 %v5941, %v5943
        %v5945 = vadd.f32 %v5941, %v5944
        %vm5946 = vweird.f32 %v5933
        %vm5947 = vweird.f32 %v5941
        %vm5948 = vmor %vm5946, %vm5947
        %v5949 = vsel %vm5948, %v5941, %v5945
        %v5950 = vand.u32 2147483647, %v5933
        %vm5951 = vcmp.eq.f32.partialorder %v5950, 8.507059e+37
        %v5952 = vand.u32 %v5933, 2147483648
        %v5953 = vor.u32 1.1754944e-38, %v5952
        %v5954 = vsel %vm5951, %v5953, %v5949
        %v5955 = vmul.f32 %v5893, %v5954
        %v5956 = vrcp.pop %v5934
        %v5957 = vmul.f32 %v5934, %v5956
        %v5958 = vsub.f32 1.0, %v5957
        %v5959 = vmul.f32 %v5956, %v5958
        %v5960 = vadd.f32 %v5956, %v5959
        %vm5961 = vweird.f32 %v5934
        %vm5962 = vweird.f32 %v5956
        %vm5963 = vmor %vm5961, %vm5962
        %v5964 = vsel %vm5963, %v5956, %v5960
        %v5965 = vand.u32 2147483647, %v5934
        %vm5966 = vcmp.eq.f32.partialorder %v5965, 8.507059e+37
        %v5967 = vand.u32 %v5934, 2147483648
        %v5968 = vor.u32 1.1754944e-38, %v5967
        %v5969 = vsel %vm5966, %v5968, %v5964
        %v5970 = vmul.f32 %v5894, %v5969
        %v5971 = vrcp.pop %v5935
        %v5972 = vmul.f32 %v5935, %v5971
        %v5973 = vsub.f32 1.0, %v5972
        %v5974 = vmul.f32 %v5971, %v5973
        %v5975 = vadd.f32 %v5971, %v5974
        %vm5976 = vweird.f32 %v5935
        %vm5977 = vweird.f32 %v5971
        %vm5978 = vmor %vm5976, %vm5977
        %v5979 = vsel %vm5978, %v5971, %v5975
        %v5980 = vand.u32 2147483647, %v5935
        %vm5981 = vcmp.eq.f32.partialorder %v5980, 8.507059e+37
        %v5982 = vand.u32 %v5935, 2147483648
        %v5983 = vor.u32 1.1754944e-38, %v5982
        %v5984 = vsel %vm5981, %v5983, %v5979
        %v5985 = vmul.f32 %v5895, %v5984
        %v5986 = vrcp.pop %v5936
        %v5987 = vmul.f32 %v5936, %v5986
        %v5988 = vsub.f32 1.0, %v5987
        %v5989 = vmul.f32 %v5986, %v5988
        %v5990 = vadd.f32 %v5986, %v5989
        %vm5991 = vweird.f32 %v5936
        %vm5992 = vweird.f32 %v5986
        %vm5993 = vmor %vm5991, %vm5992
        %v5994 = vsel %vm5993, %v5986, %v5990
        %v5995 = vand.u32 2147483647, %v5936
        %vm5996 = vcmp.eq.f32.partialorder %v5995, 8.507059e+37
        %v5997 = vand.u32 %v5936, 2147483648
        %v5998 = vor.u32 1.1754944e-38, %v5997
        %v5999 = vsel %vm5996, %v5998, %v5994
        %v6000 = vmul.f32 %v5896, %v5999
        %v6001 = vrcp.pop %v5937
        %v6002 = vmul.f32 %v5937, %v6001
        %v6003 = vsub.f32 1.0, %v6002
        %v6004 = vmul.f32 %v6001, %v6003
        %v6005 = vadd.f32 %v6001, %v6004
        %vm6006 = vweird.f32 %v5937
        %vm6007 = vweird.f32 %v6001
        %vm6008 = vmor %vm6006, %vm6007
        %v6009 = vsel %vm6008, %v6001, %v6005
        %v6010 = vand.u32 2147483647, %v5937
        %vm6011 = vcmp.eq.f32.partialorder %v6010, 8.507059e+37
        %v6012 = vand.u32 %v5937, 2147483648
        %v6013 = vor.u32 1.1754944e-38, %v6012
        %v6014 = vsel %vm6011, %v6013, %v6009
        %v6015 = vmul.f32 %v5897, %v6014
        %v6016 = vrcp.pop %v5938
        %v6017 = vmul.f32 %v5938, %v6016
        %v6018 = vsub.f32 1.0, %v6017
        %v6019 = vmul.f32 %v6016, %v6018
        %v6020 = vadd.f32 %v6016, %v6019
        %vm6021 = vweird.f32 %v5938
        %vm6022 = vweird.f32 %v6016
        %vm6023 = vmor %vm6021, %vm6022
        %v6024 = vsel %vm6023, %v6016, %v6020
        %v6025 = vand.u32 2147483647, %v5938
        %vm6026 = vcmp.eq.f32.partialorder %v6025, 8.507059e+37
        %v6027 = vand.u32 %v5938, 2147483648
        %v6028 = vor.u32 1.1754944e-38, %v6027
        %v6029 = vsel %vm6026, %v6028, %v6024
        %v6030 = vmul.f32 %v5898, %v6029
        %v6031 = vrcp.pop %v5939
        %v6032 = vmul.f32 %v5939, %v6031
        %v6033 = vsub.f32 1.0, %v6032
        %v6034 = vmul.f32 %v6031, %v6033
        %v6035 = vadd.f32 %v6031, %v6034
        %vm6036 = vweird.f32 %v5939
        %vm6037 = vweird.f32 %v6031
        %vm6038 = vmor %vm6036, %vm6037
        %v6039 = vsel %vm6038, %v6031, %v6035
        %v6040 = vand.u32 2147483647, %v5939
        %vm6041 = vcmp.eq.f32.partialorder %v6040, 8.507059e+37
        %v6042 = vand.u32 %v5939, 2147483648
        %v6043 = vor.u32 1.1754944e-38, %v6042
        %v6044 = vsel %vm6041, %v6043, %v6039
        %v6045 = vmul.f32 %v5899, %v6044
        %v6046 = vrcp.pop %v5940
        %v6047 = vmul.f32 %v5940, %v6046
        %v6048 = vsub.f32 1.0, %v6047
        %v6049 = vmul.f32 %v6046, %v6048
        %v6050 = vadd.f32 %v6046, %v6049
        %vm6051 = vweird.f32 %v5940
        %vm6052 = vweird.f32 %v6046
        %vm6053 = vmor %vm6051, %vm6052
        %v6054 = vsel %vm6053, %v6046, %v6050
        %v6055 = vand.u32 2147483647, %v5940
        %vm6056 = vcmp.eq.f32.partialorder %v6055, 8.507059e+37
        %v6057 = vand.u32 %v5940, 2147483648
        %v6058 = vor.u32 1.1754944e-38, %v6057
        %v6059 = vsel %vm6056, %v6058, %v6054
        %v6060 = vmul.f32 %v5900, %v6059
        %v6061 = vsel %vm1009, %v5955, 0.0
        %6062 = vadd.xlane.f32.xlu0 %v6061
        %v6063 = vpop.xlane.xlu0 %6062
        %v6064 = vsel %vm1009, %v5970, 0.0
        %6065 = vadd.xlane.f32.xlu0 %v6064
        %v6066 = vpop.xlane.xlu0 %6065
        %v6067 = vsel %vm1009, %v5985, 0.0
        %6068 = vadd.xlane.f32.xlu0 %v6067
        %v6069 = vpop.xlane.xlu0 %6068
        %v6070 = vsel %vm1009, %v6000, 0.0
        %6071 = vadd.xlane.f32.xlu0 %v6070
        %v6072 = vpop.xlane.xlu0 %6071
        %v6073 = vsel %vm1009, %v6015, 0.0
        %6074 = vadd.xlane.f32.xlu0 %v6073
        %v6075 = vpop.xlane.xlu0 %6074
        %v6076 = vsel %vm1009, %v6030, 0.0
        %6077 = vadd.xlane.f32.xlu0 %v6076
        %v6078 = vpop.xlane.xlu0 %6077
        %v6079 = vsel %vm1009, %v6045, 0.0
        %6080 = vadd.xlane.f32.xlu0 %v6079
        %v6081 = vpop.xlane.xlu0 %6080
        %v6082 = vsel %vm1009, %v6060, 0.0
        %6083 = vadd.xlane.f32.xlu0 %v6082
        %v6084 = vpop.xlane.xlu0 %6083
        %v6093 = vlaneseq
        %v6094 = vand.u32 %v6093, 127
        %v6095 = vperm.slane %v6063, %v6094
        %v6096 = vadd.s32 %v6094, 4294967288
        %v6097 = vperm.slane %v6066, %v6096
        %vm6098 = vcmask 130112
        %v6099 = vsel %vm6098, %v6097, %v6095
        %v6100 = vperm.slane %v6069, %v6094
        %v6101 = vperm.slane %v6072, %v6096
        %v6102 = vsel %vm6098, %v6101, %v6100
        %v6103 = vperm.slane %v6075, %v6094
        %v6104 = vperm.slane %v6078, %v6096
        %v6105 = vsel %vm6098, %v6104, %v6103
        %v6106 = vperm.slane %v6081, %v6094
        %v6107 = vperm.slane %v6084, %v6096
        %v6108 = vsel %vm6098, %v6107, %v6106
        %vm6109 = vcmask 1041409
        %v6110 = vsel %vm6109, %v6102, %v6099
        %vm6111 = vcmask 1042434
        %v6112 = vsel %vm6111, %v6105, %v6110
        %vm6113 = vcmask 1043459
        %v6114 = vsel %vm6113, %v6108, %v6112
        %vm6116 = vcmask 125952
        %v6117 = vsel %vm6116, %v6114, 0.0
        %6118 = vadd.xlane.f32.xlu0 %v6117
        %v6119 = vpop.xlane.xlu0 %6118
        %v6121 = vperm.slane %v6119, %v6094
        %vm6123 = vcmask 24576
        %6124 = vst.msk [vmem:[%s150] sm:$0x1] %vm6123, %v6121
        %s6125 = sand.u32 %s76, 1
        %s6126 = scalar_lea.sflag [#allocation5], %s6125
        %s6127 = sand.u32 %s76, 1
        %s6128 = scalar_lea.vmem [#allocation4], %s6127
        // Predicated region
        $region29: #{tpu_custom_call.1} parent=27 // pred_check
          %p6129 = pneg %p86
        $region30: #{tpu_custom_call.1} parent=27 // pred_check_branch
          %6131 = sbr.rel (%p6129) target = $region32
        $region31: #{tpu_custom_call.1} parent=27 // pred_region
          %6133 = vsyncadd %s6126, 0
          %s6134 = scalar_lea.hbm %s2, %s16
          %s6136 = sshll.u32 %s6128, 4
          %s6137 = int_to_ptr.vmem [resolvable:$true] %s6136
          %s6138 = sshll.u32 %s6134, 4
          %s6139 = int_to_ptr.hbm [resolvable:$true] %s6138
          %6141 = dma.vmem_to_hbm [thread:$0]  %s6137, 16, %s6139, %s6126
        $region32: #{tpu_custom_call.1} parent=27 // pred_fallthru
          _
      $region28: #{tpu_custom_call.1} parent=5 // pred_fallthru
        _
      %p6142 = scmp.le.s32.totalorder 2, %s11
      // Predicated region
      $region33: #{tpu_custom_call.1} parent=5 // pred_check
        %p6143 = pneg %p6142
      $region34: #{tpu_custom_call.1} parent=5 // pred_check_branch
        %6145 = sbr.rel (%p6143) target = $region36
      $region35: #{tpu_custom_call.1} parent=5 // pred_region
        %s6146 = ssub.s32 %s11, 2
        // Predicated region
        $region37: #{tpu_custom_call.1} parent=35 // pred_check
          %p6147 = pneg %p92
        $region38: #{tpu_custom_call.1} parent=35 // pred_check_branch
          %6149 = sbr.rel (%p6147) target = $region40
        $region39: #{tpu_custom_call.1} parent=35 // pred_region
          %s6150 = sand.u32 %s77, 1
          %s6151 = scalar_lea.sflag [#allocation5], %s6150
          %s6152 = sand.u32 %s77, 1
          %s6153 = scalar_lea.vmem [#allocation4], %s6152
          %6155 = dma.done %s6151, 16
        $region40: #{tpu_custom_call.1} parent=35 // pred_fallthru
          _
      $region36: #{tpu_custom_call.1} parent=5 // pred_fallthru
        _
    $region6: #{tpu_custom_call.1} parent=1 // loop_footer
      %s15 = sadd.s32 1, %s11
    $region7: #{tpu_custom_call.1} parent=1 // loop_footer_branch
      %10 = sbr.rel target = $region3
    $region8: #{tpu_custom_call.1} parent=1 // loop_exit
      _
    %6156 = vsyncpa [#allocation5], 1
    %s6157 = scalar_lea.sflag [#allocation5], 1
    %6158 = vsyncpa %s6157, 1

</llo_original>
